<compile_context>
chip_gen: v7x
topology: tpu7x:2x2x1
jax: 0.10.0
libtpu: 0.0.40
codegen_flags: <defaults>
</compile_context>

<pallas_src>
import jax
import jax.numpy as jnp
from jax.experimental import pallas as pl
from jax.experimental.pallas import tpu as pltpu


def _round_up(v, m):
    return -(-v // m) * m


# --------------------------------------------------------------------------
# Fused kernel: whole skip_clipLSTM forward in one invocation (no grid).
# --------------------------------------------------------------------------
def build_skip_clip_lstm_kernel(cfg):
    T = cfg["T"]
    Bp = cfg["Bp"]
    Fpad = cfg["Fpad"]
    Hmax = cfg["Hmax"]
    Gmax = cfg["Gmax"]
    nlayer1, nlayer2, nlayer3 = cfg["nlayer1"], cfg["nlayer2"], cfg["nlayer3"]
    H1, H2, H3 = cfg["H1"], cfg["H2"], cfg["H3"]
    Din1 = cfg["Din1"]
    layer_stride = Fpad + Hmax + 8           # rows per layer in the weight slab
    out_len = 2 * nlayer2                    # length of the sequence fed to lstm3

    # Per-layer static (input_dim, hidden_dim), in slab order.
    layers = ([(Din1 if l == 0 else H1, H1) for l in range(nlayer1)]
              + [(H1 if l == 0 else H2, H2) for l in range(nlayer2)]
              + [(H2 if l == 0 else H3, H3) for l in range(nlayer3)])

    # Row offsets inside the packed state slab.
    off_x = 0
    off_lasth = T
    off_lastc = off_lasth + nlayer1
    off_lH2 = off_lastc + nlayer1
    off_lC2 = off_lH2 + nlayer2
    off_lH3 = off_lC2 + nlayer2
    off_lC3 = off_lH3 + nlayer3

    def pad_lanes(a, width):
        if a.shape[-1] == width:
            return a
        z = jnp.zeros(a.shape[:-1] + (width - a.shape[-1],), a.dtype)
        return jnp.concatenate([a, z], axis=-1)

    def kernel(state_ref, w_ref, out_ref, seq_ref, gx_ref):
        def run_layer(layer_idx, Ts, h0, c0):
            """Run layer `layer_idx` over seq_ref[0:Ts] (output written in place).

            Weight slab rows for this layer:
              [r0          : r0+Fpad]       W_ih (zero-padded to (Fpad, Gmax))
              [r0+Fpad     : r0+Fpad+H]     W_hh (H, Gmax)
              [r0+Fpad+Hmax: +1]            bias  (1, Gmax)
            Gate lane order inside Gmax: i | f | o | g.
            Returns (hT, cT), exact width H.
            """
            Din, H = layers[layer_idx]
            r0 = layer_idx * layer_stride
            wih = w_ref[r0:r0 + Fpad, :]                              # (Fpad, Gmax)
            whh = w_ref[r0 + Fpad:r0 + Fpad + H, :]                   # (H, Gmax)
            b = w_ref[r0 + Fpad + Hmax:r0 + Fpad + Hmax + 1, :]       # (1, Gmax)

            # Hoisted input projection for the WHOLE sequence: one MXU matmul.
            xflat = seq_ref[0:Ts].reshape(Ts * Bp, Fpad)
            gx = jnp.dot(xflat, wih, preferred_element_type=jnp.float32) + b
            gx_ref[0:Ts] = gx.reshape(Ts, Bp, Gmax)

            h, c = h0, c0
            for t in range(Ts):                                       # static unroll
                # One fused (Bp,H)x(H,4H) matmul on the serial recurrent path.
                z = gx_ref[t] + jnp.dot(h, whh, preferred_element_type=jnp.float32)
                s = jax.nn.sigmoid(z[:, 0:3 * H])                     # i | f | o slab
                g = jnp.tanh(z[:, 3 * H:4 * H])
                i_g = s[:, 0:H]
                f_g = s[:, H:2 * H]
                o_g = s[:, 2 * H:3 * H]
                c = f_g * c + i_g * g
                h = o_g * jnp.tanh(c)
                seq_ref[t] = pad_lanes(h, Fpad)   # stage output seq in VMEM scratch
            return h, c

        # Load the input sequence into the sequence scratch.
        seq_ref[0:T] = state_ref[off_x:off_x + T]

        li = 0
        # ---------------- LSTM1 ----------------
        h1s = []
        for l in range(nlayer1):
            h0 = state_ref[off_lasth + l][:, 0:H1]
            c0 = state_ref[off_lastc + l][:, 0:H1]
            hT, _ = run_layer(li, T, h0, c0)
            li += 1
            h1s.append(hT)

        # x1 = cat(lasth, h1)  -> sequence of length 2*nlayer1
        for l in range(nlayer1):
            seq_ref[l] = state_ref[off_lasth + l]
            seq_ref[nlayer1 + l] = pad_lanes(h1s[l], Fpad)

        # ---------------- LSTM2 ----------------
        h2s, c2s = [], []
        for l in range(nlayer2):
            h0 = state_ref[off_lH2 + l][:, 0:H2]
            c0 = state_ref[off_lC2 + l][:, 0:H2]
            hT, cT = run_layer(li, 2 * nlayer1, h0, c0)
            li += 1
            h2s.append(hT)
            c2s.append(cT)

        # x2 = cat(lastH2, h2)  -> sequence of length 2*nlayer2
        for l in range(nlayer2):
            seq_ref[l] = state_ref[off_lH2 + l]
            seq_ref[nlayer2 + l] = pad_lanes(h2s[l], Fpad)

        # ---------------- LSTM3 ----------------
        h3s, c3s = [], []
        for l in range(nlayer3):
            h0 = state_ref[off_lH3 + l][:, 0:H3]
            c0 = state_ref[off_lC3 + l][:, 0:H3]
            hT, cT = run_layer(li, 2 * nlayer2, h0, c0)
            li += 1
            h3s.append(hT)
            c3s.append(cT)

        # -------- single merged, lane-dense writeback: out3 | h3 | c3 | h2 | c2 --------
        tails = ([pad_lanes(h, Fpad)[None] for h in h3s]
                 + [pad_lanes(c, Fpad)[None] for c in c3s]
                 + [pad_lanes(h, Fpad)[None] for h in h2s]
                 + [pad_lanes(c, Fpad)[None] for c in c2s])
        out_ref[...] = jnp.concatenate([seq_ref[0:out_len]] + tails, axis=0)

    return kernel


# --------------------------------------------------------------------------
# Wrapper: pack inputs, run the fused kernel, split outputs.
# Params are in per-gate layout (PyTorch gate order i,f,g,o):
#   w_ih:(4,Din,H)  w_hh:(4,H,H)  b:(4,1,H)  (b = b_ih + b_hh)
# --------------------------------------------------------------------------
def skip_clip_lstm_forward(p1, p2, p3, x, lasth, lastc,
                           lastH2, lastC2, lastH3, lastC3):
    T, B, Din1 = x.shape
    nlayer1, _, H1 = lasth.shape
    nlayer2, _, H2 = lastH2.shape
    nlayer3, _, H3 = lastH3.shape

    f32 = jnp.float32
    Bp = max(8, _round_up(B, 8))
    Hmax = _round_up(max(H1, H2, H3), 8)
    Fpad = _round_up(max(Din1, H1, H2, H3), 8)
    Gmax = 4 * Hmax
    Smax = max(T, 2 * nlayer1, 2 * nlayer2)
    out_len = 2 * nlayer2
    Nout = out_len + 2 * nlayer3 + 2 * nlayer2

    # ---- pack the 7 state tensors into ONE (Ns, Bp, Fpad) slab ----
    def pad_state(a):
        n, b, f = a.shape
        return jnp.pad(a.astype(f32), ((0, 0), (0, Bp - b), (0, Fpad - f)))

    state_slab = jnp.concatenate(
        [pad_state(x), pad_state(lasth), pad_state(lastc),
         pad_state(lastH2), pad_state(lastC2),
         pad_state(lastH3), pad_state(lastC3)], axis=0)

    # ---- pack all 5 layers' weights into ONE (rows, Gmax) slab ----
    # Gate reorder: PyTorch (i,f,g,o) -> fused lanes (i,f,o,g) so the three
    # sigmoid gates are a contiguous 3H lane slab.
    order = (0, 1, 3, 2)
    blocks = []
    for p in (p1, p2, p3):
        for (w_ih, w_hh, b) in p:
            d_in, h = w_ih.shape[1], w_ih.shape[2]
            wih_f = jnp.concatenate([w_ih[k] for k in order], axis=1)   # (Din, 4H)
            whh_f = jnp.concatenate([w_hh[k] for k in order], axis=1)   # (H, 4H)
            b_f = jnp.concatenate([b[k] for k in order], axis=1)        # (1, 4H)
            blocks.append(jnp.pad(wih_f.astype(f32),
                                  ((0, Fpad - d_in), (0, Gmax - 4 * h))))
            blocks.append(jnp.pad(whh_f.astype(f32),
                                  ((0, Hmax - h), (0, Gmax - 4 * h))))
            blocks.append(jnp.pad(b_f.astype(f32),
                                  ((0, 8 - 1), (0, Gmax - 4 * h))))
    w_slab = jnp.concatenate(blocks, axis=0)

    cfg = dict(T=T, Bp=Bp, Fpad=Fpad, Hmax=Hmax, Gmax=Gmax,
               nlayer1=nlayer1, nlayer2=nlayer2, nlayer3=nlayer3,
               H1=H1, H2=H2, H3=H3, Din1=Din1)
    kernel = build_skip_clip_lstm_kernel(cfg)

    vmem = pl.BlockSpec(memory_space=pltpu.MemorySpace.VMEM)
    out = pl.pallas_call(
        kernel,
        out_shape=jax.ShapeDtypeStruct((Nout, Bp, Fpad), f32),
        in_specs=[vmem, vmem],
        out_specs=vmem,
        scratch_shapes=[
            pltpu.VMEM((Smax, Bp, Fpad), f32),   # current layer input/output sequence
            pltpu.VMEM((Smax, Bp, Gmax), f32),   # hoisted input-projection slab
        ],
    )(state_slab, w_slab)

    out3 = out[0:out_len, :B, :H3].astype(x.dtype)
    o = out_len
    h3 = out[o:o + nlayer3, :B, :H3].astype(x.dtype); o += nlayer3
    c3 = out[o:o + nlayer3, :B, :H3].astype(x.dtype); o += nlayer3
    h2 = out[o:o + nlayer2, :B, :H2].astype(x.dtype); o += nlayer2
    c2 = out[o:o + nlayer2, :B, :H2].astype(x.dtype)
    return out3, (h3, c3), (h2, c2)


# --------------------------------------------------------------------------
# Pure-JAX reference (lax.scan) for correctness checking (same param layout).
# --------------------------------------------------------------------------
def _lstm_layer_ref(x, h0, c0, w_ih, w_hh, b):
    def step(carry, xt):
        h, c = carry
        i = jax.nn.sigmoid(xt @ w_ih[0] + h @ w_hh[0] + b[0])
        f = jax.nn.sigmoid(xt @ w_ih[1] + h @ w_hh[1] + b[1])
        g = jnp.tanh(xt @ w_ih[2] + h @ w_hh[2] + b[2])
        o = jax.nn.sigmoid(xt @ w_ih[3] + h @ w_hh[3] + b[3])
        c = f * c + i * g
        h = o * jnp.tanh(c)
        return (h, c), h

    (hT, cT), out = jax.lax.scan(step, (h0, c0), x)
    return out, hT, cT


def _multi_layer_lstm_ref(layer_params, x, h0_stack, c0_stack):
    hs, cs = [], []
    cur = x
    for layer, (w_ih, w_hh, b) in enumerate(layer_params):
        cur, hT, cT = _lstm_layer_ref(cur, h0_stack[layer], c0_stack[layer],
                                      w_ih, w_hh, b)
        hs.append(hT)
        cs.append(cT)
    return cur, jnp.stack(hs, axis=0), jnp.stack(cs, axis=0)


def _skip_clip_ref(p1, p2, p3, x, lasth, lastc, lastH2, lastC2, lastH3, lastC3):
    out1, h1, c1 = _multi_layer_lstm_ref(p1, x, lasth, lastc)
    x1 = jnp.concatenate([lasth, h1], axis=0)
    out2, h2, c2 = _multi_layer_lstm_ref(p2, x1, lastH2, lastC2)
    x2 = jnp.concatenate([lastH2, h2], axis=0)
    out3, h3, c3 = _multi_layer_lstm_ref(p3, x2, lastH3, lastC3)
    return out3, (h3, c3), (h2, c2)


# --------------------------------------------------------------------------
# Deterministic init, PyTorch nn.LSTM semantics, per-gate layout.
# Gate order (i, f, g, o); b = b_ih + b_hh; uniform(-1/sqrt(H), 1/sqrt(H)).
# --------------------------------------------------------------------------
def init_lstm_params(key, input_dim, hidden_dim, nlayers):
    params = []
    k = 1.0 / float(hidden_dim) ** 0.5
    for layer in range(nlayers):
        d_in = input_dim if layer == 0 else hidden_dim
        key, k1, k2, k3, k4 = jax.random.split(key, 5)
        w_ih = jax.random.uniform(k1, (4, d_in, hidden_dim), jnp.float32, -k, k)
        w_hh = jax.random.uniform(k2, (4, hidden_dim, hidden_dim), jnp.float32, -k, k)
        b_ih = jax.random.uniform(k3, (4, 1, hidden_dim), jnp.float32, -k, k)
        b_hh = jax.random.uniform(k4, (4, 1, hidden_dim), jnp.float32, -k, k)
        params.append((w_ih, w_hh, b_ih + b_hh))
    return params, key


if __name__ == "__main__":
    # Module hyper-parameters (small, consistent with skip_clipLSTM.__init__).
    dd = 4                       # "dd" in the module == batch size
    input_dim1 = 8
    hidden_dim1, nlayer1 = 16, 2
    hidden_dim2, nlayer2 = 16, 2
    hidden_dim3, nlayer3 = 16, 1
    T = 8                        # input sequence length

    key = jax.random.PRNGKey(0)
    key, kx, kh, kc = jax.random.split(key, 4)
    x = jax.random.normal(kx, (T, dd, input_dim1), jnp.float32)
    lasth = jax.random.normal(kh, (nlayer1, dd, hidden_dim1), jnp.float32)
    lastc = jax.random.normal(kc, (nlayer1, dd, hidden_dim1), jnp.float32)

    p1, key = init_lstm_params(key, input_dim1, hidden_dim1, nlayer1)
    p2, key = init_lstm_params(key, hidden_dim1, hidden_dim2, nlayer2)
    p3, key = init_lstm_params(key, hidden_dim2, hidden_dim3, nlayer3)

    # Stateful buffers start at zeros (first forward call).
    lastH2 = jnp.zeros((nlayer2, dd, hidden_dim2), jnp.float32)
    lastC2 = jnp.zeros_like(lastH2)
    lastH3 = jnp.zeros((nlayer3, dd, hidden_dim3), jnp.float32)
    lastC3 = jnp.zeros_like(lastH3)

    out3, (h3, c3), (h2, c2) = skip_clip_lstm_forward(
        p1, p2, p3, x, lasth, lastc, lastH2, lastC2, lastH3, lastC3)
    jax.block_until_ready((out3, h3, c3, h2, c2))

    # Sanity: shapes match the PyTorch module's outputs (+ persistent state).
    assert out3.shape == (2 * nlayer2, dd, hidden_dim3)
    assert h3.shape == (nlayer3, dd, hidden_dim3)
    assert c3.shape == (nlayer3, dd, hidden_dim3)
    assert h2.shape == (nlayer2, dd, hidden_dim2)
    assert c2.shape == (nlayer2, dd, hidden_dim2)

    # Numerical check against a pure-JAX lax.scan reference.
    out3_r, (h3_r, c3_r), (h2_r, c2_r) = _skip_clip_ref(
        p1, p2, p3, x, lasth, lastc, lastH2, lastC2, lastH3, lastC3)
    assert jnp.allclose(out3, out3_r, atol=1e-4, rtol=1e-4)
    assert jnp.allclose(h3, h3_r, atol=1e-4, rtol=1e-4)
    assert jnp.allclose(c3, c3_r, atol=1e-4, rtol=1e-4)
    assert jnp.allclose(h2, h2_r, atol=1e-4, rtol=1e-4)
    assert jnp.allclose(c2, c2_r, atol=1e-4, rtol=1e-4)

    # Second "streaming" call re-feeding the returned state (lastH2/C2/H3/C3),
    # mimicking the module's persistent-buffer update path.
    out3b, (h3b, c3b), _ = skip_clip_lstm_forward(
        p1, p2, p3, x, lasth, lastc, h2, c2, h3, c3)
    out3b_r, (h3b_r, c3b_r), _ = _skip_clip_ref(
        p1, p2, p3, x, lasth, lastc, h2_r, c2_r, h3_r, c3_r)
    assert jnp.allclose(out3b, out3b_r, atol=1e-4, rtol=1e-4)
    assert jnp.allclose(h3b, h3b_r, atol=1e-4, rtol=1e-4)
    assert jnp.allclose(c3b, c3b_r, atol=1e-4, rtol=1e-4)

    print("KERNEL_OK")
</pallas_src>

<mosaic_0001>
module attributes {stable_mosaic.version = 11 : i64} {
  func.func @kernel(%arg0: memref<18x8x16xf32, #tpu.memory_space<vmem>>, %arg1: memref<200x64xf32, #tpu.memory_space<vmem>>, %arg2: memref<10x8x16xf32, #tpu.memory_space<vmem>>, %arg3: memref<8x8x16xf32, #tpu.memory_space<vmem>>, %arg4: memref<8x8x64xf32, #tpu.memory_space<vmem>>) attributes {dimension_semantics = [], scalar_prefetch = 0 : i64, scratch_operands = 2 : i64, tpu.core_type = #tpu.core_type<tc>} {
    %c0 = arith.constant 0 : index
    %c0_0 = arith.constant 0 : index
    %c0_1 = arith.constant 0 : index
    %0 = vector.load %arg0[%c0, %c0_0, %c0_1] : memref<18x8x16xf32, #tpu.memory_space<vmem>>, vector<8x8x16xf32>
    %c0_2 = arith.constant 0 : index
    %c0_3 = arith.constant 0 : index
    %c0_4 = arith.constant 0 : index
    %1 = vector.load %arg3[%c0_2, %c0_3, %c0_4] : memref<8x8x16xf32, #tpu.memory_space<vmem>>, vector<8x8x16xf32>
    tpu.vector_store %arg3[%c0_2, %c0_3, %c0_4], %0 {strides = array<i32>} : memref<8x8x16xf32, #tpu.memory_space<vmem>>, vector<8x8x16xf32>,
    %c8 = arith.constant 8 : index
    %c0_5 = arith.constant 0 : index
    %c0_6 = arith.constant 0 : index
    %2 = vector.load %arg0[%c8, %c0_5, %c0_6] : memref<18x8x16xf32, #tpu.memory_space<vmem>>, vector<1x8x16xf32>
    %3 = vector.shape_cast %2 : vector<1x8x16xf32> to vector<8x16xf32>
    %c10 = arith.constant 10 : index
    %c0_7 = arith.constant 0 : index
    %c0_8 = arith.constant 0 : index
    %4 = vector.load %arg0[%c10, %c0_7, %c0_8] : memref<18x8x16xf32, #tpu.memory_space<vmem>>, vector<1x8x16xf32>
    %5 = vector.shape_cast %4 : vector<1x8x16xf32> to vector<8x16xf32>
    %c0_9 = arith.constant 0 : index
    %c0_10 = arith.constant 0 : index
    %6 = vector.load %arg1[%c0_9, %c0_10] : memref<200x64xf32, #tpu.memory_space<vmem>>, vector<16x64xf32>
    %c16 = arith.constant 16 : index
    %c0_11 = arith.constant 0 : index
    %7 = vector.load %arg1[%c16, %c0_11] : memref<200x64xf32, #tpu.memory_space<vmem>>, vector<16x64xf32>
    %c32 = arith.constant 32 : index
    %c0_12 = arith.constant 0 : index
    %8 = vector.load %arg1[%c32, %c0_12] : memref<200x64xf32, #tpu.memory_space<vmem>>, vector<1x64xf32>
    %c0_13 = arith.constant 0 : index
    %c0_14 = arith.constant 0 : index
    %c0_15 = arith.constant 0 : index
    %9 = vector.load %arg3[%c0_13, %c0_14, %c0_15] : memref<8x8x16xf32, #tpu.memory_space<vmem>>, vector<8x8x16xf32>
    %10 = vector.shape_cast %9 : vector<8x8x16xf32> to vector<64x16xf32>
    %cst = arith.constant dense<0.000000e+00> : vector<64x64xf32>
    %11 = tpu.matmul %10, %6, %cst {dimension_numbers = #tpu.dot_dimension_numbers<[1], [0], [0], [1], [0, 0, 1, 1], [], []>} : vector<64x16xf32>, vector<16x64xf32>, vector<64x64xf32> -> vector<64x64xf32>
    %12 = vector.broadcast %8 : vector<1x64xf32> to vector<64x64xf32>
    %13 = arith.addf %11, %12 : vector<64x64xf32>
    %14 = vector.shape_cast %13 : vector<64x64xf32> to vector<8x8x64xf32>
    %c0_16 = arith.constant 0 : index
    %c0_17 = arith.constant 0 : index
    %c0_18 = arith.constant 0 : index
    %15 = vector.load %arg4[%c0_16, %c0_17, %c0_18] : memref<8x8x64xf32, #tpu.memory_space<vmem>>, vector<8x8x64xf32>
    tpu.vector_store %arg4[%c0_16, %c0_17, %c0_18], %14 {strides = array<i32>} : memref<8x8x64xf32, #tpu.memory_space<vmem>>, vector<8x8x64xf32>,
    %c0_19 = arith.constant 0 : index
    %c0_20 = arith.constant 0 : index
    %c0_21 = arith.constant 0 : index
    %16 = vector.load %arg4[%c0_19, %c0_20, %c0_21] : memref<8x8x64xf32, #tpu.memory_space<vmem>>, vector<1x8x64xf32>
    %17 = vector.shape_cast %16 : vector<1x8x64xf32> to vector<8x64xf32>
    %cst_22 = arith.constant dense<0.000000e+00> : vector<8x64xf32>
    %18 = tpu.matmul %3, %7, %cst_22 {dimension_numbers = #tpu.dot_dimension_numbers<[1], [0], [0], [1], [0, 0, 1, 1], [], []>} : vector<8x16xf32>, vector<16x64xf32>, vector<8x64xf32> -> vector<8x64xf32>
    %19 = arith.addf %17, %18 : vector<8x64xf32>
    %20 = vector.extract_strided_slice %19 {offsets = [0, 0], sizes = [8, 48], strides = [1, 1]} : vector<8x64xf32> to vector<8x48xf32>
    %21 = arith.negf %20 : vector<8x48xf32>
    %22 = math.exp %21 : vector<8x48xf32>
    %cst_23 = arith.constant 1.000000e+00 : f32
    %23 = vector.broadcast %cst_23 : f32 to vector<8x48xf32>
    %24 = arith.addf %23, %22 : vector<8x48xf32>
    %25 = arith.divf %23, %24 : vector<8x48xf32>
    %26 = vector.extract_strided_slice %19 {offsets = [0, 48], sizes = [8, 16], strides = [1, 1]} : vector<8x64xf32> to vector<8x16xf32>
    %27 = math.tanh %26 : vector<8x16xf32>
    %28 = vector.extract_strided_slice %25 {offsets = [0, 0], sizes = [8, 16], strides = [1, 1]} : vector<8x48xf32> to vector<8x16xf32>
    %29 = vector.extract_strided_slice %25 {offsets = [0, 16], sizes = [8, 16], strides = [1, 1]} : vector<8x48xf32> to vector<8x16xf32>
    %30 = vector.extract_strided_slice %25 {offsets = [0, 32], sizes = [8, 16], strides = [1, 1]} : vector<8x48xf32> to vector<8x16xf32>
    %31 = arith.mulf %29, %5 : vector<8x16xf32>
    %32 = arith.mulf %28, %27 : vector<8x16xf32>
    %33 = arith.addf %31, %32 : vector<8x16xf32>
    %34 = math.tanh %33 : vector<8x16xf32>
    %35 = arith.mulf %30, %34 : vector<8x16xf32>
    %c0_24 = arith.constant 0 : index
    %c0_25 = arith.constant 0 : index
    %c0_26 = arith.constant 0 : index
    %36 = vector.load %arg3[%c0_24, %c0_25, %c0_26] : memref<8x8x16xf32, #tpu.memory_space<vmem>>, vector<1x8x16xf32>
    %37 = vector.shape_cast %36 : vector<1x8x16xf32> to vector<8x16xf32>
    %38 = vector.shape_cast %35 : vector<8x16xf32> to vector<1x8x16xf32>
    tpu.vector_store %arg3[%c0_24, %c0_25, %c0_26], %38 {strides = array<i32>} : memref<8x8x16xf32, #tpu.memory_space<vmem>>, vector<1x8x16xf32>,
    %c1 = arith.constant 1 : index
    %c0_27 = arith.constant 0 : index
    %c0_28 = arith.constant 0 : index
    %39 = vector.load %arg4[%c1, %c0_27, %c0_28] : memref<8x8x64xf32, #tpu.memory_space<vmem>>, vector<1x8x64xf32>
    %40 = vector.shape_cast %39 : vector<1x8x64xf32> to vector<8x64xf32>
    %cst_29 = arith.constant dense<0.000000e+00> : vector<8x64xf32>
    %41 = tpu.matmul %35, %7, %cst_29 {dimension_numbers = #tpu.dot_dimension_numbers<[1], [0], [0], [1], [0, 0, 1, 1], [], []>} : vector<8x16xf32>, vector<16x64xf32>, vector<8x64xf32> -> vector<8x64xf32>
    %42 = arith.addf %40, %41 : vector<8x64xf32>
    %43 = vector.extract_strided_slice %42 {offsets = [0, 0], sizes = [8, 48], strides = [1, 1]} : vector<8x64xf32> to vector<8x48xf32>
    %44 = arith.negf %43 : vector<8x48xf32>
    %45 = math.exp %44 : vector<8x48xf32>
    %cst_30 = arith.constant 1.000000e+00 : f32
    %46 = vector.broadcast %cst_30 : f32 to vector<8x48xf32>
    %47 = arith.addf %46, %45 : vector<8x48xf32>
    %48 = arith.divf %46, %47 : vector<8x48xf32>
    %49 = vector.extract_strided_slice %42 {offsets = [0, 48], sizes = [8, 16], strides = [1, 1]} : vector<8x64xf32> to vector<8x16xf32>
    %50 = math.tanh %49 : vector<8x16xf32>
    %51 = vector.extract_strided_slice %48 {offsets = [0, 0], sizes = [8, 16], strides = [1, 1]} : vector<8x48xf32> to vector<8x16xf32>
    %52 = vector.extract_strided_slice %48 {offsets = [0, 16], sizes = [8, 16], strides = [1, 1]} : vector<8x48xf32> to vector<8x16xf32>
    %53 = vector.extract_strided_slice %48 {offsets = [0, 32], sizes = [8, 16], strides = [1, 1]} : vector<8x48xf32> to vector<8x16xf32>
    %54 = arith.mulf %52, %33 : vector<8x16xf32>
    %55 = arith.mulf %51, %50 : vector<8x16xf32>
    %56 = arith.addf %54, %55 : vector<8x16xf32>
    %57 = math.tanh %56 : vector<8x16xf32>
    %58 = arith.mulf %53, %57 : vector<8x16xf32>
    %c1_31 = arith.constant 1 : index
    %c0_32 = arith.constant 0 : index
    %c0_33 = arith.constant 0 : index
    %59 = vector.load %arg3[%c1_31, %c0_32, %c0_33] : memref<8x8x16xf32, #tpu.memory_space<vmem>>, vector<1x8x16xf32>
    %60 = vector.shape_cast %59 : vector<1x8x16xf32> to vector<8x16xf32>
    %61 = vector.shape_cast %58 : vector<8x16xf32> to vector<1x8x16xf32>
    tpu.vector_store %arg3[%c1_31, %c0_32, %c0_33], %61 {strides = array<i32>} : memref<8x8x16xf32, #tpu.memory_space<vmem>>, vector<1x8x16xf32>,
    %c2 = arith.constant 2 : index
    %c0_34 = arith.constant 0 : index
    %c0_35 = arith.constant 0 : index
    %62 = vector.load %arg4[%c2, %c0_34, %c0_35] : memref<8x8x64xf32, #tpu.memory_space<vmem>>, vector<1x8x64xf32>
    %63 = vector.shape_cast %62 : vector<1x8x64xf32> to vector<8x64xf32>
    %cst_36 = arith.constant dense<0.000000e+00> : vector<8x64xf32>
    %64 = tpu.matmul %58, %7, %cst_36 {dimension_numbers = #tpu.dot_dimension_numbers<[1], [0], [0], [1], [0, 0, 1, 1], [], []>} : vector<8x16xf32>, vector<16x64xf32>, vector<8x64xf32> -> vector<8x64xf32>
    %65 = arith.addf %63, %64 : vector<8x64xf32>
    %66 = vector.extract_strided_slice %65 {offsets = [0, 0], sizes = [8, 48], strides = [1, 1]} : vector<8x64xf32> to vector<8x48xf32>
    %67 = arith.negf %66 : vector<8x48xf32>
    %68 = math.exp %67 : vector<8x48xf32>
    %cst_37 = arith.constant 1.000000e+00 : f32
    %69 = vector.broadcast %cst_37 : f32 to vector<8x48xf32>
    %70 = arith.addf %69, %68 : vector<8x48xf32>
    %71 = arith.divf %69, %70 : vector<8x48xf32>
    %72 = vector.extract_strided_slice %65 {offsets = [0, 48], sizes = [8, 16], strides = [1, 1]} : vector<8x64xf32> to vector<8x16xf32>
    %73 = math.tanh %72 : vector<8x16xf32>
    %74 = vector.extract_strided_slice %71 {offsets = [0, 0], sizes = [8, 16], strides = [1, 1]} : vector<8x48xf32> to vector<8x16xf32>
    %75 = vector.extract_strided_slice %71 {offsets = [0, 16], sizes = [8, 16], strides = [1, 1]} : vector<8x48xf32> to vector<8x16xf32>
    %76 = vector.extract_strided_slice %71 {offsets = [0, 32], sizes = [8, 16], strides = [1, 1]} : vector<8x48xf32> to vector<8x16xf32>
    %77 = arith.mulf %75, %56 : vector<8x16xf32>
    %78 = arith.mulf %74, %73 : vector<8x16xf32>
    %79 = arith.addf %77, %78 : vector<8x16xf32>
    %80 = math.tanh %79 : vector<8x16xf32>
    %81 = arith.mulf %76, %80 : vector<8x16xf32>
    %c2_38 = arith.constant 2 : index
    %c0_39 = arith.constant 0 : index
    %c0_40 = arith.constant 0 : index
    %82 = vector.load %arg3[%c2_38, %c0_39, %c0_40] : memref<8x8x16xf32, #tpu.memory_space<vmem>>, vector<1x8x16xf32>
    %83 = vector.shape_cast %82 : vector<1x8x16xf32> to vector<8x16xf32>
    %84 = vector.shape_cast %81 : vector<8x16xf32> to vector<1x8x16xf32>
    tpu.vector_store %arg3[%c2_38, %c0_39, %c0_40], %84 {strides = array<i32>} : memref<8x8x16xf32, #tpu.memory_space<vmem>>, vector<1x8x16xf32>,
    %c3 = arith.constant 3 : index
    %c0_41 = arith.constant 0 : index
    %c0_42 = arith.constant 0 : index
    %85 = vector.load %arg4[%c3, %c0_41, %c0_42] : memref<8x8x64xf32, #tpu.memory_space<vmem>>, vector<1x8x64xf32>
    %86 = vector.shape_cast %85 : vector<1x8x64xf32> to vector<8x64xf32>
    %cst_43 = arith.constant dense<0.000000e+00> : vector<8x64xf32>
    %87 = tpu.matmul %81, %7, %cst_43 {dimension_numbers = #tpu.dot_dimension_numbers<[1], [0], [0], [1], [0, 0, 1, 1], [], []>} : vector<8x16xf32>, vector<16x64xf32>, vector<8x64xf32> -> vector<8x64xf32>
    %88 = arith.addf %86, %87 : vector<8x64xf32>
    %89 = vector.extract_strided_slice %88 {offsets = [0, 0], sizes = [8, 48], strides = [1, 1]} : vector<8x64xf32> to vector<8x48xf32>
    %90 = arith.negf %89 : vector<8x48xf32>
    %91 = math.exp %90 : vector<8x48xf32>
    %cst_44 = arith.constant 1.000000e+00 : f32
    %92 = vector.broadcast %cst_44 : f32 to vector<8x48xf32>
    %93 = arith.addf %92, %91 : vector<8x48xf32>
    %94 = arith.divf %92, %93 : vector<8x48xf32>
    %95 = vector.extract_strided_slice %88 {offsets = [0, 48], sizes = [8, 16], strides = [1, 1]} : vector<8x64xf32> to vector<8x16xf32>
    %96 = math.tanh %95 : vector<8x16xf32>
    %97 = vector.extract_strided_slice %94 {offsets = [0, 0], sizes = [8, 16], strides = [1, 1]} : vector<8x48xf32> to vector<8x16xf32>
    %98 = vector.extract_strided_slice %94 {offsets = [0, 16], sizes = [8, 16], strides = [1, 1]} : vector<8x48xf32> to vector<8x16xf32>
    %99 = vector.extract_strided_slice %94 {offsets = [0, 32], sizes = [8, 16], strides = [1, 1]} : vector<8x48xf32> to vector<8x16xf32>
    %100 = arith.mulf %98, %79 : vector<8x16xf32>
    %101 = arith.mulf %97, %96 : vector<8x16xf32>
    %102 = arith.addf %100, %101 : vector<8x16xf32>
    %103 = math.tanh %102 : vector<8x16xf32>
    %104 = arith.mulf %99, %103 : vector<8x16xf32>
    %c3_45 = arith.constant 3 : index
    %c0_46 = arith.constant 0 : index
    %c0_47 = arith.constant 0 : index
    %105 = vector.load %arg3[%c3_45, %c0_46, %c0_47] : memref<8x8x16xf32, #tpu.memory_space<vmem>>, vector<1x8x16xf32>
    %106 = vector.shape_cast %105 : vector<1x8x16xf32> to vector<8x16xf32>
    %107 = vector.shape_cast %104 : vector<8x16xf32> to vector<1x8x16xf32>
    tpu.vector_store %arg3[%c3_45, %c0_46, %c0_47], %107 {strides = array<i32>} : memref<8x8x16xf32, #tpu.memory_space<vmem>>, vector<1x8x16xf32>,
    %c4 = arith.constant 4 : index
    %c0_48 = arith.constant 0 : index
    %c0_49 = arith.constant 0 : index
    %108 = vector.load %arg4[%c4, %c0_48, %c0_49] : memref<8x8x64xf32, #tpu.memory_space<vmem>>, vector<1x8x64xf32>
    %109 = vector.shape_cast %108 : vector<1x8x64xf32> to vector<8x64xf32>
    %cst_50 = arith.constant dense<0.000000e+00> : vector<8x64xf32>
    %110 = tpu.matmul %104, %7, %cst_50 {dimension_numbers = #tpu.dot_dimension_numbers<[1], [0], [0], [1], [0, 0, 1, 1], [], []>} : vector<8x16xf32>, vector<16x64xf32>, vector<8x64xf32> -> vector<8x64xf32>
    %111 = arith.addf %109, %110 : vector<8x64xf32>
    %112 = vector.extract_strided_slice %111 {offsets = [0, 0], sizes = [8, 48], strides = [1, 1]} : vector<8x64xf32> to vector<8x48xf32>
    %113 = arith.negf %112 : vector<8x48xf32>
    %114 = math.exp %113 : vector<8x48xf32>
    %cst_51 = arith.constant 1.000000e+00 : f32
    %115 = vector.broadcast %cst_51 : f32 to vector<8x48xf32>
    %116 = arith.addf %115, %114 : vector<8x48xf32>
    %117 = arith.divf %115, %116 : vector<8x48xf32>
    %118 = vector.extract_strided_slice %111 {offsets = [0, 48], sizes = [8, 16], strides = [1, 1]} : vector<8x64xf32> to vector<8x16xf32>
    %119 = math.tanh %118 : vector<8x16xf32>
    %120 = vector.extract_strided_slice %117 {offsets = [0, 0], sizes = [8, 16], strides = [1, 1]} : vector<8x48xf32> to vector<8x16xf32>
    %121 = vector.extract_strided_slice %117 {offsets = [0, 16], sizes = [8, 16], strides = [1, 1]} : vector<8x48xf32> to vector<8x16xf32>
    %122 = vector.extract_strided_slice %117 {offsets = [0, 32], sizes = [8, 16], strides = [1, 1]} : vector<8x48xf32> to vector<8x16xf32>
    %123 = arith.mulf %121, %102 : vector<8x16xf32>
    %124 = arith.mulf %120, %119 : vector<8x16xf32>
    %125 = arith.addf %123, %124 : vector<8x16xf32>
    %126 = math.tanh %125 : vector<8x16xf32>
    %127 = arith.mulf %122, %126 : vector<8x16xf32>
    %c4_52 = arith.constant 4 : index
    %c0_53 = arith.constant 0 : index
    %c0_54 = arith.constant 0 : index
    %128 = vector.load %arg3[%c4_52, %c0_53, %c0_54] : memref<8x8x16xf32, #tpu.memory_space<vmem>>, vector<1x8x16xf32>
    %129 = vector.shape_cast %128 : vector<1x8x16xf32> to vector<8x16xf32>
    %130 = vector.shape_cast %127 : vector<8x16xf32> to vector<1x8x16xf32>
    tpu.vector_store %arg3[%c4_52, %c0_53, %c0_54], %130 {strides = array<i32>} : memref<8x8x16xf32, #tpu.memory_space<vmem>>, vector<1x8x16xf32>,
    %c5 = arith.constant 5 : index
    %c0_55 = arith.constant 0 : index
    %c0_56 = arith.constant 0 : index
    %131 = vector.load %arg4[%c5, %c0_55, %c0_56] : memref<8x8x64xf32, #tpu.memory_space<vmem>>, vector<1x8x64xf32>
    %132 = vector.shape_cast %131 : vector<1x8x64xf32> to vector<8x64xf32>
    %cst_57 = arith.constant dense<0.000000e+00> : vector<8x64xf32>
    %133 = tpu.matmul %127, %7, %cst_57 {dimension_numbers = #tpu.dot_dimension_numbers<[1], [0], [0], [1], [0, 0, 1, 1], [], []>} : vector<8x16xf32>, vector<16x64xf32>, vector<8x64xf32> -> vector<8x64xf32>
    %134 = arith.addf %132, %133 : vector<8x64xf32>
    %135 = vector.extract_strided_slice %134 {offsets = [0, 0], sizes = [8, 48], strides = [1, 1]} : vector<8x64xf32> to vector<8x48xf32>
    %136 = arith.negf %135 : vector<8x48xf32>
    %137 = math.exp %136 : vector<8x48xf32>
    %cst_58 = arith.constant 1.000000e+00 : f32
    %138 = vector.broadcast %cst_58 : f32 to vector<8x48xf32>
    %139 = arith.addf %138, %137 : vector<8x48xf32>
    %140 = arith.divf %138, %139 : vector<8x48xf32>
    %141 = vector.extract_strided_slice %134 {offsets = [0, 48], sizes = [8, 16], strides = [1, 1]} : vector<8x64xf32> to vector<8x16xf32>
    %142 = math.tanh %141 : vector<8x16xf32>
    %143 = vector.extract_strided_slice %140 {offsets = [0, 0], sizes = [8, 16], strides = [1, 1]} : vector<8x48xf32> to vector<8x16xf32>
    %144 = vector.extract_strided_slice %140 {offsets = [0, 16], sizes = [8, 16], strides = [1, 1]} : vector<8x48xf32> to vector<8x16xf32>
    %145 = vector.extract_strided_slice %140 {offsets = [0, 32], sizes = [8, 16], strides = [1, 1]} : vector<8x48xf32> to vector<8x16xf32>
    %146 = arith.mulf %144, %125 : vector<8x16xf32>
    %147 = arith.mulf %143, %142 : vector<8x16xf32>
    %148 = arith.addf %146, %147 : vector<8x16xf32>
    %149 = math.tanh %148 : vector<8x16xf32>
    %150 = arith.mulf %145, %149 : vector<8x16xf32>
    %c5_59 = arith.constant 5 : index
    %c0_60 = arith.constant 0 : index
    %c0_61 = arith.constant 0 : index
    %151 = vector.load %arg3[%c5_59, %c0_60, %c0_61] : memref<8x8x16xf32, #tpu.memory_space<vmem>>, vector<1x8x16xf32>
    %152 = vector.shape_cast %151 : vector<1x8x16xf32> to vector<8x16xf32>
    %153 = vector.shape_cast %150 : vector<8x16xf32> to vector<1x8x16xf32>
    tpu.vector_store %arg3[%c5_59, %c0_60, %c0_61], %153 {strides = array<i32>} : memref<8x8x16xf32, #tpu.memory_space<vmem>>, vector<1x8x16xf32>,
    %c6 = arith.constant 6 : index
    %c0_62 = arith.constant 0 : index
    %c0_63 = arith.constant 0 : index
    %154 = vector.load %arg4[%c6, %c0_62, %c0_63] : memref<8x8x64xf32, #tpu.memory_space<vmem>>, vector<1x8x64xf32>
    %155 = vector.shape_cast %154 : vector<1x8x64xf32> to vector<8x64xf32>
    %cst_64 = arith.constant dense<0.000000e+00> : vector<8x64xf32>
    %156 = tpu.matmul %150, %7, %cst_64 {dimension_numbers = #tpu.dot_dimension_numbers<[1], [0], [0], [1], [0, 0, 1, 1], [], []>} : vector<8x16xf32>, vector<16x64xf32>, vector<8x64xf32> -> vector<8x64xf32>
    %157 = arith.addf %155, %156 : vector<8x64xf32>
    %158 = vector.extract_strided_slice %157 {offsets = [0, 0], sizes = [8, 48], strides = [1, 1]} : vector<8x64xf32> to vector<8x48xf32>
    %159 = arith.negf %158 : vector<8x48xf32>
    %160 = math.exp %159 : vector<8x48xf32>
    %cst_65 = arith.constant 1.000000e+00 : f32
    %161 = vector.broadcast %cst_65 : f32 to vector<8x48xf32>
    %162 = arith.addf %161, %160 : vector<8x48xf32>
    %163 = arith.divf %161, %162 : vector<8x48xf32>
    %164 = vector.extract_strided_slice %157 {offsets = [0, 48], sizes = [8, 16], strides = [1, 1]} : vector<8x64xf32> to vector<8x16xf32>
    %165 = math.tanh %164 : vector<8x16xf32>
    %166 = vector.extract_strided_slice %163 {offsets = [0, 0], sizes = [8, 16], strides = [1, 1]} : vector<8x48xf32> to vector<8x16xf32>
    %167 = vector.extract_strided_slice %163 {offsets = [0, 16], sizes = [8, 16], strides = [1, 1]} : vector<8x48xf32> to vector<8x16xf32>
    %168 = vector.extract_strided_slice %163 {offsets = [0, 32], sizes = [8, 16], strides = [1, 1]} : vector<8x48xf32> to vector<8x16xf32>
    %169 = arith.mulf %167, %148 : vector<8x16xf32>
    %170 = arith.mulf %166, %165 : vector<8x16xf32>
    %171 = arith.addf %169, %170 : vector<8x16xf32>
    %172 = math.tanh %171 : vector<8x16xf32>
    %173 = arith.mulf %168, %172 : vector<8x16xf32>
    %c6_66 = arith.constant 6 : index
    %c0_67 = arith.constant 0 : index
    %c0_68 = arith.constant 0 : index
    %174 = vector.load %arg3[%c6_66, %c0_67, %c0_68] : memref<8x8x16xf32, #tpu.memory_space<vmem>>, vector<1x8x16xf32>
    %175 = vector.shape_cast %174 : vector<1x8x16xf32> to vector<8x16xf32>
    %176 = vector.shape_cast %173 : vector<8x16xf32> to vector<1x8x16xf32>
    tpu.vector_store %arg3[%c6_66, %c0_67, %c0_68], %176 {strides = array<i32>} : memref<8x8x16xf32, #tpu.memory_space<vmem>>, vector<1x8x16xf32>,
    %c7 = arith.constant 7 : index
    %c0_69 = arith.constant 0 : index
    %c0_70 = arith.constant 0 : index
    %177 = vector.load %arg4[%c7, %c0_69, %c0_70] : memref<8x8x64xf32, #tpu.memory_space<vmem>>, vector<1x8x64xf32>
    %178 = vector.shape_cast %177 : vector<1x8x64xf32> to vector<8x64xf32>
    %cst_71 = arith.constant dense<0.000000e+00> : vector<8x64xf32>
    %179 = tpu.matmul %173, %7, %cst_71 {dimension_numbers = #tpu.dot_dimension_numbers<[1], [0], [0], [1], [0, 0, 1, 1], [], []>} : vector<8x16xf32>, vector<16x64xf32>, vector<8x64xf32> -> vector<8x64xf32>
    %180 = arith.addf %178, %179 : vector<8x64xf32>
    %181 = vector.extract_strided_slice %180 {offsets = [0, 0], sizes = [8, 48], strides = [1, 1]} : vector<8x64xf32> to vector<8x48xf32>
    %182 = arith.negf %181 : vector<8x48xf32>
    %183 = math.exp %182 : vector<8x48xf32>
    %cst_72 = arith.constant 1.000000e+00 : f32
    %184 = vector.broadcast %cst_72 : f32 to vector<8x48xf32>
    %185 = arith.addf %184, %183 : vector<8x48xf32>
    %186 = arith.divf %184, %185 : vector<8x48xf32>
    %187 = vector.extract_strided_slice %180 {offsets = [0, 48], sizes = [8, 16], strides = [1, 1]} : vector<8x64xf32> to vector<8x16xf32>
    %188 = math.tanh %187 : vector<8x16xf32>
    %189 = vector.extract_strided_slice %186 {offsets = [0, 0], sizes = [8, 16], strides = [1, 1]} : vector<8x48xf32> to vector<8x16xf32>
    %190 = vector.extract_strided_slice %186 {offsets = [0, 16], sizes = [8, 16], strides = [1, 1]} : vector<8x48xf32> to vector<8x16xf32>
    %191 = vector.extract_strided_slice %186 {offsets = [0, 32], sizes = [8, 16], strides = [1, 1]} : vector<8x48xf32> to vector<8x16xf32>
    %192 = arith.mulf %190, %171 : vector<8x16xf32>
    %193 = arith.mulf %189, %188 : vector<8x16xf32>
    %194 = arith.addf %192, %193 : vector<8x16xf32>
    %195 = math.tanh %194 : vector<8x16xf32>
    %196 = arith.mulf %191, %195 : vector<8x16xf32>
    %c7_73 = arith.constant 7 : index
    %c0_74 = arith.constant 0 : index
    %c0_75 = arith.constant 0 : index
    %197 = vector.load %arg3[%c7_73, %c0_74, %c0_75] : memref<8x8x16xf32, #tpu.memory_space<vmem>>, vector<1x8x16xf32>
    %198 = vector.shape_cast %197 : vector<1x8x16xf32> to vector<8x16xf32>
    %199 = vector.shape_cast %196 : vector<8x16xf32> to vector<1x8x16xf32>
    tpu.vector_store %arg3[%c7_73, %c0_74, %c0_75], %199 {strides = array<i32>} : memref<8x8x16xf32, #tpu.memory_space<vmem>>, vector<1x8x16xf32>,
    %c9 = arith.constant 9 : index
    %c0_76 = arith.constant 0 : index
    %c0_77 = arith.constant 0 : index
    %200 = vector.load %arg0[%c9, %c0_76, %c0_77] : memref<18x8x16xf32, #tpu.memory_space<vmem>>, vector<1x8x16xf32>
    %201 = vector.shape_cast %200 : vector<1x8x16xf32> to vector<8x16xf32>
    %c11 = arith.constant 11 : index
    %c0_78 = arith.constant 0 : index
    %c0_79 = arith.constant 0 : index
    %202 = vector.load %arg0[%c11, %c0_78, %c0_79] : memref<18x8x16xf32, #tpu.memory_space<vmem>>, vector<1x8x16xf32>
    %203 = vector.shape_cast %202 : vector<1x8x16xf32> to vector<8x16xf32>
    %c40 = arith.constant 40 : index
    %c0_80 = arith.constant 0 : index
    %204 = vector.load %arg1[%c40, %c0_80] : memref<200x64xf32, #tpu.memory_space<vmem>>, vector<16x64xf32>
    %c56 = arith.constant 56 : index
    %c0_81 = arith.constant 0 : index
    %205 = vector.load %arg1[%c56, %c0_81] : memref<200x64xf32, #tpu.memory_space<vmem>>, vector<16x64xf32>
    %c72 = arith.constant 72 : index
    %c0_82 = arith.constant 0 : index
    %206 = vector.load %arg1[%c72, %c0_82] : memref<200x64xf32, #tpu.memory_space<vmem>>, vector<1x64xf32>
    %c0_83 = arith.constant 0 : index
    %c0_84 = arith.constant 0 : index
    %c0_85 = arith.constant 0 : index
    %207 = vector.load %arg3[%c0_83, %c0_84, %c0_85] : memref<8x8x16xf32, #tpu.memory_space<vmem>>, vector<8x8x16xf32>
    %208 = vector.shape_cast %207 : vector<8x8x16xf32> to vector<64x16xf32>
    %cst_86 = arith.constant dense<0.000000e+00> : vector<64x64xf32>
    %209 = tpu.matmul %208, %204, %cst_86 {dimension_numbers = #tpu.dot_dimension_numbers<[1], [0], [0], [1], [0, 0, 1, 1], [], []>} : vector<64x16xf32>, vector<16x64xf32>, vector<64x64xf32> -> vector<64x64xf32>
    %210 = vector.broadcast %206 : vector<1x64xf32> to vector<64x64xf32>
    %211 = arith.addf %209, %210 : vector<64x64xf32>
    %212 = vector.shape_cast %211 : vector<64x64xf32> to vector<8x8x64xf32>
    %c0_87 = arith.constant 0 : index
    %c0_88 = arith.constant 0 : index
    %c0_89 = arith.constant 0 : index
    %213 = vector.load %arg4[%c0_87, %c0_88, %c0_89] : memref<8x8x64xf32, #tpu.memory_space<vmem>>, vector<8x8x64xf32>
    tpu.vector_store %arg4[%c0_87, %c0_88, %c0_89], %212 {strides = array<i32>} : memref<8x8x64xf32, #tpu.memory_space<vmem>>, vector<8x8x64xf32>,
    %c0_90 = arith.constant 0 : index
    %c0_91 = arith.constant 0 : index
    %c0_92 = arith.constant 0 : index
    %214 = vector.load %arg4[%c0_90, %c0_91, %c0_92] : memref<8x8x64xf32, #tpu.memory_space<vmem>>, vector<1x8x64xf32>
    %215 = vector.shape_cast %214 : vector<1x8x64xf32> to vector<8x64xf32>
    %cst_93 = arith.constant dense<0.000000e+00> : vector<8x64xf32>
    %216 = tpu.matmul %201, %205, %cst_93 {dimension_numbers = #tpu.dot_dimension_numbers<[1], [0], [0], [1], [0, 0, 1, 1], [], []>} : vector<8x16xf32>, vector<16x64xf32>, vector<8x64xf32> -> vector<8x64xf32>
    %217 = arith.addf %215, %216 : vector<8x64xf32>
    %218 = vector.extract_strided_slice %217 {offsets = [0, 0], sizes = [8, 48], strides = [1, 1]} : vector<8x64xf32> to vector<8x48xf32>
    %219 = arith.negf %218 : vector<8x48xf32>
    %220 = math.exp %219 : vector<8x48xf32>
    %cst_94 = arith.constant 1.000000e+00 : f32
    %221 = vector.broadcast %cst_94 : f32 to vector<8x48xf32>
    %222 = arith.addf %221, %220 : vector<8x48xf32>
    %223 = arith.divf %221, %222 : vector<8x48xf32>
    %224 = vector.extract_strided_slice %217 {offsets = [0, 48], sizes = [8, 16], strides = [1, 1]} : vector<8x64xf32> to vector<8x16xf32>
    %225 = math.tanh %224 : vector<8x16xf32>
    %226 = vector.extract_strided_slice %223 {offsets = [0, 0], sizes = [8, 16], strides = [1, 1]} : vector<8x48xf32> to vector<8x16xf32>
    %227 = vector.extract_strided_slice %223 {offsets = [0, 16], sizes = [8, 16], strides = [1, 1]} : vector<8x48xf32> to vector<8x16xf32>
    %228 = vector.extract_strided_slice %223 {offsets = [0, 32], sizes = [8, 16], strides = [1, 1]} : vector<8x48xf32> to vector<8x16xf32>
    %229 = arith.mulf %227, %203 : vector<8x16xf32>
    %230 = arith.mulf %226, %225 : vector<8x16xf32>
    %231 = arith.addf %229, %230 : vector<8x16xf32>
    %232 = math.tanh %231 : vector<8x16xf32>
    %233 = arith.mulf %228, %232 : vector<8x16xf32>
    %c0_95 = arith.constant 0 : index
    %c0_96 = arith.constant 0 : index
    %c0_97 = arith.constant 0 : index
    %234 = vector.load %arg3[%c0_95, %c0_96, %c0_97] : memref<8x8x16xf32, #tpu.memory_space<vmem>>, vector<1x8x16xf32>
    %235 = vector.shape_cast %234 : vector<1x8x16xf32> to vector<8x16xf32>
    %236 = vector.shape_cast %233 : vector<8x16xf32> to vector<1x8x16xf32>
    tpu.vector_store %arg3[%c0_95, %c0_96, %c0_97], %236 {strides = array<i32>} : memref<8x8x16xf32, #tpu.memory_space<vmem>>, vector<1x8x16xf32>,
    %c1_98 = arith.constant 1 : index
    %c0_99 = arith.constant 0 : index
    %c0_100 = arith.constant 0 : index
    %237 = vector.load %arg4[%c1_98, %c0_99, %c0_100] : memref<8x8x64xf32, #tpu.memory_space<vmem>>, vector<1x8x64xf32>
    %238 = vector.shape_cast %237 : vector<1x8x64xf32> to vector<8x64xf32>
    %cst_101 = arith.constant dense<0.000000e+00> : vector<8x64xf32>
    %239 = tpu.matmul %233, %205, %cst_101 {dimension_numbers = #tpu.dot_dimension_numbers<[1], [0], [0], [1], [0, 0, 1, 1], [], []>} : vector<8x16xf32>, vector<16x64xf32>, vector<8x64xf32> -> vector<8x64xf32>
    %240 = arith.addf %238, %239 : vector<8x64xf32>
    %241 = vector.extract_strided_slice %240 {offsets = [0, 0], sizes = [8, 48], strides = [1, 1]} : vector<8x64xf32> to vector<8x48xf32>
    %242 = arith.negf %241 : vector<8x48xf32>
    %243 = math.exp %242 : vector<8x48xf32>
    %cst_102 = arith.constant 1.000000e+00 : f32
    %244 = vector.broadcast %cst_102 : f32 to vector<8x48xf32>
    %245 = arith.addf %244, %243 : vector<8x48xf32>
    %246 = arith.divf %244, %245 : vector<8x48xf32>
    %247 = vector.extract_strided_slice %240 {offsets = [0, 48], sizes = [8, 16], strides = [1, 1]} : vector<8x64xf32> to vector<8x16xf32>
    %248 = math.tanh %247 : vector<8x16xf32>
    %249 = vector.extract_strided_slice %246 {offsets = [0, 0], sizes = [8, 16], strides = [1, 1]} : vector<8x48xf32> to vector<8x16xf32>
    %250 = vector.extract_strided_slice %246 {offsets = [0, 16], sizes = [8, 16], strides = [1, 1]} : vector<8x48xf32> to vector<8x16xf32>
    %251 = vector.extract_strided_slice %246 {offsets = [0, 32], sizes = [8, 16], strides = [1, 1]} : vector<8x48xf32> to vector<8x16xf32>
    %252 = arith.mulf %250, %231 : vector<8x16xf32>
    %253 = arith.mulf %249, %248 : vector<8x16xf32>
    %254 = arith.addf %252, %253 : vector<8x16xf32>
    %255 = math.tanh %254 : vector<8x16xf32>
    %256 = arith.mulf %251, %255 : vector<8x16xf32>
    %c1_103 = arith.constant 1 : index
    %c0_104 = arith.constant 0 : index
    %c0_105 = arith.constant 0 : index
    %257 = vector.load %arg3[%c1_103, %c0_104, %c0_105] : memref<8x8x16xf32, #tpu.memory_space<vmem>>, vector<1x8x16xf32>
    %258 = vector.shape_cast %257 : vector<1x8x16xf32> to vector<8x16xf32>
    %259 = vector.shape_cast %256 : vector<8x16xf32> to vector<1x8x16xf32>
    tpu.vector_store %arg3[%c1_103, %c0_104, %c0_105], %259 {strides = array<i32>} : memref<8x8x16xf32, #tpu.memory_space<vmem>>, vector<1x8x16xf32>,
    %c2_106 = arith.constant 2 : index
    %c0_107 = arith.constant 0 : index
    %c0_108 = arith.constant 0 : index
    %260 = vector.load %arg4[%c2_106, %c0_107, %c0_108] : memref<8x8x64xf32, #tpu.memory_space<vmem>>, vector<1x8x64xf32>
    %261 = vector.shape_cast %260 : vector<1x8x64xf32> to vector<8x64xf32>
    %cst_109 = arith.constant dense<0.000000e+00> : vector<8x64xf32>
    %262 = tpu.matmul %256, %205, %cst_109 {dimension_numbers = #tpu.dot_dimension_numbers<[1], [0], [0], [1], [0, 0, 1, 1], [], []>} : vector<8x16xf32>, vector<16x64xf32>, vector<8x64xf32> -> vector<8x64xf32>
    %263 = arith.addf %261, %262 : vector<8x64xf32>
    %264 = vector.extract_strided_slice %263 {offsets = [0, 0], sizes = [8, 48], strides = [1, 1]} : vector<8x64xf32> to vector<8x48xf32>
    %265 = arith.negf %264 : vector<8x48xf32>
    %266 = math.exp %265 : vector<8x48xf32>
    %cst_110 = arith.constant 1.000000e+00 : f32
    %267 = vector.broadcast %cst_110 : f32 to vector<8x48xf32>
    %268 = arith.addf %267, %266 : vector<8x48xf32>
    %269 = arith.divf %267, %268 : vector<8x48xf32>
    %270 = vector.extract_strided_slice %263 {offsets = [0, 48], sizes = [8, 16], strides = [1, 1]} : vector<8x64xf32> to vector<8x16xf32>
    %271 = math.tanh %270 : vector<8x16xf32>
    %272 = vector.extract_strided_slice %269 {offsets = [0, 0], sizes = [8, 16], strides = [1, 1]} : vector<8x48xf32> to vector<8x16xf32>
    %273 = vector.extract_strided_slice %269 {offsets = [0, 16], sizes = [8, 16], strides = [1, 1]} : vector<8x48xf32> to vector<8x16xf32>
    %274 = vector.extract_strided_slice %269 {offsets = [0, 32], sizes = [8, 16], strides = [1, 1]} : vector<8x48xf32> to vector<8x16xf32>
    %275 = arith.mulf %273, %254 : vector<8x16xf32>
    %276 = arith.mulf %272, %271 : vector<8x16xf32>
    %277 = arith.addf %275, %276 : vector<8x16xf32>
    %278 = math.tanh %277 : vector<8x16xf32>
    %279 = arith.mulf %274, %278 : vector<8x16xf32>
    %c2_111 = arith.constant 2 : index
    %c0_112 = arith.constant 0 : index
    %c0_113 = arith.constant 0 : index
    %280 = vector.load %arg3[%c2_111, %c0_112, %c0_113] : memref<8x8x16xf32, #tpu.memory_space<vmem>>, vector<1x8x16xf32>
    %281 = vector.shape_cast %280 : vector<1x8x16xf32> to vector<8x16xf32>
    %282 = vector.shape_cast %279 : vector<8x16xf32> to vector<1x8x16xf32>
    tpu.vector_store %arg3[%c2_111, %c0_112, %c0_113], %282 {strides = array<i32>} : memref<8x8x16xf32, #tpu.memory_space<vmem>>, vector<1x8x16xf32>,
    %c3_114 = arith.constant 3 : index
    %c0_115 = arith.constant 0 : index
    %c0_116 = arith.constant 0 : index
    %283 = vector.load %arg4[%c3_114, %c0_115, %c0_116] : memref<8x8x64xf32, #tpu.memory_space<vmem>>, vector<1x8x64xf32>
    %284 = vector.shape_cast %283 : vector<1x8x64xf32> to vector<8x64xf32>
    %cst_117 = arith.constant dense<0.000000e+00> : vector<8x64xf32>
    %285 = tpu.matmul %279, %205, %cst_117 {dimension_numbers = #tpu.dot_dimension_numbers<[1], [0], [0], [1], [0, 0, 1, 1], [], []>} : vector<8x16xf32>, vector<16x64xf32>, vector<8x64xf32> -> vector<8x64xf32>
    %286 = arith.addf %284, %285 : vector<8x64xf32>
    %287 = vector.extract_strided_slice %286 {offsets = [0, 0], sizes = [8, 48], strides = [1, 1]} : vector<8x64xf32> to vector<8x48xf32>
    %288 = arith.negf %287 : vector<8x48xf32>
    %289 = math.exp %288 : vector<8x48xf32>
    %cst_118 = arith.constant 1.000000e+00 : f32
    %290 = vector.broadcast %cst_118 : f32 to vector<8x48xf32>
    %291 = arith.addf %290, %289 : vector<8x48xf32>
    %292 = arith.divf %290, %291 : vector<8x48xf32>
    %293 = vector.extract_strided_slice %286 {offsets = [0, 48], sizes = [8, 16], strides = [1, 1]} : vector<8x64xf32> to vector<8x16xf32>
    %294 = math.tanh %293 : vector<8x16xf32>
    %295 = vector.extract_strided_slice %292 {offsets = [0, 0], sizes = [8, 16], strides = [1, 1]} : vector<8x48xf32> to vector<8x16xf32>
    %296 = vector.extract_strided_slice %292 {offsets = [0, 16], sizes = [8, 16], strides = [1, 1]} : vector<8x48xf32> to vector<8x16xf32>
    %297 = vector.extract_strided_slice %292 {offsets = [0, 32], sizes = [8, 16], strides = [1, 1]} : vector<8x48xf32> to vector<8x16xf32>
    %298 = arith.mulf %296, %277 : vector<8x16xf32>
    %299 = arith.mulf %295, %294 : vector<8x16xf32>
    %300 = arith.addf %298, %299 : vector<8x16xf32>
    %301 = math.tanh %300 : vector<8x16xf32>
    %302 = arith.mulf %297, %301 : vector<8x16xf32>
    %c3_119 = arith.constant 3 : index
    %c0_120 = arith.constant 0 : index
    %c0_121 = arith.constant 0 : index
    %303 = vector.load %arg3[%c3_119, %c0_120, %c0_121] : memref<8x8x16xf32, #tpu.memory_space<vmem>>, vector<1x8x16xf32>
    %304 = vector.shape_cast %303 : vector<1x8x16xf32> to vector<8x16xf32>
    %305 = vector.shape_cast %302 : vector<8x16xf32> to vector<1x8x16xf32>
    tpu.vector_store %arg3[%c3_119, %c0_120, %c0_121], %305 {strides = array<i32>} : memref<8x8x16xf32, #tpu.memory_space<vmem>>, vector<1x8x16xf32>,
    %c4_122 = arith.constant 4 : index
    %c0_123 = arith.constant 0 : index
    %c0_124 = arith.constant 0 : index
    %306 = vector.load %arg4[%c4_122, %c0_123, %c0_124] : memref<8x8x64xf32, #tpu.memory_space<vmem>>, vector<1x8x64xf32>
    %307 = vector.shape_cast %306 : vector<1x8x64xf32> to vector<8x64xf32>
    %cst_125 = arith.constant dense<0.000000e+00> : vector<8x64xf32>
    %308 = tpu.matmul %302, %205, %cst_125 {dimension_numbers = #tpu.dot_dimension_numbers<[1], [0], [0], [1], [0, 0, 1, 1], [], []>} : vector<8x16xf32>, vector<16x64xf32>, vector<8x64xf32> -> vector<8x64xf32>
    %309 = arith.addf %307, %308 : vector<8x64xf32>
    %310 = vector.extract_strided_slice %309 {offsets = [0, 0], sizes = [8, 48], strides = [1, 1]} : vector<8x64xf32> to vector<8x48xf32>
    %311 = arith.negf %310 : vector<8x48xf32>
    %312 = math.exp %311 : vector<8x48xf32>
    %cst_126 = arith.constant 1.000000e+00 : f32
    %313 = vector.broadcast %cst_126 : f32 to vector<8x48xf32>
    %314 = arith.addf %313, %312 : vector<8x48xf32>
    %315 = arith.divf %313, %314 : vector<8x48xf32>
    %316 = vector.extract_strided_slice %309 {offsets = [0, 48], sizes = [8, 16], strides = [1, 1]} : vector<8x64xf32> to vector<8x16xf32>
    %317 = math.tanh %316 : vector<8x16xf32>
    %318 = vector.extract_strided_slice %315 {offsets = [0, 0], sizes = [8, 16], strides = [1, 1]} : vector<8x48xf32> to vector<8x16xf32>
    %319 = vector.extract_strided_slice %315 {offsets = [0, 16], sizes = [8, 16], strides = [1, 1]} : vector<8x48xf32> to vector<8x16xf32>
    %320 = vector.extract_strided_slice %315 {offsets = [0, 32], sizes = [8, 16], strides = [1, 1]} : vector<8x48xf32> to vector<8x16xf32>
    %321 = arith.mulf %319, %300 : vector<8x16xf32>
    %322 = arith.mulf %318, %317 : vector<8x16xf32>
    %323 = arith.addf %321, %322 : vector<8x16xf32>
    %324 = math.tanh %323 : vector<8x16xf32>
    %325 = arith.mulf %320, %324 : vector<8x16xf32>
    %c4_127 = arith.constant 4 : index
    %c0_128 = arith.constant 0 : index
    %c0_129 = arith.constant 0 : index
    %326 = vector.load %arg3[%c4_127, %c0_128, %c0_129] : memref<8x8x16xf32, #tpu.memory_space<vmem>>, vector<1x8x16xf32>
    %327 = vector.shape_cast %326 : vector<1x8x16xf32> to vector<8x16xf32>
    %328 = vector.shape_cast %325 : vector<8x16xf32> to vector<1x8x16xf32>
    tpu.vector_store %arg3[%c4_127, %c0_128, %c0_129], %328 {strides = array<i32>} : memref<8x8x16xf32, #tpu.memory_space<vmem>>, vector<1x8x16xf32>,
    %c5_130 = arith.constant 5 : index
    %c0_131 = arith.constant 0 : index
    %c0_132 = arith.constant 0 : index
    %329 = vector.load %arg4[%c5_130, %c0_131, %c0_132] : memref<8x8x64xf32, #tpu.memory_space<vmem>>, vector<1x8x64xf32>
    %330 = vector.shape_cast %329 : vector<1x8x64xf32> to vector<8x64xf32>
    %cst_133 = arith.constant dense<0.000000e+00> : vector<8x64xf32>
    %331 = tpu.matmul %325, %205, %cst_133 {dimension_numbers = #tpu.dot_dimension_numbers<[1], [0], [0], [1], [0, 0, 1, 1], [], []>} : vector<8x16xf32>, vector<16x64xf32>, vector<8x64xf32> -> vector<8x64xf32>
    %332 = arith.addf %330, %331 : vector<8x64xf32>
    %333 = vector.extract_strided_slice %332 {offsets = [0, 0], sizes = [8, 48], strides = [1, 1]} : vector<8x64xf32> to vector<8x48xf32>
    %334 = arith.negf %333 : vector<8x48xf32>
    %335 = math.exp %334 : vector<8x48xf32>
    %cst_134 = arith.constant 1.000000e+00 : f32
    %336 = vector.broadcast %cst_134 : f32 to vector<8x48xf32>
    %337 = arith.addf %336, %335 : vector<8x48xf32>
    %338 = arith.divf %336, %337 : vector<8x48xf32>
    %339 = vector.extract_strided_slice %332 {offsets = [0, 48], sizes = [8, 16], strides = [1, 1]} : vector<8x64xf32> to vector<8x16xf32>
    %340 = math.tanh %339 : vector<8x16xf32>
    %341 = vector.extract_strided_slice %338 {offsets = [0, 0], sizes = [8, 16], strides = [1, 1]} : vector<8x48xf32> to vector<8x16xf32>
    %342 = vector.extract_strided_slice %338 {offsets = [0, 16], sizes = [8, 16], strides = [1, 1]} : vector<8x48xf32> to vector<8x16xf32>
    %343 = vector.extract_strided_slice %338 {offsets = [0, 32], sizes = [8, 16], strides = [1, 1]} : vector<8x48xf32> to vector<8x16xf32>
    %344 = arith.mulf %342, %323 : vector<8x16xf32>
    %345 = arith.mulf %341, %340 : vector<8x16xf32>
    %346 = arith.addf %344, %345 : vector<8x16xf32>
    %347 = math.tanh %346 : vector<8x16xf32>
    %348 = arith.mulf %343, %347 : vector<8x16xf32>
    %c5_135 = arith.constant 5 : index
    %c0_136 = arith.constant 0 : index
    %c0_137 = arith.constant 0 : index
    %349 = vector.load %arg3[%c5_135, %c0_136, %c0_137] : memref<8x8x16xf32, #tpu.memory_space<vmem>>, vector<1x8x16xf32>
    %350 = vector.shape_cast %349 : vector<1x8x16xf32> to vector<8x16xf32>
    %351 = vector.shape_cast %348 : vector<8x16xf32> to vector<1x8x16xf32>
    tpu.vector_store %arg3[%c5_135, %c0_136, %c0_137], %351 {strides = array<i32>} : memref<8x8x16xf32, #tpu.memory_space<vmem>>, vector<1x8x16xf32>,
    %c6_138 = arith.constant 6 : index
    %c0_139 = arith.constant 0 : index
    %c0_140 = arith.constant 0 : index
    %352 = vector.load %arg4[%c6_138, %c0_139, %c0_140] : memref<8x8x64xf32, #tpu.memory_space<vmem>>, vector<1x8x64xf32>
    %353 = vector.shape_cast %352 : vector<1x8x64xf32> to vector<8x64xf32>
    %cst_141 = arith.constant dense<0.000000e+00> : vector<8x64xf32>
    %354 = tpu.matmul %348, %205, %cst_141 {dimension_numbers = #tpu.dot_dimension_numbers<[1], [0], [0], [1], [0, 0, 1, 1], [], []>} : vector<8x16xf32>, vector<16x64xf32>, vector<8x64xf32> -> vector<8x64xf32>
    %355 = arith.addf %353, %354 : vector<8x64xf32>
    %356 = vector.extract_strided_slice %355 {offsets = [0, 0], sizes = [8, 48], strides = [1, 1]} : vector<8x64xf32> to vector<8x48xf32>
    %357 = arith.negf %356 : vector<8x48xf32>
    %358 = math.exp %357 : vector<8x48xf32>
    %cst_142 = arith.constant 1.000000e+00 : f32
    %359 = vector.broadcast %cst_142 : f32 to vector<8x48xf32>
    %360 = arith.addf %359, %358 : vector<8x48xf32>
    %361 = arith.divf %359, %360 : vector<8x48xf32>
    %362 = vector.extract_strided_slice %355 {offsets = [0, 48], sizes = [8, 16], strides = [1, 1]} : vector<8x64xf32> to vector<8x16xf32>
    %363 = math.tanh %362 : vector<8x16xf32>
    %364 = vector.extract_strided_slice %361 {offsets = [0, 0], sizes = [8, 16], strides = [1, 1]} : vector<8x48xf32> to vector<8x16xf32>
    %365 = vector.extract_strided_slice %361 {offsets = [0, 16], sizes = [8, 16], strides = [1, 1]} : vector<8x48xf32> to vector<8x16xf32>
    %366 = vector.extract_strided_slice %361 {offsets = [0, 32], sizes = [8, 16], strides = [1, 1]} : vector<8x48xf32> to vector<8x16xf32>
    %367 = arith.mulf %365, %346 : vector<8x16xf32>
    %368 = arith.mulf %364, %363 : vector<8x16xf32>
    %369 = arith.addf %367, %368 : vector<8x16xf32>
    %370 = math.tanh %369 : vector<8x16xf32>
    %371 = arith.mulf %366, %370 : vector<8x16xf32>
    %c6_143 = arith.constant 6 : index
    %c0_144 = arith.constant 0 : index
    %c0_145 = arith.constant 0 : index
    %372 = vector.load %arg3[%c6_143, %c0_144, %c0_145] : memref<8x8x16xf32, #tpu.memory_space<vmem>>, vector<1x8x16xf32>
    %373 = vector.shape_cast %372 : vector<1x8x16xf32> to vector<8x16xf32>
    %374 = vector.shape_cast %371 : vector<8x16xf32> to vector<1x8x16xf32>
    tpu.vector_store %arg3[%c6_143, %c0_144, %c0_145], %374 {strides = array<i32>} : memref<8x8x16xf32, #tpu.memory_space<vmem>>, vector<1x8x16xf32>,
    %c7_146 = arith.constant 7 : index
    %c0_147 = arith.constant 0 : index
    %c0_148 = arith.constant 0 : index
    %375 = vector.load %arg4[%c7_146, %c0_147, %c0_148] : memref<8x8x64xf32, #tpu.memory_space<vmem>>, vector<1x8x64xf32>
    %376 = vector.shape_cast %375 : vector<1x8x64xf32> to vector<8x64xf32>
    %cst_149 = arith.constant dense<0.000000e+00> : vector<8x64xf32>
    %377 = tpu.matmul %371, %205, %cst_149 {dimension_numbers = #tpu.dot_dimension_numbers<[1], [0], [0], [1], [0, 0, 1, 1], [], []>} : vector<8x16xf32>, vector<16x64xf32>, vector<8x64xf32> -> vector<8x64xf32>
    %378 = arith.addf %376, %377 : vector<8x64xf32>
    %379 = vector.extract_strided_slice %378 {offsets = [0, 0], sizes = [8, 48], strides = [1, 1]} : vector<8x64xf32> to vector<8x48xf32>
    %380 = arith.negf %379 : vector<8x48xf32>
    %381 = math.exp %380 : vector<8x48xf32>
    %cst_150 = arith.constant 1.000000e+00 : f32
    %382 = vector.broadcast %cst_150 : f32 to vector<8x48xf32>
    %383 = arith.addf %382, %381 : vector<8x48xf32>
    %384 = arith.divf %382, %383 : vector<8x48xf32>
    %385 = vector.extract_strided_slice %378 {offsets = [0, 48], sizes = [8, 16], strides = [1, 1]} : vector<8x64xf32> to vector<8x16xf32>
    %386 = math.tanh %385 : vector<8x16xf32>
    %387 = vector.extract_strided_slice %384 {offsets = [0, 0], sizes = [8, 16], strides = [1, 1]} : vector<8x48xf32> to vector<8x16xf32>
    %388 = vector.extract_strided_slice %384 {offsets = [0, 16], sizes = [8, 16], strides = [1, 1]} : vector<8x48xf32> to vector<8x16xf32>
    %389 = vector.extract_strided_slice %384 {offsets = [0, 32], sizes = [8, 16], strides = [1, 1]} : vector<8x48xf32> to vector<8x16xf32>
    %390 = arith.mulf %388, %369 : vector<8x16xf32>
    %391 = arith.mulf %387, %386 : vector<8x16xf32>
    %392 = arith.addf %390, %391 : vector<8x16xf32>
    %393 = math.tanh %392 : vector<8x16xf32>
    %394 = arith.mulf %389, %393 : vector<8x16xf32>
    %c7_151 = arith.constant 7 : index
    %c0_152 = arith.constant 0 : index
    %c0_153 = arith.constant 0 : index
    %395 = vector.load %arg3[%c7_151, %c0_152, %c0_153] : memref<8x8x16xf32, #tpu.memory_space<vmem>>, vector<1x8x16xf32>
    %396 = vector.shape_cast %395 : vector<1x8x16xf32> to vector<8x16xf32>
    %397 = vector.shape_cast %394 : vector<8x16xf32> to vector<1x8x16xf32>
    tpu.vector_store %arg3[%c7_151, %c0_152, %c0_153], %397 {strides = array<i32>} : memref<8x8x16xf32, #tpu.memory_space<vmem>>, vector<1x8x16xf32>,
    %c8_154 = arith.constant 8 : index
    %c0_155 = arith.constant 0 : index
    %c0_156 = arith.constant 0 : index
    %398 = vector.load %arg0[%c8_154, %c0_155, %c0_156] : memref<18x8x16xf32, #tpu.memory_space<vmem>>, vector<1x8x16xf32>
    %399 = vector.shape_cast %398 : vector<1x8x16xf32> to vector<8x16xf32>
    %c0_157 = arith.constant 0 : index
    %c0_158 = arith.constant 0 : index
    %c0_159 = arith.constant 0 : index
    %400 = vector.load %arg3[%c0_157, %c0_158, %c0_159] : memref<8x8x16xf32, #tpu.memory_space<vmem>>, vector<1x8x16xf32>
    %401 = vector.shape_cast %400 : vector<1x8x16xf32> to vector<8x16xf32>
    %402 = vector.shape_cast %399 : vector<8x16xf32> to vector<1x8x16xf32>
    tpu.vector_store %arg3[%c0_157, %c0_158, %c0_159], %402 {strides = array<i32>} : memref<8x8x16xf32, #tpu.memory_space<vmem>>, vector<1x8x16xf32>,
    %c2_160 = arith.constant 2 : index
    %c0_161 = arith.constant 0 : index
    %c0_162 = arith.constant 0 : index
    %403 = vector.load %arg3[%c2_160, %c0_161, %c0_162] : memref<8x8x16xf32, #tpu.memory_space<vmem>>, vector<1x8x16xf32>
    %404 = vector.shape_cast %403 : vector<1x8x16xf32> to vector<8x16xf32>
    %405 = vector.shape_cast %196 : vector<8x16xf32> to vector<1x8x16xf32>
    tpu.vector_store %arg3[%c2_160, %c0_161, %c0_162], %405 {strides = array<i32>} : memref<8x8x16xf32, #tpu.memory_space<vmem>>, vector<1x8x16xf32>,
    %c9_163 = arith.constant 9 : index
    %c0_164 = arith.constant 0 : index
    %c0_165 = arith.constant 0 : index
    %406 = vector.load %arg0[%c9_163, %c0_164, %c0_165] : memref<18x8x16xf32, #tpu.memory_space<vmem>>, vector<1x8x16xf32>
    %407 = vector.shape_cast %406 : vector<1x8x16xf32> to vector<8x16xf32>
    %c1_166 = arith.constant 1 : index
    %c0_167 = arith.constant 0 : index
    %c0_168 = arith.constant 0 : index
    %408 = vector.load %arg3[%c1_166, %c0_167, %c0_168] : memref<8x8x16xf32, #tpu.memory_space<vmem>>, vector<1x8x16xf32>
    %409 = vector.shape_cast %408 : vector<1x8x16xf32> to vector<8x16xf32>
    %410 = vector.shape_cast %407 : vector<8x16xf32> to vector<1x8x16xf32>
    tpu.vector_store %arg3[%c1_166, %c0_167, %c0_168], %410 {strides = array<i32>} : memref<8x8x16xf32, #tpu.memory_space<vmem>>, vector<1x8x16xf32>,
    %c3_169 = arith.constant 3 : index
    %c0_170 = arith.constant 0 : index
    %c0_171 = arith.constant 0 : index
    %411 = vector.load %arg3[%c3_169, %c0_170, %c0_171] : memref<8x8x16xf32, #tpu.memory_space<vmem>>, vector<1x8x16xf32>
    %412 = vector.shape_cast %411 : vector<1x8x16xf32> to vector<8x16xf32>
    %413 = vector.shape_cast %394 : vector<8x16xf32> to vector<1x8x16xf32>
    tpu.vector_store %arg3[%c3_169, %c0_170, %c0_171], %413 {strides = array<i32>} : memref<8x8x16xf32, #tpu.memory_space<vmem>>, vector<1x8x16xf32>,
    %c12 = arith.constant 12 : index
    %c0_172 = arith.constant 0 : index
    %c0_173 = arith.constant 0 : index
    %414 = vector.load %arg0[%c12, %c0_172, %c0_173] : memref<18x8x16xf32, #tpu.memory_space<vmem>>, vector<1x8x16xf32>
    %415 = vector.shape_cast %414 : vector<1x8x16xf32> to vector<8x16xf32>
    %c14 = arith.constant 14 : index
    %c0_174 = arith.constant 0 : index
    %c0_175 = arith.constant 0 : index
    %416 = vector.load %arg0[%c14, %c0_174, %c0_175] : memref<18x8x16xf32, #tpu.memory_space<vmem>>, vector<1x8x16xf32>
    %417 = vector.shape_cast %416 : vector<1x8x16xf32> to vector<8x16xf32>
    %c80 = arith.constant 80 : index
    %c0_176 = arith.constant 0 : index
    %418 = vector.load %arg1[%c80, %c0_176] : memref<200x64xf32, #tpu.memory_space<vmem>>, vector<16x64xf32>
    %c96 = arith.constant 96 : index
    %c0_177 = arith.constant 0 : index
    %419 = vector.load %arg1[%c96, %c0_177] : memref<200x64xf32, #tpu.memory_space<vmem>>, vector<16x64xf32>
    %c112 = arith.constant 112 : index
    %c0_178 = arith.constant 0 : index
    %420 = vector.load %arg1[%c112, %c0_178] : memref<200x64xf32, #tpu.memory_space<vmem>>, vector<1x64xf32>
    %c0_179 = arith.constant 0 : index
    %c0_180 = arith.constant 0 : index
    %c0_181 = arith.constant 0 : index
    %421 = vector.load %arg3[%c0_179, %c0_180, %c0_181] : memref<8x8x16xf32, #tpu.memory_space<vmem>>, vector<4x8x16xf32>
    %422 = vector.shape_cast %421 : vector<4x8x16xf32> to vector<32x16xf32>
    %cst_182 = arith.constant dense<0.000000e+00> : vector<32x64xf32>
    %423 = tpu.matmul %422, %418, %cst_182 {dimension_numbers = #tpu.dot_dimension_numbers<[1], [0], [0], [1], [0, 0, 1, 1], [], []>} : vector<32x16xf32>, vector<16x64xf32>, vector<32x64xf32> -> vector<32x64xf32>
    %424 = vector.broadcast %420 : vector<1x64xf32> to vector<32x64xf32>
    %425 = arith.addf %423, %424 : vector<32x64xf32>
    %426 = vector.shape_cast %425 : vector<32x64xf32> to vector<4x8x64xf32>
    %c0_183 = arith.constant 0 : index
    %c0_184 = arith.constant 0 : index
    %c0_185 = arith.constant 0 : index
    %427 = vector.load %arg4[%c0_183, %c0_184, %c0_185] : memref<8x8x64xf32, #tpu.memory_space<vmem>>, vector<4x8x64xf32>
    tpu.vector_store %arg4[%c0_183, %c0_184, %c0_185], %426 {strides = array<i32>} : memref<8x8x64xf32, #tpu.memory_space<vmem>>, vector<4x8x64xf32>,
    %c0_186 = arith.constant 0 : index
    %c0_187 = arith.constant 0 : index
    %c0_188 = arith.constant 0 : index
    %428 = vector.load %arg4[%c0_186, %c0_187, %c0_188] : memref<8x8x64xf32, #tpu.memory_space<vmem>>, vector<1x8x64xf32>
    %429 = vector.shape_cast %428 : vector<1x8x64xf32> to vector<8x64xf32>
    %cst_189 = arith.constant dense<0.000000e+00> : vector<8x64xf32>
    %430 = tpu.matmul %415, %419, %cst_189 {dimension_numbers = #tpu.dot_dimension_numbers<[1], [0], [0], [1], [0, 0, 1, 1], [], []>} : vector<8x16xf32>, vector<16x64xf32>, vector<8x64xf32> -> vector<8x64xf32>
    %431 = arith.addf %429, %430 : vector<8x64xf32>
    %432 = vector.extract_strided_slice %431 {offsets = [0, 0], sizes = [8, 48], strides = [1, 1]} : vector<8x64xf32> to vector<8x48xf32>
    %433 = arith.negf %432 : vector<8x48xf32>
    %434 = math.exp %433 : vector<8x48xf32>
    %cst_190 = arith.constant 1.000000e+00 : f32
    %435 = vector.broadcast %cst_190 : f32 to vector<8x48xf32>
    %436 = arith.addf %435, %434 : vector<8x48xf32>
    %437 = arith.divf %435, %436 : vector<8x48xf32>
    %438 = vector.extract_strided_slice %431 {offsets = [0, 48], sizes = [8, 16], strides = [1, 1]} : vector<8x64xf32> to vector<8x16xf32>
    %439 = math.tanh %438 : vector<8x16xf32>
    %440 = vector.extract_strided_slice %437 {offsets = [0, 0], sizes = [8, 16], strides = [1, 1]} : vector<8x48xf32> to vector<8x16xf32>
    %441 = vector.extract_strided_slice %437 {offsets = [0, 16], sizes = [8, 16], strides = [1, 1]} : vector<8x48xf32> to vector<8x16xf32>
    %442 = vector.extract_strided_slice %437 {offsets = [0, 32], sizes = [8, 16], strides = [1, 1]} : vector<8x48xf32> to vector<8x16xf32>
    %443 = arith.mulf %441, %417 : vector<8x16xf32>
    %444 = arith.mulf %440, %439 : vector<8x16xf32>
    %445 = arith.addf %443, %444 : vector<8x16xf32>
    %446 = math.tanh %445 : vector<8x16xf32>
    %447 = arith.mulf %442, %446 : vector<8x16xf32>
    %c0_191 = arith.constant 0 : index
    %c0_192 = arith.constant 0 : index
    %c0_193 = arith.constant 0 : index
    %448 = vector.load %arg3[%c0_191, %c0_192, %c0_193] : memref<8x8x16xf32, #tpu.memory_space<vmem>>, vector<1x8x16xf32>
    %449 = vector.shape_cast %448 : vector<1x8x16xf32> to vector<8x16xf32>
    %450 = vector.shape_cast %447 : vector<8x16xf32> to vector<1x8x16xf32>
    tpu.vector_store %arg3[%c0_191, %c0_192, %c0_193], %450 {strides = array<i32>} : memref<8x8x16xf32, #tpu.memory_space<vmem>>, vector<1x8x16xf32>,
    %c1_194 = arith.constant 1 : index
    %c0_195 = arith.constant 0 : index
    %c0_196 = arith.constant 0 : index
    %451 = vector.load %arg4[%c1_194, %c0_195, %c0_196] : memref<8x8x64xf32, #tpu.memory_space<vmem>>, vector<1x8x64xf32>
    %452 = vector.shape_cast %451 : vector<1x8x64xf32> to vector<8x64xf32>
    %cst_197 = arith.constant dense<0.000000e+00> : vector<8x64xf32>
    %453 = tpu.matmul %447, %419, %cst_197 {dimension_numbers = #tpu.dot_dimension_numbers<[1], [0], [0], [1], [0, 0, 1, 1], [], []>} : vector<8x16xf32>, vector<16x64xf32>, vector<8x64xf32> -> vector<8x64xf32>
    %454 = arith.addf %452, %453 : vector<8x64xf32>
    %455 = vector.extract_strided_slice %454 {offsets = [0, 0], sizes = [8, 48], strides = [1, 1]} : vector<8x64xf32> to vector<8x48xf32>
    %456 = arith.negf %455 : vector<8x48xf32>
    %457 = math.exp %456 : vector<8x48xf32>
    %cst_198 = arith.constant 1.000000e+00 : f32
    %458 = vector.broadcast %cst_198 : f32 to vector<8x48xf32>
    %459 = arith.addf %458, %457 : vector<8x48xf32>
    %460 = arith.divf %458, %459 : vector<8x48xf32>
    %461 = vector.extract_strided_slice %454 {offsets = [0, 48], sizes = [8, 16], strides = [1, 1]} : vector<8x64xf32> to vector<8x16xf32>
    %462 = math.tanh %461 : vector<8x16xf32>
    %463 = vector.extract_strided_slice %460 {offsets = [0, 0], sizes = [8, 16], strides = [1, 1]} : vector<8x48xf32> to vector<8x16xf32>
    %464 = vector.extract_strided_slice %460 {offsets = [0, 16], sizes = [8, 16], strides = [1, 1]} : vector<8x48xf32> to vector<8x16xf32>
    %465 = vector.extract_strided_slice %460 {offsets = [0, 32], sizes = [8, 16], strides = [1, 1]} : vector<8x48xf32> to vector<8x16xf32>
    %466 = arith.mulf %464, %445 : vector<8x16xf32>
    %467 = arith.mulf %463, %462 : vector<8x16xf32>
    %468 = arith.addf %466, %467 : vector<8x16xf32>
    %469 = math.tanh %468 : vector<8x16xf32>
    %470 = arith.mulf %465, %469 : vector<8x16xf32>
    %c1_199 = arith.constant 1 : index
    %c0_200 = arith.constant 0 : index
    %c0_201 = arith.constant 0 : index
    %471 = vector.load %arg3[%c1_199, %c0_200, %c0_201] : memref<8x8x16xf32, #tpu.memory_space<vmem>>, vector<1x8x16xf32>
    %472 = vector.shape_cast %471 : vector<1x8x16xf32> to vector<8x16xf32>
    %473 = vector.shape_cast %470 : vector<8x16xf32> to vector<1x8x16xf32>
    tpu.vector_store %arg3[%c1_199, %c0_200, %c0_201], %473 {strides = array<i32>} : memref<8x8x16xf32, #tpu.memory_space<vmem>>, vector<1x8x16xf32>,
    %c2_202 = arith.constant 2 : index
    %c0_203 = arith.constant 0 : index
    %c0_204 = arith.constant 0 : index
    %474 = vector.load %arg4[%c2_202, %c0_203, %c0_204] : memref<8x8x64xf32, #tpu.memory_space<vmem>>, vector<1x8x64xf32>
    %475 = vector.shape_cast %474 : vector<1x8x64xf32> to vector<8x64xf32>
    %cst_205 = arith.constant dense<0.000000e+00> : vector<8x64xf32>
    %476 = tpu.matmul %470, %419, %cst_205 {dimension_numbers = #tpu.dot_dimension_numbers<[1], [0], [0], [1], [0, 0, 1, 1], [], []>} : vector<8x16xf32>, vector<16x64xf32>, vector<8x64xf32> -> vector<8x64xf32>
    %477 = arith.addf %475, %476 : vector<8x64xf32>
    %478 = vector.extract_strided_slice %477 {offsets = [0, 0], sizes = [8, 48], strides = [1, 1]} : vector<8x64xf32> to vector<8x48xf32>
    %479 = arith.negf %478 : vector<8x48xf32>
    %480 = math.exp %479 : vector<8x48xf32>
    %cst_206 = arith.constant 1.000000e+00 : f32
    %481 = vector.broadcast %cst_206 : f32 to vector<8x48xf32>
    %482 = arith.addf %481, %480 : vector<8x48xf32>
    %483 = arith.divf %481, %482 : vector<8x48xf32>
    %484 = vector.extract_strided_slice %477 {offsets = [0, 48], sizes = [8, 16], strides = [1, 1]} : vector<8x64xf32> to vector<8x16xf32>
    %485 = math.tanh %484 : vector<8x16xf32>
    %486 = vector.extract_strided_slice %483 {offsets = [0, 0], sizes = [8, 16], strides = [1, 1]} : vector<8x48xf32> to vector<8x16xf32>
    %487 = vector.extract_strided_slice %483 {offsets = [0, 16], sizes = [8, 16], strides = [1, 1]} : vector<8x48xf32> to vector<8x16xf32>
    %488 = vector.extract_strided_slice %483 {offsets = [0, 32], sizes = [8, 16], strides = [1, 1]} : vector<8x48xf32> to vector<8x16xf32>
    %489 = arith.mulf %487, %468 : vector<8x16xf32>
    %490 = arith.mulf %486, %485 : vector<8x16xf32>
    %491 = arith.addf %489, %490 : vector<8x16xf32>
    %492 = math.tanh %491 : vector<8x16xf32>
    %493 = arith.mulf %488, %492 : vector<8x16xf32>
    %c2_207 = arith.constant 2 : index
    %c0_208 = arith.constant 0 : index
    %c0_209 = arith.constant 0 : index
    %494 = vector.load %arg3[%c2_207, %c0_208, %c0_209] : memref<8x8x16xf32, #tpu.memory_space<vmem>>, vector<1x8x16xf32>
    %495 = vector.shape_cast %494 : vector<1x8x16xf32> to vector<8x16xf32>
    %496 = vector.shape_cast %493 : vector<8x16xf32> to vector<1x8x16xf32>
    tpu.vector_store %arg3[%c2_207, %c0_208, %c0_209], %496 {strides = array<i32>} : memref<8x8x16xf32, #tpu.memory_space<vmem>>, vector<1x8x16xf32>,
    %c3_210 = arith.constant 3 : index
    %c0_211 = arith.constant 0 : index
    %c0_212 = arith.constant 0 : index
    %497 = vector.load %arg4[%c3_210, %c0_211, %c0_212] : memref<8x8x64xf32, #tpu.memory_space<vmem>>, vector<1x8x64xf32>
    %498 = vector.shape_cast %497 : vector<1x8x64xf32> to vector<8x64xf32>
    %cst_213 = arith.constant dense<0.000000e+00> : vector<8x64xf32>
    %499 = tpu.matmul %493, %419, %cst_213 {dimension_numbers = #tpu.dot_dimension_numbers<[1], [0], [0], [1], [0, 0, 1, 1], [], []>} : vector<8x16xf32>, vector<16x64xf32>, vector<8x64xf32> -> vector<8x64xf32>
    %500 = arith.addf %498, %499 : vector<8x64xf32>
    %501 = vector.extract_strided_slice %500 {offsets = [0, 0], sizes = [8, 48], strides = [1, 1]} : vector<8x64xf32> to vector<8x48xf32>
    %502 = arith.negf %501 : vector<8x48xf32>
    %503 = math.exp %502 : vector<8x48xf32>
    %cst_214 = arith.constant 1.000000e+00 : f32
    %504 = vector.broadcast %cst_214 : f32 to vector<8x48xf32>
    %505 = arith.addf %504, %503 : vector<8x48xf32>
    %506 = arith.divf %504, %505 : vector<8x48xf32>
    %507 = vector.extract_strided_slice %500 {offsets = [0, 48], sizes = [8, 16], strides = [1, 1]} : vector<8x64xf32> to vector<8x16xf32>
    %508 = math.tanh %507 : vector<8x16xf32>
    %509 = vector.extract_strided_slice %506 {offsets = [0, 0], sizes = [8, 16], strides = [1, 1]} : vector<8x48xf32> to vector<8x16xf32>
    %510 = vector.extract_strided_slice %506 {offsets = [0, 16], sizes = [8, 16], strides = [1, 1]} : vector<8x48xf32> to vector<8x16xf32>
    %511 = vector.extract_strided_slice %506 {offsets = [0, 32], sizes = [8, 16], strides = [1, 1]} : vector<8x48xf32> to vector<8x16xf32>
    %512 = arith.mulf %510, %491 : vector<8x16xf32>
    %513 = arith.mulf %509, %508 : vector<8x16xf32>
    %514 = arith.addf %512, %513 : vector<8x16xf32>
    %515 = math.tanh %514 : vector<8x16xf32>
    %516 = arith.mulf %511, %515 : vector<8x16xf32>
    %c3_215 = arith.constant 3 : index
    %c0_216 = arith.constant 0 : index
    %c0_217 = arith.constant 0 : index
    %517 = vector.load %arg3[%c3_215, %c0_216, %c0_217] : memref<8x8x16xf32, #tpu.memory_space<vmem>>, vector<1x8x16xf32>
    %518 = vector.shape_cast %517 : vector<1x8x16xf32> to vector<8x16xf32>
    %519 = vector.shape_cast %516 : vector<8x16xf32> to vector<1x8x16xf32>
    tpu.vector_store %arg3[%c3_215, %c0_216, %c0_217], %519 {strides = array<i32>} : memref<8x8x16xf32, #tpu.memory_space<vmem>>, vector<1x8x16xf32>,
    %c13 = arith.constant 13 : index
    %c0_218 = arith.constant 0 : index
    %c0_219 = arith.constant 0 : index
    %520 = vector.load %arg0[%c13, %c0_218, %c0_219] : memref<18x8x16xf32, #tpu.memory_space<vmem>>, vector<1x8x16xf32>
    %521 = vector.shape_cast %520 : vector<1x8x16xf32> to vector<8x16xf32>
    %c15 = arith.constant 15 : index
    %c0_220 = arith.constant 0 : index
    %c0_221 = arith.constant 0 : index
    %522 = vector.load %arg0[%c15, %c0_220, %c0_221] : memref<18x8x16xf32, #tpu.memory_space<vmem>>, vector<1x8x16xf32>
    %523 = vector.shape_cast %522 : vector<1x8x16xf32> to vector<8x16xf32>
    %c120 = arith.constant 120 : index
    %c0_222 = arith.constant 0 : index
    %524 = vector.load %arg1[%c120, %c0_222] : memref<200x64xf32, #tpu.memory_space<vmem>>, vector<16x64xf32>
    %c136 = arith.constant 136 : index
    %c0_223 = arith.constant 0 : index
    %525 = vector.load %arg1[%c136, %c0_223] : memref<200x64xf32, #tpu.memory_space<vmem>>, vector<16x64xf32>
    %c152 = arith.constant 152 : index
    %c0_224 = arith.constant 0 : index
    %526 = vector.load %arg1[%c152, %c0_224] : memref<200x64xf32, #tpu.memory_space<vmem>>, vector<1x64xf32>
    %c0_225 = arith.constant 0 : index
    %c0_226 = arith.constant 0 : index
    %c0_227 = arith.constant 0 : index
    %527 = vector.load %arg3[%c0_225, %c0_226, %c0_227] : memref<8x8x16xf32, #tpu.memory_space<vmem>>, vector<4x8x16xf32>
    %528 = vector.shape_cast %527 : vector<4x8x16xf32> to vector<32x16xf32>
    %cst_228 = arith.constant dense<0.000000e+00> : vector<32x64xf32>
    %529 = tpu.matmul %528, %524, %cst_228 {dimension_numbers = #tpu.dot_dimension_numbers<[1], [0], [0], [1], [0, 0, 1, 1], [], []>} : vector<32x16xf32>, vector<16x64xf32>, vector<32x64xf32> -> vector<32x64xf32>
    %530 = vector.broadcast %526 : vector<1x64xf32> to vector<32x64xf32>
    %531 = arith.addf %529, %530 : vector<32x64xf32>
    %532 = vector.shape_cast %531 : vector<32x64xf32> to vector<4x8x64xf32>
    %c0_229 = arith.constant 0 : index
    %c0_230 = arith.constant 0 : index
    %c0_231 = arith.constant 0 : index
    %533 = vector.load %arg4[%c0_229, %c0_230, %c0_231] : memref<8x8x64xf32, #tpu.memory_space<vmem>>, vector<4x8x64xf32>
    tpu.vector_store %arg4[%c0_229, %c0_230, %c0_231], %532 {strides = array<i32>} : memref<8x8x64xf32, #tpu.memory_space<vmem>>, vector<4x8x64xf32>,
    %c0_232 = arith.constant 0 : index
    %c0_233 = arith.constant 0 : index
    %c0_234 = arith.constant 0 : index
    %534 = vector.load %arg4[%c0_232, %c0_233, %c0_234] : memref<8x8x64xf32, #tpu.memory_space<vmem>>, vector<1x8x64xf32>
    %535 = vector.shape_cast %534 : vector<1x8x64xf32> to vector<8x64xf32>
    %cst_235 = arith.constant dense<0.000000e+00> : vector<8x64xf32>
    %536 = tpu.matmul %521, %525, %cst_235 {dimension_numbers = #tpu.dot_dimension_numbers<[1], [0], [0], [1], [0, 0, 1, 1], [], []>} : vector<8x16xf32>, vector<16x64xf32>, vector<8x64xf32> -> vector<8x64xf32>
    %537 = arith.addf %535, %536 : vector<8x64xf32>
    %538 = vector.extract_strided_slice %537 {offsets = [0, 0], sizes = [8, 48], strides = [1, 1]} : vector<8x64xf32> to vector<8x48xf32>
    %539 = arith.negf %538 : vector<8x48xf32>
    %540 = math.exp %539 : vector<8x48xf32>
    %cst_236 = arith.constant 1.000000e+00 : f32
    %541 = vector.broadcast %cst_236 : f32 to vector<8x48xf32>
    %542 = arith.addf %541, %540 : vector<8x48xf32>
    %543 = arith.divf %541, %542 : vector<8x48xf32>
    %544 = vector.extract_strided_slice %537 {offsets = [0, 48], sizes = [8, 16], strides = [1, 1]} : vector<8x64xf32> to vector<8x16xf32>
    %545 = math.tanh %544 : vector<8x16xf32>
    %546 = vector.extract_strided_slice %543 {offsets = [0, 0], sizes = [8, 16], strides = [1, 1]} : vector<8x48xf32> to vector<8x16xf32>
    %547 = vector.extract_strided_slice %543 {offsets = [0, 16], sizes = [8, 16], strides = [1, 1]} : vector<8x48xf32> to vector<8x16xf32>
    %548 = vector.extract_strided_slice %543 {offsets = [0, 32], sizes = [8, 16], strides = [1, 1]} : vector<8x48xf32> to vector<8x16xf32>
    %549 = arith.mulf %547, %523 : vector<8x16xf32>
    %550 = arith.mulf %546, %545 : vector<8x16xf32>
    %551 = arith.addf %549, %550 : vector<8x16xf32>
    %552 = math.tanh %551 : vector<8x16xf32>
    %553 = arith.mulf %548, %552 : vector<8x16xf32>
    %c0_237 = arith.constant 0 : index
    %c0_238 = arith.constant 0 : index
    %c0_239 = arith.constant 0 : index
    %554 = vector.load %arg3[%c0_237, %c0_238, %c0_239] : memref<8x8x16xf32, #tpu.memory_space<vmem>>, vector<1x8x16xf32>
    %555 = vector.shape_cast %554 : vector<1x8x16xf32> to vector<8x16xf32>
    %556 = vector.shape_cast %553 : vector<8x16xf32> to vector<1x8x16xf32>
    tpu.vector_store %arg3[%c0_237, %c0_238, %c0_239], %556 {strides = array<i32>} : memref<8x8x16xf32, #tpu.memory_space<vmem>>, vector<1x8x16xf32>,
    %c1_240 = arith.constant 1 : index
    %c0_241 = arith.constant 0 : index
    %c0_242 = arith.constant 0 : index
    %557 = vector.load %arg4[%c1_240, %c0_241, %c0_242] : memref<8x8x64xf32, #tpu.memory_space<vmem>>, vector<1x8x64xf32>
    %558 = vector.shape_cast %557 : vector<1x8x64xf32> to vector<8x64xf32>
    %cst_243 = arith.constant dense<0.000000e+00> : vector<8x64xf32>
    %559 = tpu.matmul %553, %525, %cst_243 {dimension_numbers = #tpu.dot_dimension_numbers<[1], [0], [0], [1], [0, 0, 1, 1], [], []>} : vector<8x16xf32>, vector<16x64xf32>, vector<8x64xf32> -> vector<8x64xf32>
    %560 = arith.addf %558, %559 : vector<8x64xf32>
    %561 = vector.extract_strided_slice %560 {offsets = [0, 0], sizes = [8, 48], strides = [1, 1]} : vector<8x64xf32> to vector<8x48xf32>
    %562 = arith.negf %561 : vector<8x48xf32>
    %563 = math.exp %562 : vector<8x48xf32>
    %cst_244 = arith.constant 1.000000e+00 : f32
    %564 = vector.broadcast %cst_244 : f32 to vector<8x48xf32>
    %565 = arith.addf %564, %563 : vector<8x48xf32>
    %566 = arith.divf %564, %565 : vector<8x48xf32>
    %567 = vector.extract_strided_slice %560 {offsets = [0, 48], sizes = [8, 16], strides = [1, 1]} : vector<8x64xf32> to vector<8x16xf32>
    %568 = math.tanh %567 : vector<8x16xf32>
    %569 = vector.extract_strided_slice %566 {offsets = [0, 0], sizes = [8, 16], strides = [1, 1]} : vector<8x48xf32> to vector<8x16xf32>
    %570 = vector.extract_strided_slice %566 {offsets = [0, 16], sizes = [8, 16], strides = [1, 1]} : vector<8x48xf32> to vector<8x16xf32>
    %571 = vector.extract_strided_slice %566 {offsets = [0, 32], sizes = [8, 16], strides = [1, 1]} : vector<8x48xf32> to vector<8x16xf32>
    %572 = arith.mulf %570, %551 : vector<8x16xf32>
    %573 = arith.mulf %569, %568 : vector<8x16xf32>
    %574 = arith.addf %572, %573 : vector<8x16xf32>
    %575 = math.tanh %574 : vector<8x16xf32>
    %576 = arith.mulf %571, %575 : vector<8x16xf32>
    %c1_245 = arith.constant 1 : index
    %c0_246 = arith.constant 0 : index
    %c0_247 = arith.constant 0 : index
    %577 = vector.load %arg3[%c1_245, %c0_246, %c0_247] : memref<8x8x16xf32, #tpu.memory_space<vmem>>, vector<1x8x16xf32>
    %578 = vector.shape_cast %577 : vector<1x8x16xf32> to vector<8x16xf32>
    %579 = vector.shape_cast %576 : vector<8x16xf32> to vector<1x8x16xf32>
    tpu.vector_store %arg3[%c1_245, %c0_246, %c0_247], %579 {strides = array<i32>} : memref<8x8x16xf32, #tpu.memory_space<vmem>>, vector<1x8x16xf32>,
    %c2_248 = arith.constant 2 : index
    %c0_249 = arith.constant 0 : index
    %c0_250 = arith.constant 0 : index
    %580 = vector.load %arg4[%c2_248, %c0_249, %c0_250] : memref<8x8x64xf32, #tpu.memory_space<vmem>>, vector<1x8x64xf32>
    %581 = vector.shape_cast %580 : vector<1x8x64xf32> to vector<8x64xf32>
    %cst_251 = arith.constant dense<0.000000e+00> : vector<8x64xf32>
    %582 = tpu.matmul %576, %525, %cst_251 {dimension_numbers = #tpu.dot_dimension_numbers<[1], [0], [0], [1], [0, 0, 1, 1], [], []>} : vector<8x16xf32>, vector<16x64xf32>, vector<8x64xf32> -> vector<8x64xf32>
    %583 = arith.addf %581, %582 : vector<8x64xf32>
    %584 = vector.extract_strided_slice %583 {offsets = [0, 0], sizes = [8, 48], strides = [1, 1]} : vector<8x64xf32> to vector<8x48xf32>
    %585 = arith.negf %584 : vector<8x48xf32>
    %586 = math.exp %585 : vector<8x48xf32>
    %cst_252 = arith.constant 1.000000e+00 : f32
    %587 = vector.broadcast %cst_252 : f32 to vector<8x48xf32>
    %588 = arith.addf %587, %586 : vector<8x48xf32>
    %589 = arith.divf %587, %588 : vector<8x48xf32>
    %590 = vector.extract_strided_slice %583 {offsets = [0, 48], sizes = [8, 16], strides = [1, 1]} : vector<8x64xf32> to vector<8x16xf32>
    %591 = math.tanh %590 : vector<8x16xf32>
    %592 = vector.extract_strided_slice %589 {offsets = [0, 0], sizes = [8, 16], strides = [1, 1]} : vector<8x48xf32> to vector<8x16xf32>
    %593 = vector.extract_strided_slice %589 {offsets = [0, 16], sizes = [8, 16], strides = [1, 1]} : vector<8x48xf32> to vector<8x16xf32>
    %594 = vector.extract_strided_slice %589 {offsets = [0, 32], sizes = [8, 16], strides = [1, 1]} : vector<8x48xf32> to vector<8x16xf32>
    %595 = arith.mulf %593, %574 : vector<8x16xf32>
    %596 = arith.mulf %592, %591 : vector<8x16xf32>
    %597 = arith.addf %595, %596 : vector<8x16xf32>
    %598 = math.tanh %597 : vector<8x16xf32>
    %599 = arith.mulf %594, %598 : vector<8x16xf32>
    %c2_253 = arith.constant 2 : index
    %c0_254 = arith.constant 0 : index
    %c0_255 = arith.constant 0 : index
    %600 = vector.load %arg3[%c2_253, %c0_254, %c0_255] : memref<8x8x16xf32, #tpu.memory_space<vmem>>, vector<1x8x16xf32>
    %601 = vector.shape_cast %600 : vector<1x8x16xf32> to vector<8x16xf32>
    %602 = vector.shape_cast %599 : vector<8x16xf32> to vector<1x8x16xf32>
    tpu.vector_store %arg3[%c2_253, %c0_254, %c0_255], %602 {strides = array<i32>} : memref<8x8x16xf32, #tpu.memory_space<vmem>>, vector<1x8x16xf32>,
    %c3_256 = arith.constant 3 : index
    %c0_257 = arith.constant 0 : index
    %c0_258 = arith.constant 0 : index
    %603 = vector.load %arg4[%c3_256, %c0_257, %c0_258] : memref<8x8x64xf32, #tpu.memory_space<vmem>>, vector<1x8x64xf32>
    %604 = vector.shape_cast %603 : vector<1x8x64xf32> to vector<8x64xf32>
    %cst_259 = arith.constant dense<0.000000e+00> : vector<8x64xf32>
    %605 = tpu.matmul %599, %525, %cst_259 {dimension_numbers = #tpu.dot_dimension_numbers<[1], [0], [0], [1], [0, 0, 1, 1], [], []>} : vector<8x16xf32>, vector<16x64xf32>, vector<8x64xf32> -> vector<8x64xf32>
    %606 = arith.addf %604, %605 : vector<8x64xf32>
    %607 = vector.extract_strided_slice %606 {offsets = [0, 0], sizes = [8, 48], strides = [1, 1]} : vector<8x64xf32> to vector<8x48xf32>
    %608 = arith.negf %607 : vector<8x48xf32>
    %609 = math.exp %608 : vector<8x48xf32>
    %cst_260 = arith.constant 1.000000e+00 : f32
    %610 = vector.broadcast %cst_260 : f32 to vector<8x48xf32>
    %611 = arith.addf %610, %609 : vector<8x48xf32>
    %612 = arith.divf %610, %611 : vector<8x48xf32>
    %613 = vector.extract_strided_slice %606 {offsets = [0, 48], sizes = [8, 16], strides = [1, 1]} : vector<8x64xf32> to vector<8x16xf32>
    %614 = math.tanh %613 : vector<8x16xf32>
    %615 = vector.extract_strided_slice %612 {offsets = [0, 0], sizes = [8, 16], strides = [1, 1]} : vector<8x48xf32> to vector<8x16xf32>
    %616 = vector.extract_strided_slice %612 {offsets = [0, 16], sizes = [8, 16], strides = [1, 1]} : vector<8x48xf32> to vector<8x16xf32>
    %617 = vector.extract_strided_slice %612 {offsets = [0, 32], sizes = [8, 16], strides = [1, 1]} : vector<8x48xf32> to vector<8x16xf32>
    %618 = arith.mulf %616, %597 : vector<8x16xf32>
    %619 = arith.mulf %615, %614 : vector<8x16xf32>
    %620 = arith.addf %618, %619 : vector<8x16xf32>
    %621 = math.tanh %620 : vector<8x16xf32>
    %622 = arith.mulf %617, %621 : vector<8x16xf32>
    %c3_261 = arith.constant 3 : index
    %c0_262 = arith.constant 0 : index
    %c0_263 = arith.constant 0 : index
    %623 = vector.load %arg3[%c3_261, %c0_262, %c0_263] : memref<8x8x16xf32, #tpu.memory_space<vmem>>, vector<1x8x16xf32>
    %624 = vector.shape_cast %623 : vector<1x8x16xf32> to vector<8x16xf32>
    %625 = vector.shape_cast %622 : vector<8x16xf32> to vector<1x8x16xf32>
    tpu.vector_store %arg3[%c3_261, %c0_262, %c0_263], %625 {strides = array<i32>} : memref<8x8x16xf32, #tpu.memory_space<vmem>>, vector<1x8x16xf32>,
    %c12_264 = arith.constant 12 : index
    %c0_265 = arith.constant 0 : index
    %c0_266 = arith.constant 0 : index
    %626 = vector.load %arg0[%c12_264, %c0_265, %c0_266] : memref<18x8x16xf32, #tpu.memory_space<vmem>>, vector<1x8x16xf32>
    %627 = vector.shape_cast %626 : vector<1x8x16xf32> to vector<8x16xf32>
    %c0_267 = arith.constant 0 : index
    %c0_268 = arith.constant 0 : index
    %c0_269 = arith.constant 0 : index
    %628 = vector.load %arg3[%c0_267, %c0_268, %c0_269] : memref<8x8x16xf32, #tpu.memory_space<vmem>>, vector<1x8x16xf32>
    %629 = vector.shape_cast %628 : vector<1x8x16xf32> to vector<8x16xf32>
    %630 = vector.shape_cast %627 : vector<8x16xf32> to vector<1x8x16xf32>
    tpu.vector_store %arg3[%c0_267, %c0_268, %c0_269], %630 {strides = array<i32>} : memref<8x8x16xf32, #tpu.memory_space<vmem>>, vector<1x8x16xf32>,
    %c2_270 = arith.constant 2 : index
    %c0_271 = arith.constant 0 : index
    %c0_272 = arith.constant 0 : index
    %631 = vector.load %arg3[%c2_270, %c0_271, %c0_272] : memref<8x8x16xf32, #tpu.memory_space<vmem>>, vector<1x8x16xf32>
    %632 = vector.shape_cast %631 : vector<1x8x16xf32> to vector<8x16xf32>
    %633 = vector.shape_cast %516 : vector<8x16xf32> to vector<1x8x16xf32>
    tpu.vector_store %arg3[%c2_270, %c0_271, %c0_272], %633 {strides = array<i32>} : memref<8x8x16xf32, #tpu.memory_space<vmem>>, vector<1x8x16xf32>,
    %c13_273 = arith.constant 13 : index
    %c0_274 = arith.constant 0 : index
    %c0_275 = arith.constant 0 : index
    %634 = vector.load %arg0[%c13_273, %c0_274, %c0_275] : memref<18x8x16xf32, #tpu.memory_space<vmem>>, vector<1x8x16xf32>
    %635 = vector.shape_cast %634 : vector<1x8x16xf32> to vector<8x16xf32>
    %c1_276 = arith.constant 1 : index
    %c0_277 = arith.constant 0 : index
    %c0_278 = arith.constant 0 : index
    %636 = vector.load %arg3[%c1_276, %c0_277, %c0_278] : memref<8x8x16xf32, #tpu.memory_space<vmem>>, vector<1x8x16xf32>
    %637 = vector.shape_cast %636 : vector<1x8x16xf32> to vector<8x16xf32>
    %638 = vector.shape_cast %635 : vector<8x16xf32> to vector<1x8x16xf32>
    tpu.vector_store %arg3[%c1_276, %c0_277, %c0_278], %638 {strides = array<i32>} : memref<8x8x16xf32, #tpu.memory_space<vmem>>, vector<1x8x16xf32>,
    %c3_279 = arith.constant 3 : index
    %c0_280 = arith.constant 0 : index
    %c0_281 = arith.constant 0 : index
    %639 = vector.load %arg3[%c3_279, %c0_280, %c0_281] : memref<8x8x16xf32, #tpu.memory_space<vmem>>, vector<1x8x16xf32>
    %640 = vector.shape_cast %639 : vector<1x8x16xf32> to vector<8x16xf32>
    %641 = vector.shape_cast %622 : vector<8x16xf32> to vector<1x8x16xf32>
    tpu.vector_store %arg3[%c3_279, %c0_280, %c0_281], %641 {strides = array<i32>} : memref<8x8x16xf32, #tpu.memory_space<vmem>>, vector<1x8x16xf32>,
    %c16_282 = arith.constant 16 : index
    %c0_283 = arith.constant 0 : index
    %c0_284 = arith.constant 0 : index
    %642 = vector.load %arg0[%c16_282, %c0_283, %c0_284] : memref<18x8x16xf32, #tpu.memory_space<vmem>>, vector<1x8x16xf32>
    %643 = vector.shape_cast %642 : vector<1x8x16xf32> to vector<8x16xf32>
    %c17 = arith.constant 17 : index
    %c0_285 = arith.constant 0 : index
    %c0_286 = arith.constant 0 : index
    %644 = vector.load %arg0[%c17, %c0_285, %c0_286] : memref<18x8x16xf32, #tpu.memory_space<vmem>>, vector<1x8x16xf32>
    %645 = vector.shape_cast %644 : vector<1x8x16xf32> to vector<8x16xf32>
    %c160 = arith.constant 160 : index
    %c0_287 = arith.constant 0 : index
    %646 = vector.load %arg1[%c160, %c0_287] : memref<200x64xf32, #tpu.memory_space<vmem>>, vector<16x64xf32>
    %c176 = arith.constant 176 : index
    %c0_288 = arith.constant 0 : index
    %647 = vector.load %arg1[%c176, %c0_288] : memref<200x64xf32, #tpu.memory_space<vmem>>, vector<16x64xf32>
    %c192 = arith.constant 192 : index
    %c0_289 = arith.constant 0 : index
    %648 = vector.load %arg1[%c192, %c0_289] : memref<200x64xf32, #tpu.memory_space<vmem>>, vector<1x64xf32>
    %c0_290 = arith.constant 0 : index
    %c0_291 = arith.constant 0 : index
    %c0_292 = arith.constant 0 : index
    %649 = vector.load %arg3[%c0_290, %c0_291, %c0_292] : memref<8x8x16xf32, #tpu.memory_space<vmem>>, vector<4x8x16xf32>
    %650 = vector.shape_cast %649 : vector<4x8x16xf32> to vector<32x16xf32>
    %cst_293 = arith.constant dense<0.000000e+00> : vector<32x64xf32>
    %651 = tpu.matmul %650, %646, %cst_293 {dimension_numbers = #tpu.dot_dimension_numbers<[1], [0], [0], [1], [0, 0, 1, 1], [], []>} : vector<32x16xf32>, vector<16x64xf32>, vector<32x64xf32> -> vector<32x64xf32>
    %652 = vector.broadcast %648 : vector<1x64xf32> to vector<32x64xf32>
    %653 = arith.addf %651, %652 : vector<32x64xf32>
    %654 = vector.shape_cast %653 : vector<32x64xf32> to vector<4x8x64xf32>
    %c0_294 = arith.constant 0 : index
    %c0_295 = arith.constant 0 : index
    %c0_296 = arith.constant 0 : index
    %655 = vector.load %arg4[%c0_294, %c0_295, %c0_296] : memref<8x8x64xf32, #tpu.memory_space<vmem>>, vector<4x8x64xf32>
    tpu.vector_store %arg4[%c0_294, %c0_295, %c0_296], %654 {strides = array<i32>} : memref<8x8x64xf32, #tpu.memory_space<vmem>>, vector<4x8x64xf32>,
    %c0_297 = arith.constant 0 : index
    %c0_298 = arith.constant 0 : index
    %c0_299 = arith.constant 0 : index
    %656 = vector.load %arg4[%c0_297, %c0_298, %c0_299] : memref<8x8x64xf32, #tpu.memory_space<vmem>>, vector<1x8x64xf32>
    %657 = vector.shape_cast %656 : vector<1x8x64xf32> to vector<8x64xf32>
    %cst_300 = arith.constant dense<0.000000e+00> : vector<8x64xf32>
    %658 = tpu.matmul %643, %647, %cst_300 {dimension_numbers = #tpu.dot_dimension_numbers<[1], [0], [0], [1], [0, 0, 1, 1], [], []>} : vector<8x16xf32>, vector<16x64xf32>, vector<8x64xf32> -> vector<8x64xf32>
    %659 = arith.addf %657, %658 : vector<8x64xf32>
    %660 = vector.extract_strided_slice %659 {offsets = [0, 0], sizes = [8, 48], strides = [1, 1]} : vector<8x64xf32> to vector<8x48xf32>
    %661 = arith.negf %660 : vector<8x48xf32>
    %662 = math.exp %661 : vector<8x48xf32>
    %cst_301 = arith.constant 1.000000e+00 : f32
    %663 = vector.broadcast %cst_301 : f32 to vector<8x48xf32>
    %664 = arith.addf %663, %662 : vector<8x48xf32>
    %665 = arith.divf %663, %664 : vector<8x48xf32>
    %666 = vector.extract_strided_slice %659 {offsets = [0, 48], sizes = [8, 16], strides = [1, 1]} : vector<8x64xf32> to vector<8x16xf32>
    %667 = math.tanh %666 : vector<8x16xf32>
    %668 = vector.extract_strided_slice %665 {offsets = [0, 0], sizes = [8, 16], strides = [1, 1]} : vector<8x48xf32> to vector<8x16xf32>
    %669 = vector.extract_strided_slice %665 {offsets = [0, 16], sizes = [8, 16], strides = [1, 1]} : vector<8x48xf32> to vector<8x16xf32>
    %670 = vector.extract_strided_slice %665 {offsets = [0, 32], sizes = [8, 16], strides = [1, 1]} : vector<8x48xf32> to vector<8x16xf32>
    %671 = arith.mulf %669, %645 : vector<8x16xf32>
    %672 = arith.mulf %668, %667 : vector<8x16xf32>
    %673 = arith.addf %671, %672 : vector<8x16xf32>
    %674 = math.tanh %673 : vector<8x16xf32>
    %675 = arith.mulf %670, %674 : vector<8x16xf32>
    %c0_302 = arith.constant 0 : index
    %c0_303 = arith.constant 0 : index
    %c0_304 = arith.constant 0 : index
    %676 = vector.load %arg3[%c0_302, %c0_303, %c0_304] : memref<8x8x16xf32, #tpu.memory_space<vmem>>, vector<1x8x16xf32>
    %677 = vector.shape_cast %676 : vector<1x8x16xf32> to vector<8x16xf32>
    %678 = vector.shape_cast %675 : vector<8x16xf32> to vector<1x8x16xf32>
    tpu.vector_store %arg3[%c0_302, %c0_303, %c0_304], %678 {strides = array<i32>} : memref<8x8x16xf32, #tpu.memory_space<vmem>>, vector<1x8x16xf32>,
    %c1_305 = arith.constant 1 : index
    %c0_306 = arith.constant 0 : index
    %c0_307 = arith.constant 0 : index
    %679 = vector.load %arg4[%c1_305, %c0_306, %c0_307] : memref<8x8x64xf32, #tpu.memory_space<vmem>>, vector<1x8x64xf32>
    %680 = vector.shape_cast %679 : vector<1x8x64xf32> to vector<8x64xf32>
    %cst_308 = arith.constant dense<0.000000e+00> : vector<8x64xf32>
    %681 = tpu.matmul %675, %647, %cst_308 {dimension_numbers = #tpu.dot_dimension_numbers<[1], [0], [0], [1], [0, 0, 1, 1], [], []>} : vector<8x16xf32>, vector<16x64xf32>, vector<8x64xf32> -> vector<8x64xf32>
    %682 = arith.addf %680, %681 : vector<8x64xf32>
    %683 = vector.extract_strided_slice %682 {offsets = [0, 0], sizes = [8, 48], strides = [1, 1]} : vector<8x64xf32> to vector<8x48xf32>
    %684 = arith.negf %683 : vector<8x48xf32>
    %685 = math.exp %684 : vector<8x48xf32>
    %cst_309 = arith.constant 1.000000e+00 : f32
    %686 = vector.broadcast %cst_309 : f32 to vector<8x48xf32>
    %687 = arith.addf %686, %685 : vector<8x48xf32>
    %688 = arith.divf %686, %687 : vector<8x48xf32>
    %689 = vector.extract_strided_slice %682 {offsets = [0, 48], sizes = [8, 16], strides = [1, 1]} : vector<8x64xf32> to vector<8x16xf32>
    %690 = math.tanh %689 : vector<8x16xf32>
    %691 = vector.extract_strided_slice %688 {offsets = [0, 0], sizes = [8, 16], strides = [1, 1]} : vector<8x48xf32> to vector<8x16xf32>
    %692 = vector.extract_strided_slice %688 {offsets = [0, 16], sizes = [8, 16], strides = [1, 1]} : vector<8x48xf32> to vector<8x16xf32>
    %693 = vector.extract_strided_slice %688 {offsets = [0, 32], sizes = [8, 16], strides = [1, 1]} : vector<8x48xf32> to vector<8x16xf32>
    %694 = arith.mulf %692, %673 : vector<8x16xf32>
    %695 = arith.mulf %691, %690 : vector<8x16xf32>
    %696 = arith.addf %694, %695 : vector<8x16xf32>
    %697 = math.tanh %696 : vector<8x16xf32>
    %698 = arith.mulf %693, %697 : vector<8x16xf32>
    %c1_310 = arith.constant 1 : index
    %c0_311 = arith.constant 0 : index
    %c0_312 = arith.constant 0 : index
    %699 = vector.load %arg3[%c1_310, %c0_311, %c0_312] : memref<8x8x16xf32, #tpu.memory_space<vmem>>, vector<1x8x16xf32>
    %700 = vector.shape_cast %699 : vector<1x8x16xf32> to vector<8x16xf32>
    %701 = vector.shape_cast %698 : vector<8x16xf32> to vector<1x8x16xf32>
    tpu.vector_store %arg3[%c1_310, %c0_311, %c0_312], %701 {strides = array<i32>} : memref<8x8x16xf32, #tpu.memory_space<vmem>>, vector<1x8x16xf32>,
    %c2_313 = arith.constant 2 : index
    %c0_314 = arith.constant 0 : index
    %c0_315 = arith.constant 0 : index
    %702 = vector.load %arg4[%c2_313, %c0_314, %c0_315] : memref<8x8x64xf32, #tpu.memory_space<vmem>>, vector<1x8x64xf32>
    %703 = vector.shape_cast %702 : vector<1x8x64xf32> to vector<8x64xf32>
    %cst_316 = arith.constant dense<0.000000e+00> : vector<8x64xf32>
    %704 = tpu.matmul %698, %647, %cst_316 {dimension_numbers = #tpu.dot_dimension_numbers<[1], [0], [0], [1], [0, 0, 1, 1], [], []>} : vector<8x16xf32>, vector<16x64xf32>, vector<8x64xf32> -> vector<8x64xf32>
    %705 = arith.addf %703, %704 : vector<8x64xf32>
    %706 = vector.extract_strided_slice %705 {offsets = [0, 0], sizes = [8, 48], strides = [1, 1]} : vector<8x64xf32> to vector<8x48xf32>
    %707 = arith.negf %706 : vector<8x48xf32>
    %708 = math.exp %707 : vector<8x48xf32>
    %cst_317 = arith.constant 1.000000e+00 : f32
    %709 = vector.broadcast %cst_317 : f32 to vector<8x48xf32>
    %710 = arith.addf %709, %708 : vector<8x48xf32>
    %711 = arith.divf %709, %710 : vector<8x48xf32>
    %712 = vector.extract_strided_slice %705 {offsets = [0, 48], sizes = [8, 16], strides = [1, 1]} : vector<8x64xf32> to vector<8x16xf32>
    %713 = math.tanh %712 : vector<8x16xf32>
    %714 = vector.extract_strided_slice %711 {offsets = [0, 0], sizes = [8, 16], strides = [1, 1]} : vector<8x48xf32> to vector<8x16xf32>
    %715 = vector.extract_strided_slice %711 {offsets = [0, 16], sizes = [8, 16], strides = [1, 1]} : vector<8x48xf32> to vector<8x16xf32>
    %716 = vector.extract_strided_slice %711 {offsets = [0, 32], sizes = [8, 16], strides = [1, 1]} : vector<8x48xf32> to vector<8x16xf32>
    %717 = arith.mulf %715, %696 : vector<8x16xf32>
    %718 = arith.mulf %714, %713 : vector<8x16xf32>
    %719 = arith.addf %717, %718 : vector<8x16xf32>
    %720 = math.tanh %719 : vector<8x16xf32>
    %721 = arith.mulf %716, %720 : vector<8x16xf32>
    %c2_318 = arith.constant 2 : index
    %c0_319 = arith.constant 0 : index
    %c0_320 = arith.constant 0 : index
    %722 = vector.load %arg3[%c2_318, %c0_319, %c0_320] : memref<8x8x16xf32, #tpu.memory_space<vmem>>, vector<1x8x16xf32>
    %723 = vector.shape_cast %722 : vector<1x8x16xf32> to vector<8x16xf32>
    %724 = vector.shape_cast %721 : vector<8x16xf32> to vector<1x8x16xf32>
    tpu.vector_store %arg3[%c2_318, %c0_319, %c0_320], %724 {strides = array<i32>} : memref<8x8x16xf32, #tpu.memory_space<vmem>>, vector<1x8x16xf32>,
    %c3_321 = arith.constant 3 : index
    %c0_322 = arith.constant 0 : index
    %c0_323 = arith.constant 0 : index
    %725 = vector.load %arg4[%c3_321, %c0_322, %c0_323] : memref<8x8x64xf32, #tpu.memory_space<vmem>>, vector<1x8x64xf32>
    %726 = vector.shape_cast %725 : vector<1x8x64xf32> to vector<8x64xf32>
    %cst_324 = arith.constant dense<0.000000e+00> : vector<8x64xf32>
    %727 = tpu.matmul %721, %647, %cst_324 {dimension_numbers = #tpu.dot_dimension_numbers<[1], [0], [0], [1], [0, 0, 1, 1], [], []>} : vector<8x16xf32>, vector<16x64xf32>, vector<8x64xf32> -> vector<8x64xf32>
    %728 = arith.addf %726, %727 : vector<8x64xf32>
    %729 = vector.extract_strided_slice %728 {offsets = [0, 0], sizes = [8, 48], strides = [1, 1]} : vector<8x64xf32> to vector<8x48xf32>
    %730 = arith.negf %729 : vector<8x48xf32>
    %731 = math.exp %730 : vector<8x48xf32>
    %cst_325 = arith.constant 1.000000e+00 : f32
    %732 = vector.broadcast %cst_325 : f32 to vector<8x48xf32>
    %733 = arith.addf %732, %731 : vector<8x48xf32>
    %734 = arith.divf %732, %733 : vector<8x48xf32>
    %735 = vector.extract_strided_slice %728 {offsets = [0, 48], sizes = [8, 16], strides = [1, 1]} : vector<8x64xf32> to vector<8x16xf32>
    %736 = math.tanh %735 : vector<8x16xf32>
    %737 = vector.extract_strided_slice %734 {offsets = [0, 0], sizes = [8, 16], strides = [1, 1]} : vector<8x48xf32> to vector<8x16xf32>
    %738 = vector.extract_strided_slice %734 {offsets = [0, 16], sizes = [8, 16], strides = [1, 1]} : vector<8x48xf32> to vector<8x16xf32>
    %739 = vector.extract_strided_slice %734 {offsets = [0, 32], sizes = [8, 16], strides = [1, 1]} : vector<8x48xf32> to vector<8x16xf32>
    %740 = arith.mulf %738, %719 : vector<8x16xf32>
    %741 = arith.mulf %737, %736 : vector<8x16xf32>
    %742 = arith.addf %740, %741 : vector<8x16xf32>
    %743 = math.tanh %742 : vector<8x16xf32>
    %744 = arith.mulf %739, %743 : vector<8x16xf32>
    %c3_326 = arith.constant 3 : index
    %c0_327 = arith.constant 0 : index
    %c0_328 = arith.constant 0 : index
    %745 = vector.load %arg3[%c3_326, %c0_327, %c0_328] : memref<8x8x16xf32, #tpu.memory_space<vmem>>, vector<1x8x16xf32>
    %746 = vector.shape_cast %745 : vector<1x8x16xf32> to vector<8x16xf32>
    %747 = vector.shape_cast %744 : vector<8x16xf32> to vector<1x8x16xf32>
    tpu.vector_store %arg3[%c3_326, %c0_327, %c0_328], %747 {strides = array<i32>} : memref<8x8x16xf32, #tpu.memory_space<vmem>>, vector<1x8x16xf32>,
    %748 = vector.shape_cast %744 : vector<8x16xf32> to vector<1x8x16xf32>
    %749 = vector.shape_cast %742 : vector<8x16xf32> to vector<1x8x16xf32>
    %750 = vector.shape_cast %516 : vector<8x16xf32> to vector<1x8x16xf32>
    %751 = vector.shape_cast %622 : vector<8x16xf32> to vector<1x8x16xf32>
    %752 = vector.shape_cast %514 : vector<8x16xf32> to vector<1x8x16xf32>
    %753 = vector.shape_cast %620 : vector<8x16xf32> to vector<1x8x16xf32>
    %c0_329 = arith.constant 0 : index
    %c0_330 = arith.constant 0 : index
    %c0_331 = arith.constant 0 : index
    %754 = vector.load %arg3[%c0_329, %c0_330, %c0_331] : memref<8x8x16xf32, #tpu.memory_space<vmem>>, vector<4x8x16xf32>
    %755 = tpu.concatenate %754, %748, %749, %750, %751, %752, %753 in 0 : vector<4x8x16xf32>, vector<1x8x16xf32>, vector<1x8x16xf32>, vector<1x8x16xf32>, vector<1x8x16xf32>, vector<1x8x16xf32>, vector<1x8x16xf32> -> vector<10x8x16xf32>
    %c0_332 = arith.constant 0 : index
    %c0_333 = arith.constant 0 : index
    %c0_334 = arith.constant 0 : index
    %756 = vector.load %arg2[%c0_332, %c0_333, %c0_334] : memref<10x8x16xf32, #tpu.memory_space<vmem>>, vector<10x8x16xf32>
    tpu.vector_store %arg2[%c0_332, %c0_333, %c0_334], %755 {strides = array<i32>} : memref<10x8x16xf32, #tpu.memory_space<vmem>>, vector<10x8x16xf32>,
    return
  }
}

</mosaic_0001>

<llo_original>
// kernel: tpu_custom_call.1
$region0: #{tpu_custom_call.1}
  #allocation0 [shape = 'u32[]', space=smem, size = 0x4, offset = 0x4, fixed_abs, tag = 'smem constant byte address 0x4 - core index']
  #allocation1 [shape = 'u32[144,128]{1,0:T(1,128)}', space=vmem, size = 0x12000, scoped, tag = 'internal scratch']
  #allocation2 [shape = 'f32[8,8,16]{2,1,0:T(8,128)}', space=vmem, size = 0x8000, scoped, tag = 'scratch operand']
  #allocation3 [shape = 'f32[8,8,64]{2,1,0:T(8,128)}', space=vmem, size = 0x8000, scoped, tag = 'scratch operand']
  %s0 = inlined_call_operand.vmem [shape: f32[18,8,16], index: 0, kind: input, shape index: {}]
  %s1 = inlined_call_operand.vmem [shape: f32[200,64], index: 1, kind: input, shape index: {}]
  %s2 = inlined_call_operand.hbm [shape: f32[10,8,16], index: 2, kind: output, shape index: {}]
  %s3 = sld [smem:[#allocation0]]
  $region18: #{tpu_custom_call.1} parent=0
    _
  %s5 = ssub.s32 1, %s3
  %s6 = scalar_select 0, %s5, %s3
  $region1: #{tpu_custom_call.1} parent=0
    #allocation4 [shape = 'u8[40960]{0}', space=vmem, size = 0xa000, scoped, tag = 'output window, operand 0, single buffered']
    #allocation5 [shape = 's32[1]{0}', space=sflag, size = 0x4, scoped, tag = 'scoped memory for tpu_custom_call.1']
    %7 = vsyncpa [#allocation5], 0
    // Predicated region
    $region2: #{tpu_custom_call.1} parent=1 // pred_check
      _
    $region3: #{tpu_custom_call.1} parent=1 // pred_check_branch
      %9 = sbr.rel (0) target = $region5
    $region4: #{tpu_custom_call.1} parent=1 // pred_region
      _
    $region5: #{tpu_custom_call.1} parent=1 // pred_fallthru
      _
    // Predicated region
    $region6: #{tpu_custom_call.1} parent=1 // pred_check
      _
    $region7: #{tpu_custom_call.1} parent=1 // pred_check_branch
      %11 = sbr.rel (0) target = $region9
    $region8: #{tpu_custom_call.1} parent=1 // pred_region
      _
    $region9: #{tpu_custom_call.1} parent=1 // pred_fallthru
      _
    %v12 = vld [vmem:[%s0] sm:$0xff]
    %v13 = vld [vmem:[%s0 + $0x8] sm:$0xff]
    %v14 = vld [vmem:[%s0 + $0x10] sm:$0xff]
    %v15 = vld [vmem:[%s0 + $0x18] sm:$0xff]
    %v16 = vld [vmem:[%s0 + $0x20] sm:$0xff]
    %v17 = vld [vmem:[%s0 + $0x28] sm:$0xff]
    %v18 = vld [vmem:[%s0 + $0x30] sm:$0xff]
    %v19 = vld [vmem:[%s0 + $0x38] sm:$0xff]
    %vm20 = vcmask 130048
    %21 = vst.msk [vmem:[#allocation2] sm:$0xff] %vm20, %v12
    %22 = vst.msk [vmem:[#allocation2 + $0x8] sm:$0xff] %vm20, %v13
    %23 = vst.msk [vmem:[#allocation2 + $0x10] sm:$0xff] %vm20, %v14
    %24 = vst.msk [vmem:[#allocation2 + $0x18] sm:$0xff] %vm20, %v15
    %25 = vst.msk [vmem:[#allocation2 + $0x20] sm:$0xff] %vm20, %v16
    %26 = vst.msk [vmem:[#allocation2 + $0x28] sm:$0xff] %vm20, %v17
    %27 = vst.msk [vmem:[#allocation2 + $0x30] sm:$0xff] %vm20, %v18
    %28 = vst.msk [vmem:[#allocation2 + $0x38] sm:$0xff] %vm20, %v19
    %s29 = scalar_lea.vmem %s0, 64
    %v30 = vld [vmem:[%s29] sm:$0xff]
    %s31 = scalar_lea.vmem %s0, 80
    %v32 = vld [vmem:[%s31] sm:$0xff]
    %v33 = vld [vmem:[%s1] sm:$0xff]
    %v34 = vld [vmem:[%s1 + $0x8] sm:$0xff]
    %v35 = vld [vmem:[%s1 + $0x10] sm:$0xff]
    %v36 = vld [vmem:[%s1 + $0x18] sm:$0xff]
    %v37 = vld [vmem:[%s1 + $0x20] sm:$0x1]
    %v38 = vld [vmem:[#allocation2] sm:$0xff]
    %v39 = vld [vmem:[#allocation2 + $0x8] sm:$0xff]
    %v40 = vld [vmem:[#allocation2 + $0x10] sm:$0xff]
    %v41 = vld [vmem:[#allocation2 + $0x18] sm:$0xff]
    %v42 = vld [vmem:[#allocation2 + $0x20] sm:$0xff]
    %v43 = vld [vmem:[#allocation2 + $0x28] sm:$0xff]
    %v44 = vld [vmem:[#allocation2 + $0x30] sm:$0xff]
    %v45 = vld [vmem:[#allocation2 + $0x38] sm:$0xff]
    %v46 = vlaneseq
    %v47 = vshrl.u32 %v46, 7
    %v48 = vsub.s32 0, %v47
    %v49 = vrot.slane %v37, %v48
    %v51 = vsel %vm20, %v38, 0
    %v54 = vsel %vm20, %v39, 0
    %v57 = vsel %vm20, %v40, 0
    %v60 = vsel %vm20, %v41, 0
    %v63 = vsel %vm20, %v42, 0
    %v66 = vsel %vm20, %v43, 0
    %v69 = vsel %vm20, %v44, 0
    %v72 = vsel %vm20, %v45, 0
    %74 = vmatprep.subr.mxu0 0.0
    %75 = vmatpush1.msra.mxu0 %v33
    %76 = vmatprep.subr.mxu0 0.0
    %77 = vmatpush1.msra.mxu0 %v34
    %78 = vmatprep.subr.mxu0 0.0
    %79 = vmatpush1.msra.mxu0 0.0
    %80 = vmatprep.subr.mxu0 0.0
    %81 = vmatpush1.msra.mxu0 0.0
    %82 = vmatprep.subr.mxu0 0.0
    %83 = vmatpush1.msra.mxu0 0.0
    %84 = vmatprep.subr.mxu0 0.0
    %85 = vmatpush1.msra.mxu0 0.0
    %86 = vmatprep.subr.mxu0 0.0
    %87 = vmatpush1.msra.mxu0 0.0
    %88 = vmatprep.subr.mxu0 0.0
    %89 = vmatpush1.msra.mxu0 0.0
    %90 = vmatprep.subr.mxu0 0.0
    %91 = vmatpush1.msra.mxu0 0.0
    %92 = vmatprep.subr.mxu0 0.0
    %93 = vmatpush1.msra.mxu0 0.0
    %94 = vmatprep.subr.mxu0 0.0
    %95 = vmatpush1.msra.mxu0 0.0
    %96 = vmatprep.subr.mxu0 0.0
    %97 = vmatpush1.msra.mxu0 0.0
    %98 = vmatprep.subr.mxu0 0.0
    %99 = vmatpush1.msra.mxu0 0.0
    %100 = vmatprep.subr.mxu0 0.0
    %101 = vmatpush1.msra.mxu0 0.0
    %102 = vmatprep.subr.mxu0 0.0
    %103 = vmatpush1.msra.mxu0 0.0
    %104 = vmatprep.subr.mxu0 0.0
    %105 = vmatpush1.msra.mxu0 0.0
    %106 = vmatprep.subr.mxu0 0.0
    %107 = vmatpush1.msra.mxu0 0.0
    %108 = vmatprep.subr.mxu0 0.0
    %109 = vmatpush1.msra.mxu0 0.0
    %110 = vmatprep.subr.mxu0 0.0
    %111 = vmatpush1.msra.mxu0 0.0
    %112 = vmatprep.subr.mxu0 0.0
    %113 = vmatpush1.msra.mxu0 0.0
    %114 = vmatprep.subr.mxu0 0.0
    %115 = vmatpush1.msra.mxu0 0.0
    %116 = vmatprep.subr.mxu0 0.0
    %117 = vmatpush1.msra.mxu0 0.0
    %118 = vmatprep.subr.mxu0 0.0
    %119 = vmatpush1.msra.mxu0 0.0
    %120 = vmatprep.subr.mxu0 0.0
    %121 = vmatpush1.msra.mxu0 0.0
    %122 = vmatprep.subr.mxu0 0.0
    %123 = vmatpush1.msra.mxu0 0.0
    %124 = vmatprep.subr.mxu0 0.0
    %125 = vmatpush1.msra.mxu0 0.0
    %126 = vmatprep.subr.mxu0 0.0
    %127 = vmatpush1.msra.mxu0 0.0
    %128 = vmatprep.subr.mxu0 0.0
    %129 = vmatpush1.msra.mxu0 0.0
    %130 = vmatprep.subr.mxu0 0.0
    %131 = vmatpush1.msra.mxu0 0.0
    %132 = vmatprep.subr.mxu0 0.0
    %133 = vmatpush1.msra.mxu0 0.0
    %134 = vmatprep.subr.mxu0 0.0
    %135 = vmatpush1.msra.mxu0 0.0
    %136 = vmatprep.subr.mxu0 0.0
    %137 = vmatpush1.msra.mxu0 0.0
    %138 = vmatprep.mubr.f32.mxu0 0.0
    %139 = vmatmul.mubr.f32.gmra.mrb[0].mxu0 %v51
    %v140 = vpop.f32.mrb[0].mxu0
    %v141 = vadd.f32 %v49, %v140
    %v142 = vpop.f32.mrb[0].mxu0
    %143 = vmatprep.mubr.f32.mxu0 0.0
    %144 = vmatmul.mubr.f32.gmra.mrb[0].mxu0 %v54
    %v145 = vpop.f32.mrb[0].mxu0
    %v146 = vadd.f32 %v49, %v145
    %v147 = vpop.f32.mrb[0].mxu0
    %148 = vmatprep.mubr.f32.mxu0 0.0
    %149 = vmatmul.mubr.f32.gmra.mrb[0].mxu0 %v57
    %v150 = vpop.f32.mrb[0].mxu0
    %v151 = vadd.f32 %v49, %v150
    %v152 = vpop.f32.mrb[0].mxu0
    %153 = vmatprep.mubr.f32.mxu0 0.0
    %154 = vmatmul.mubr.f32.gmra.mrb[0].mxu0 %v60
    %v155 = vpop.f32.mrb[0].mxu0
    %v156 = vadd.f32 %v49, %v155
    %v157 = vpop.f32.mrb[0].mxu0
    %158 = vmatprep.mubr.f32.mxu0 0.0
    %159 = vmatmul.mubr.f32.gmra.mrb[0].mxu0 %v63
    %v160 = vpop.f32.mrb[0].mxu0
    %v161 = vadd.f32 %v49, %v160
    %v162 = vpop.f32.mrb[0].mxu0
    %163 = vmatprep.mubr.f32.mxu0 0.0
    %164 = vmatmul.mubr.f32.gmra.mrb[0].mxu0 %v66
    %v165 = vpop.f32.mrb[0].mxu0
    %v166 = vadd.f32 %v49, %v165
    %v167 = vpop.f32.mrb[0].mxu0
    %168 = vmatprep.mubr.f32.mxu0 0.0
    %169 = vmatmul.mubr.f32.gmra.mrb[0].mxu0 %v69
    %v170 = vpop.f32.mrb[0].mxu0
    %v171 = vadd.f32 %v49, %v170
    %v172 = vpop.f32.mrb[0].mxu0
    %173 = vmatprep.mubr.f32.mxu0 0.0
    %174 = vmatmul.mubr.f32.gmra.mrb[0].mxu0 %v72
    %v175 = vpop.f32.mrb[0].mxu0
    %v176 = vadd.f32 %v49, %v175
    %v177 = vpop.f32.mrb[0].mxu0
    %178 = vdwg.mxu0
    %vm179 = vcmask 523264
    %180 = vst.msk [vmem:[#allocation3] sm:$0xff] %vm179, %v141
    %181 = vst.msk [vmem:[#allocation3 + $0x8] sm:$0xff] %vm179, %v146
    %182 = vst.msk [vmem:[#allocation3 + $0x10] sm:$0xff] %vm179, %v151
    %183 = vst.msk [vmem:[#allocation3 + $0x18] sm:$0xff] %vm179, %v156
    %184 = vst.msk [vmem:[#allocation3 + $0x20] sm:$0xff] %vm179, %v161
    %185 = vst.msk [vmem:[#allocation3 + $0x28] sm:$0xff] %vm179, %v166
    %186 = vst.msk [vmem:[#allocation3 + $0x30] sm:$0xff] %vm179, %v171
    %187 = vst.msk [vmem:[#allocation3 + $0x38] sm:$0xff] %vm179, %v176
    %v188 = vld [vmem:[#allocation3] sm:$0xff]
    %v190 = vsel %vm20, %v30, 0
    %192 = vmatprep.subr.mxu0 0.0
    %193 = vmatpush1.msra.mxu0 %v35
    %194 = vmatprep.subr.mxu0 0.0
    %195 = vmatpush1.msra.mxu0 %v36
    %196 = vmatprep.subr.mxu0 0.0
    %197 = vmatpush1.msra.mxu0 0.0
    %198 = vmatprep.subr.mxu0 0.0
    %199 = vmatpush1.msra.mxu0 0.0
    %200 = vmatprep.subr.mxu0 0.0
    %201 = vmatpush1.msra.mxu0 0.0
    %202 = vmatprep.subr.mxu0 0.0
    %203 = vmatpush1.msra.mxu0 0.0
    %204 = vmatprep.subr.mxu0 0.0
    %205 = vmatpush1.msra.mxu0 0.0
    %206 = vmatprep.subr.mxu0 0.0
    %207 = vmatpush1.msra.mxu0 0.0
    %208 = vmatprep.subr.mxu0 0.0
    %209 = vmatpush1.msra.mxu0 0.0
    %210 = vmatprep.subr.mxu0 0.0
    %211 = vmatpush1.msra.mxu0 0.0
    %212 = vmatprep.subr.mxu0 0.0
    %213 = vmatpush1.msra.mxu0 0.0
    %214 = vmatprep.subr.mxu0 0.0
    %215 = vmatpush1.msra.mxu0 0.0
    %216 = vmatprep.subr.mxu0 0.0
    %217 = vmatpush1.msra.mxu0 0.0
    %218 = vmatprep.subr.mxu0 0.0
    %219 = vmatpush1.msra.mxu0 0.0
    %220 = vmatprep.subr.mxu0 0.0
    %221 = vmatpush1.msra.mxu0 0.0
    %222 = vmatprep.subr.mxu0 0.0
    %223 = vmatpush1.msra.mxu0 0.0
    %224 = vmatprep.subr.mxu0 0.0
    %225 = vmatpush1.msra.mxu0 0.0
    %226 = vmatprep.subr.mxu0 0.0
    %227 = vmatpush1.msra.mxu0 0.0
    %228 = vmatprep.subr.mxu0 0.0
    %229 = vmatpush1.msra.mxu0 0.0
    %230 = vmatprep.subr.mxu0 0.0
    %231 = vmatpush1.msra.mxu0 0.0
    %232 = vmatprep.subr.mxu0 0.0
    %233 = vmatpush1.msra.mxu0 0.0
    %234 = vmatprep.subr.mxu0 0.0
    %235 = vmatpush1.msra.mxu0 0.0
    %236 = vmatprep.subr.mxu0 0.0
    %237 = vmatpush1.msra.mxu0 0.0
    %238 = vmatprep.subr.mxu0 0.0
    %239 = vmatpush1.msra.mxu0 0.0
    %240 = vmatprep.subr.mxu0 0.0
    %241 = vmatpush1.msra.mxu0 0.0
    %242 = vmatprep.subr.mxu0 0.0
    %243 = vmatpush1.msra.mxu0 0.0
    %244 = vmatprep.subr.mxu0 0.0
    %245 = vmatpush1.msra.mxu0 0.0
    %246 = vmatprep.subr.mxu0 0.0
    %247 = vmatpush1.msra.mxu0 0.0
    %248 = vmatprep.subr.mxu0 0.0
    %249 = vmatpush1.msra.mxu0 0.0
    %250 = vmatprep.subr.mxu0 0.0
    %251 = vmatpush1.msra.mxu0 0.0
    %252 = vmatprep.subr.mxu0 0.0
    %253 = vmatpush1.msra.mxu0 0.0
    %254 = vmatprep.subr.mxu0 0.0
    %255 = vmatpush1.msra.mxu0 0.0
    %256 = vmatprep.mubr.f32.mxu0 0.0
    %257 = vmatmul.mubr.f32.gmra.mrb[0].mxu0 %v190
    %v258 = vpop.f32.mrb[0].mxu0
    %v259 = vadd.f32 0.0, %v258
    %v260 = vpop.f32.mrb[0].mxu0
    %261 = vdwg.mxu0
    %v262 = vadd.f32 %v188, %v259
    %v263 = vxor.u32 %v262, 2147483648
    %v264 = vmul.f32 %v263, 1.442695
    %v265 = vpow.pop %v264
    %v266 = vadd.f32 %v265, 1.0
    %v267 = vrcp.pop %v266
    %v268 = vmul.f32 1.0, %v267
    %v269 = vtanh.pop %v262
    %271 = vrot.lane.b32.xlu0 %v32, 16
    %v272 = vpop.permute.xlu0 %271
    %v274 = vmul.f32 %v268, %v272
    %276 = vrot.lane.b32.xlu0 %v269, 80
    %v277 = vpop.permute.xlu0 %276
    %v279 = vmul.f32 %v268, %v277
    %281 = vrot.lane.b32.xlu0 %v279, 16
    %v282 = vpop.permute.xlu0 %281
    %v284 = vadd.f32 %v274, %v282
    %v285 = vtanh.pop %v284
    %287 = vrot.lane.b32.xlu0 %v285, 16
    %v288 = vpop.permute.xlu0 %287
    %v290 = vmul.f32 %v268, %v288
    %292 = vrot.lane.b32.xlu0 %v290, 96
    %v293 = vpop.permute.xlu0 %292
    %295 = vst.msk [vmem:[#allocation2] sm:$0xff] %vm20, %v293
    %s296 = scalar_lea.vmem [#allocation3], 8
    %v297 = vld [vmem:[%s296] sm:$0xff]
    %v298 = vsel %vm20, %v293, 0
    %300 = vmatprep.subr.mxu0 0.0
    %301 = vmatpush1.msra.mxu0 %v35
    %302 = vmatprep.subr.mxu0 0.0
    %303 = vmatpush1.msra.mxu0 %v36
    %304 = vmatprep.subr.mxu0 0.0
    %305 = vmatpush1.msra.mxu0 0.0
    %306 = vmatprep.subr.mxu0 0.0
    %307 = vmatpush1.msra.mxu0 0.0
    %308 = vmatprep.subr.mxu0 0.0
    %309 = vmatpush1.msra.mxu0 0.0
    %310 = vmatprep.subr.mxu0 0.0
    %311 = vmatpush1.msra.mxu0 0.0
    %312 = vmatprep.subr.mxu0 0.0
    %313 = vmatpush1.msra.mxu0 0.0
    %314 = vmatprep.subr.mxu0 0.0
    %315 = vmatpush1.msra.mxu0 0.0
    %316 = vmatprep.subr.mxu0 0.0
    %317 = vmatpush1.msra.mxu0 0.0
    %318 = vmatprep.subr.mxu0 0.0
    %319 = vmatpush1.msra.mxu0 0.0
    %320 = vmatprep.subr.mxu0 0.0
    %321 = vmatpush1.msra.mxu0 0.0
    %322 = vmatprep.subr.mxu0 0.0
    %323 = vmatpush1.msra.mxu0 0.0
    %324 = vmatprep.subr.mxu0 0.0
    %325 = vmatpush1.msra.mxu0 0.0
    %326 = vmatprep.subr.mxu0 0.0
    %327 = vmatpush1.msra.mxu0 0.0
    %328 = vmatprep.subr.mxu0 0.0
    %329 = vmatpush1.msra.mxu0 0.0
    %330 = vmatprep.subr.mxu0 0.0
    %331 = vmatpush1.msra.mxu0 0.0
    %332 = vmatprep.subr.mxu0 0.0
    %333 = vmatpush1.msra.mxu0 0.0
    %334 = vmatprep.subr.mxu0 0.0
    %335 = vmatpush1.msra.mxu0 0.0
    %336 = vmatprep.subr.mxu0 0.0
    %337 = vmatpush1.msra.mxu0 0.0
    %338 = vmatprep.subr.mxu0 0.0
    %339 = vmatpush1.msra.mxu0 0.0
    %340 = vmatprep.subr.mxu0 0.0
    %341 = vmatpush1.msra.mxu0 0.0
    %342 = vmatprep.subr.mxu0 0.0
    %343 = vmatpush1.msra.mxu0 0.0
    %344 = vmatprep.subr.mxu0 0.0
    %345 = vmatpush1.msra.mxu0 0.0
    %346 = vmatprep.subr.mxu0 0.0
    %347 = vmatpush1.msra.mxu0 0.0
    %348 = vmatprep.subr.mxu0 0.0
    %349 = vmatpush1.msra.mxu0 0.0
    %350 = vmatprep.subr.mxu0 0.0
    %351 = vmatpush1.msra.mxu0 0.0
    %352 = vmatprep.subr.mxu0 0.0
    %353 = vmatpush1.msra.mxu0 0.0
    %354 = vmatprep.subr.mxu0 0.0
    %355 = vmatpush1.msra.mxu0 0.0
    %356 = vmatprep.subr.mxu0 0.0
    %357 = vmatpush1.msra.mxu0 0.0
    %358 = vmatprep.subr.mxu0 0.0
    %359 = vmatpush1.msra.mxu0 0.0
    %360 = vmatprep.subr.mxu0 0.0
    %361 = vmatpush1.msra.mxu0 0.0
    %362 = vmatprep.subr.mxu0 0.0
    %363 = vmatpush1.msra.mxu0 0.0
    %364 = vmatprep.mubr.f32.mxu0 0.0
    %365 = vmatmul.mubr.f32.gmra.mrb[0].mxu0 %v298
    %v366 = vpop.f32.mrb[0].mxu0
    %v367 = vadd.f32 0.0, %v366
    %v368 = vpop.f32.mrb[0].mxu0
    %369 = vdwg.mxu0
    %v370 = vadd.f32 %v297, %v367
    %v371 = vxor.u32 %v370, 2147483648
    %v372 = vmul.f32 %v371, 1.442695
    %v373 = vpow.pop %v372
    %v374 = vadd.f32 %v373, 1.0
    %v375 = vrcp.pop %v374
    %v376 = vmul.f32 1.0, %v375
    %v377 = vtanh.pop %v370
    %v378 = vmul.f32 %v376, %v284
    %380 = vrot.lane.b32.xlu0 %v377, 80
    %v381 = vpop.permute.xlu0 %380
    %v383 = vmul.f32 %v376, %v381
    %385 = vrot.lane.b32.xlu0 %v383, 16
    %v386 = vpop.permute.xlu0 %385
    %v388 = vadd.f32 %v378, %v386
    %v389 = vtanh.pop %v388
    %391 = vrot.lane.b32.xlu0 %v389, 16
    %v392 = vpop.permute.xlu0 %391
    %v394 = vmul.f32 %v376, %v392
    %396 = vrot.lane.b32.xlu0 %v394, 96
    %v397 = vpop.permute.xlu0 %396
    %s399 = scalar_lea.vmem [#allocation2], 8
    %400 = vst.msk [vmem:[%s399] sm:$0xff] %vm20, %v397
    %s401 = scalar_lea.vmem [#allocation3], 16
    %v402 = vld [vmem:[%s401] sm:$0xff]
    %v403 = vsel %vm20, %v397, 0
    %405 = vmatprep.subr.mxu0 0.0
    %406 = vmatpush1.msra.mxu0 %v35
    %407 = vmatprep.subr.mxu0 0.0
    %408 = vmatpush1.msra.mxu0 %v36
    %409 = vmatprep.subr.mxu0 0.0
    %410 = vmatpush1.msra.mxu0 0.0
    %411 = vmatprep.subr.mxu0 0.0
    %412 = vmatpush1.msra.mxu0 0.0
    %413 = vmatprep.subr.mxu0 0.0
    %414 = vmatpush1.msra.mxu0 0.0
    %415 = vmatprep.subr.mxu0 0.0
    %416 = vmatpush1.msra.mxu0 0.0
    %417 = vmatprep.subr.mxu0 0.0
    %418 = vmatpush1.msra.mxu0 0.0
    %419 = vmatprep.subr.mxu0 0.0
    %420 = vmatpush1.msra.mxu0 0.0
    %421 = vmatprep.subr.mxu0 0.0
    %422 = vmatpush1.msra.mxu0 0.0
    %423 = vmatprep.subr.mxu0 0.0
    %424 = vmatpush1.msra.mxu0 0.0
    %425 = vmatprep.subr.mxu0 0.0
    %426 = vmatpush1.msra.mxu0 0.0
    %427 = vmatprep.subr.mxu0 0.0
    %428 = vmatpush1.msra.mxu0 0.0
    %429 = vmatprep.subr.mxu0 0.0
    %430 = vmatpush1.msra.mxu0 0.0
    %431 = vmatprep.subr.mxu0 0.0
    %432 = vmatpush1.msra.mxu0 0.0
    %433 = vmatprep.subr.mxu0 0.0
    %434 = vmatpush1.msra.mxu0 0.0
    %435 = vmatprep.subr.mxu0 0.0
    %436 = vmatpush1.msra.mxu0 0.0
    %437 = vmatprep.subr.mxu0 0.0
    %438 = vmatpush1.msra.mxu0 0.0
    %439 = vmatprep.subr.mxu0 0.0
    %440 = vmatpush1.msra.mxu0 0.0
    %441 = vmatprep.subr.mxu0 0.0
    %442 = vmatpush1.msra.mxu0 0.0
    %443 = vmatprep.subr.mxu0 0.0
    %444 = vmatpush1.msra.mxu0 0.0
    %445 = vmatprep.subr.mxu0 0.0
    %446 = vmatpush1.msra.mxu0 0.0
    %447 = vmatprep.subr.mxu0 0.0
    %448 = vmatpush1.msra.mxu0 0.0
    %449 = vmatprep.subr.mxu0 0.0
    %450 = vmatpush1.msra.mxu0 0.0
    %451 = vmatprep.subr.mxu0 0.0
    %452 = vmatpush1.msra.mxu0 0.0
    %453 = vmatprep.subr.mxu0 0.0
    %454 = vmatpush1.msra.mxu0 0.0
    %455 = vmatprep.subr.mxu0 0.0
    %456 = vmatpush1.msra.mxu0 0.0
    %457 = vmatprep.subr.mxu0 0.0
    %458 = vmatpush1.msra.mxu0 0.0
    %459 = vmatprep.subr.mxu0 0.0
    %460 = vmatpush1.msra.mxu0 0.0
    %461 = vmatprep.subr.mxu0 0.0
    %462 = vmatpush1.msra.mxu0 0.0
    %463 = vmatprep.subr.mxu0 0.0
    %464 = vmatpush1.msra.mxu0 0.0
    %465 = vmatprep.subr.mxu0 0.0
    %466 = vmatpush1.msra.mxu0 0.0
    %467 = vmatprep.subr.mxu0 0.0
    %468 = vmatpush1.msra.mxu0 0.0
    %469 = vmatprep.mubr.f32.mxu0 0.0
    %470 = vmatmul.mubr.f32.gmra.mrb[0].mxu0 %v403
    %v471 = vpop.f32.mrb[0].mxu0
    %v472 = vadd.f32 0.0, %v471
    %v473 = vpop.f32.mrb[0].mxu0
    %474 = vdwg.mxu0
    %v475 = vadd.f32 %v402, %v472
    %v476 = vxor.u32 %v475, 2147483648
    %v477 = vmul.f32 %v476, 1.442695
    %v478 = vpow.pop %v477
    %v479 = vadd.f32 %v478, 1.0
    %v480 = vrcp.pop %v479
    %v481 = vmul.f32 1.0, %v480
    %v482 = vtanh.pop %v475
    %v483 = vmul.f32 %v481, %v388
    %485 = vrot.lane.b32.xlu0 %v482, 80
    %v486 = vpop.permute.xlu0 %485
    %v488 = vmul.f32 %v481, %v486
    %490 = vrot.lane.b32.xlu0 %v488, 16
    %v491 = vpop.permute.xlu0 %490
    %v493 = vadd.f32 %v483, %v491
    %v494 = vtanh.pop %v493
    %496 = vrot.lane.b32.xlu0 %v494, 16
    %v497 = vpop.permute.xlu0 %496
    %v499 = vmul.f32 %v481, %v497
    %501 = vrot.lane.b32.xlu0 %v499, 96
    %v502 = vpop.permute.xlu0 %501
    %s504 = scalar_lea.vmem [#allocation2], 16
    %505 = vst.msk [vmem:[%s504] sm:$0xff] %vm20, %v502
    %s506 = scalar_lea.vmem [#allocation3], 24
    %v507 = vld [vmem:[%s506] sm:$0xff]
    %v508 = vsel %vm20, %v502, 0
    %510 = vmatprep.subr.mxu0 0.0
    %511 = vmatpush1.msra.mxu0 %v35
    %512 = vmatprep.subr.mxu0 0.0
    %513 = vmatpush1.msra.mxu0 %v36
    %514 = vmatprep.subr.mxu0 0.0
    %515 = vmatpush1.msra.mxu0 0.0
    %516 = vmatprep.subr.mxu0 0.0
    %517 = vmatpush1.msra.mxu0 0.0
    %518 = vmatprep.subr.mxu0 0.0
    %519 = vmatpush1.msra.mxu0 0.0
    %520 = vmatprep.subr.mxu0 0.0
    %521 = vmatpush1.msra.mxu0 0.0
    %522 = vmatprep.subr.mxu0 0.0
    %523 = vmatpush1.msra.mxu0 0.0
    %524 = vmatprep.subr.mxu0 0.0
    %525 = vmatpush1.msra.mxu0 0.0
    %526 = vmatprep.subr.mxu0 0.0
    %527 = vmatpush1.msra.mxu0 0.0
    %528 = vmatprep.subr.mxu0 0.0
    %529 = vmatpush1.msra.mxu0 0.0
    %530 = vmatprep.subr.mxu0 0.0
    %531 = vmatpush1.msra.mxu0 0.0
    %532 = vmatprep.subr.mxu0 0.0
    %533 = vmatpush1.msra.mxu0 0.0
    %534 = vmatprep.subr.mxu0 0.0
    %535 = vmatpush1.msra.mxu0 0.0
    %536 = vmatprep.subr.mxu0 0.0
    %537 = vmatpush1.msra.mxu0 0.0
    %538 = vmatprep.subr.mxu0 0.0
    %539 = vmatpush1.msra.mxu0 0.0
    %540 = vmatprep.subr.mxu0 0.0
    %541 = vmatpush1.msra.mxu0 0.0
    %542 = vmatprep.subr.mxu0 0.0
    %543 = vmatpush1.msra.mxu0 0.0
    %544 = vmatprep.subr.mxu0 0.0
    %545 = vmatpush1.msra.mxu0 0.0
    %546 = vmatprep.subr.mxu0 0.0
    %547 = vmatpush1.msra.mxu0 0.0
    %548 = vmatprep.subr.mxu0 0.0
    %549 = vmatpush1.msra.mxu0 0.0
    %550 = vmatprep.subr.mxu0 0.0
    %551 = vmatpush1.msra.mxu0 0.0
    %552 = vmatprep.subr.mxu0 0.0
    %553 = vmatpush1.msra.mxu0 0.0
    %554 = vmatprep.subr.mxu0 0.0
    %555 = vmatpush1.msra.mxu0 0.0
    %556 = vmatprep.subr.mxu0 0.0
    %557 = vmatpush1.msra.mxu0 0.0
    %558 = vmatprep.subr.mxu0 0.0
    %559 = vmatpush1.msra.mxu0 0.0
    %560 = vmatprep.subr.mxu0 0.0
    %561 = vmatpush1.msra.mxu0 0.0
    %562 = vmatprep.subr.mxu0 0.0
    %563 = vmatpush1.msra.mxu0 0.0
    %564 = vmatprep.subr.mxu0 0.0
    %565 = vmatpush1.msra.mxu0 0.0
    %566 = vmatprep.subr.mxu0 0.0
    %567 = vmatpush1.msra.mxu0 0.0
    %568 = vmatprep.subr.mxu0 0.0
    %569 = vmatpush1.msra.mxu0 0.0
    %570 = vmatprep.subr.mxu0 0.0
    %571 = vmatpush1.msra.mxu0 0.0
    %572 = vmatprep.subr.mxu0 0.0
    %573 = vmatpush1.msra.mxu0 0.0
    %574 = vmatprep.mubr.f32.mxu0 0.0
    %575 = vmatmul.mubr.f32.gmra.mrb[0].mxu0 %v508
    %v576 = vpop.f32.mrb[0].mxu0
    %v577 = vadd.f32 0.0, %v576
    %v578 = vpop.f32.mrb[0].mxu0
    %579 = vdwg.mxu0
    %v580 = vadd.f32 %v507, %v577
    %v581 = vxor.u32 %v580, 2147483648
    %v582 = vmul.f32 %v581, 1.442695
    %v583 = vpow.pop %v582
    %v584 = vadd.f32 %v583, 1.0
    %v585 = vrcp.pop %v584
    %v586 = vmul.f32 1.0, %v585
    %v587 = vtanh.pop %v580
    %v588 = vmul.f32 %v586, %v493
    %590 = vrot.lane.b32.xlu0 %v587, 80
    %v591 = vpop.permute.xlu0 %590
    %v593 = vmul.f32 %v586, %v591
    %595 = vrot.lane.b32.xlu0 %v593, 16
    %v596 = vpop.permute.xlu0 %595
    %v598 = vadd.f32 %v588, %v596
    %v599 = vtanh.pop %v598
    %601 = vrot.lane.b32.xlu0 %v599, 16
    %v602 = vpop.permute.xlu0 %601
    %v604 = vmul.f32 %v586, %v602
    %606 = vrot.lane.b32.xlu0 %v604, 96
    %v607 = vpop.permute.xlu0 %606
    %s609 = scalar_lea.vmem [#allocation2], 24
    %610 = vst.msk [vmem:[%s609] sm:$0xff] %vm20, %v607
    %s611 = scalar_lea.vmem [#allocation3], 32
    %v612 = vld [vmem:[%s611] sm:$0xff]
    %v613 = vsel %vm20, %v607, 0
    %615 = vmatprep.subr.mxu0 0.0
    %616 = vmatpush1.msra.mxu0 %v35
    %617 = vmatprep.subr.mxu0 0.0
    %618 = vmatpush1.msra.mxu0 %v36
    %619 = vmatprep.subr.mxu0 0.0
    %620 = vmatpush1.msra.mxu0 0.0
    %621 = vmatprep.subr.mxu0 0.0
    %622 = vmatpush1.msra.mxu0 0.0
    %623 = vmatprep.subr.mxu0 0.0
    %624 = vmatpush1.msra.mxu0 0.0
    %625 = vmatprep.subr.mxu0 0.0
    %626 = vmatpush1.msra.mxu0 0.0
    %627 = vmatprep.subr.mxu0 0.0
    %628 = vmatpush1.msra.mxu0 0.0
    %629 = vmatprep.subr.mxu0 0.0
    %630 = vmatpush1.msra.mxu0 0.0
    %631 = vmatprep.subr.mxu0 0.0
    %632 = vmatpush1.msra.mxu0 0.0
    %633 = vmatprep.subr.mxu0 0.0
    %634 = vmatpush1.msra.mxu0 0.0
    %635 = vmatprep.subr.mxu0 0.0
    %636 = vmatpush1.msra.mxu0 0.0
    %637 = vmatprep.subr.mxu0 0.0
    %638 = vmatpush1.msra.mxu0 0.0
    %639 = vmatprep.subr.mxu0 0.0
    %640 = vmatpush1.msra.mxu0 0.0
    %641 = vmatprep.subr.mxu0 0.0
    %642 = vmatpush1.msra.mxu0 0.0
    %643 = vmatprep.subr.mxu0 0.0
    %644 = vmatpush1.msra.mxu0 0.0
    %645 = vmatprep.subr.mxu0 0.0
    %646 = vmatpush1.msra.mxu0 0.0
    %647 = vmatprep.subr.mxu0 0.0
    %648 = vmatpush1.msra.mxu0 0.0
    %649 = vmatprep.subr.mxu0 0.0
    %650 = vmatpush1.msra.mxu0 0.0
    %651 = vmatprep.subr.mxu0 0.0
    %652 = vmatpush1.msra.mxu0 0.0
    %653 = vmatprep.subr.mxu0 0.0
    %654 = vmatpush1.msra.mxu0 0.0
    %655 = vmatprep.subr.mxu0 0.0
    %656 = vmatpush1.msra.mxu0 0.0
    %657 = vmatprep.subr.mxu0 0.0
    %658 = vmatpush1.msra.mxu0 0.0
    %659 = vmatprep.subr.mxu0 0.0
    %660 = vmatpush1.msra.mxu0 0.0
    %661 = vmatprep.subr.mxu0 0.0
    %662 = vmatpush1.msra.mxu0 0.0
    %663 = vmatprep.subr.mxu0 0.0
    %664 = vmatpush1.msra.mxu0 0.0
    %665 = vmatprep.subr.mxu0 0.0
    %666 = vmatpush1.msra.mxu0 0.0
    %667 = vmatprep.subr.mxu0 0.0
    %668 = vmatpush1.msra.mxu0 0.0
    %669 = vmatprep.subr.mxu0 0.0
    %670 = vmatpush1.msra.mxu0 0.0
    %671 = vmatprep.subr.mxu0 0.0
    %672 = vmatpush1.msra.mxu0 0.0
    %673 = vmatprep.subr.mxu0 0.0
    %674 = vmatpush1.msra.mxu0 0.0
    %675 = vmatprep.subr.mxu0 0.0
    %676 = vmatpush1.msra.mxu0 0.0
    %677 = vmatprep.subr.mxu0 0.0
    %678 = vmatpush1.msra.mxu0 0.0
    %679 = vmatprep.mubr.f32.mxu0 0.0
    %680 = vmatmul.mubr.f32.gmra.mrb[0].mxu0 %v613
    %v681 = vpop.f32.mrb[0].mxu0
    %v682 = vadd.f32 0.0, %v681
    %v683 = vpop.f32.mrb[0].mxu0
    %684 = vdwg.mxu0
    %v685 = vadd.f32 %v612, %v682
    %v686 = vxor.u32 %v685, 2147483648
    %v687 = vmul.f32 %v686, 1.442695
    %v688 = vpow.pop %v687
    %v689 = vadd.f32 %v688, 1.0
    %v690 = vrcp.pop %v689
    %v691 = vmul.f32 1.0, %v690
    %v692 = vtanh.pop %v685
    %v693 = vmul.f32 %v691, %v598
    %695 = vrot.lane.b32.xlu0 %v692, 80
    %v696 = vpop.permute.xlu0 %695
    %v698 = vmul.f32 %v691, %v696
    %700 = vrot.lane.b32.xlu0 %v698, 16
    %v701 = vpop.permute.xlu0 %700
    %v703 = vadd.f32 %v693, %v701
    %v704 = vtanh.pop %v703
    %706 = vrot.lane.b32.xlu0 %v704, 16
    %v707 = vpop.permute.xlu0 %706
    %v709 = vmul.f32 %v691, %v707
    %711 = vrot.lane.b32.xlu0 %v709, 96
    %v712 = vpop.permute.xlu0 %711
    %s714 = scalar_lea.vmem [#allocation2], 32
    %715 = vst.msk [vmem:[%s714] sm:$0xff] %vm20, %v712
    %s716 = scalar_lea.vmem [#allocation3], 40
    %v717 = vld [vmem:[%s716] sm:$0xff]
    %v718 = vsel %vm20, %v712, 0
    %720 = vmatprep.subr.mxu0 0.0
    %721 = vmatpush1.msra.mxu0 %v35
    %722 = vmatprep.subr.mxu0 0.0
    %723 = vmatpush1.msra.mxu0 %v36
    %724 = vmatprep.subr.mxu0 0.0
    %725 = vmatpush1.msra.mxu0 0.0
    %726 = vmatprep.subr.mxu0 0.0
    %727 = vmatpush1.msra.mxu0 0.0
    %728 = vmatprep.subr.mxu0 0.0
    %729 = vmatpush1.msra.mxu0 0.0
    %730 = vmatprep.subr.mxu0 0.0
    %731 = vmatpush1.msra.mxu0 0.0
    %732 = vmatprep.subr.mxu0 0.0
    %733 = vmatpush1.msra.mxu0 0.0
    %734 = vmatprep.subr.mxu0 0.0
    %735 = vmatpush1.msra.mxu0 0.0
    %736 = vmatprep.subr.mxu0 0.0
    %737 = vmatpush1.msra.mxu0 0.0
    %738 = vmatprep.subr.mxu0 0.0
    %739 = vmatpush1.msra.mxu0 0.0
    %740 = vmatprep.subr.mxu0 0.0
    %741 = vmatpush1.msra.mxu0 0.0
    %742 = vmatprep.subr.mxu0 0.0
    %743 = vmatpush1.msra.mxu0 0.0
    %744 = vmatprep.subr.mxu0 0.0
    %745 = vmatpush1.msra.mxu0 0.0
    %746 = vmatprep.subr.mxu0 0.0
    %747 = vmatpush1.msra.mxu0 0.0
    %748 = vmatprep.subr.mxu0 0.0
    %749 = vmatpush1.msra.mxu0 0.0
    %750 = vmatprep.subr.mxu0 0.0
    %751 = vmatpush1.msra.mxu0 0.0
    %752 = vmatprep.subr.mxu0 0.0
    %753 = vmatpush1.msra.mxu0 0.0
    %754 = vmatprep.subr.mxu0 0.0
    %755 = vmatpush1.msra.mxu0 0.0
    %756 = vmatprep.subr.mxu0 0.0
    %757 = vmatpush1.msra.mxu0 0.0
    %758 = vmatprep.subr.mxu0 0.0
    %759 = vmatpush1.msra.mxu0 0.0
    %760 = vmatprep.subr.mxu0 0.0
    %761 = vmatpush1.msra.mxu0 0.0
    %762 = vmatprep.subr.mxu0 0.0
    %763 = vmatpush1.msra.mxu0 0.0
    %764 = vmatprep.subr.mxu0 0.0
    %765 = vmatpush1.msra.mxu0 0.0
    %766 = vmatprep.subr.mxu0 0.0
    %767 = vmatpush1.msra.mxu0 0.0
    %768 = vmatprep.subr.mxu0 0.0
    %769 = vmatpush1.msra.mxu0 0.0
    %770 = vmatprep.subr.mxu0 0.0
    %771 = vmatpush1.msra.mxu0 0.0
    %772 = vmatprep.subr.mxu0 0.0
    %773 = vmatpush1.msra.mxu0 0.0
    %774 = vmatprep.subr.mxu0 0.0
    %775 = vmatpush1.msra.mxu0 0.0
    %776 = vmatprep.subr.mxu0 0.0
    %777 = vmatpush1.msra.mxu0 0.0
    %778 = vmatprep.subr.mxu0 0.0
    %779 = vmatpush1.msra.mxu0 0.0
    %780 = vmatprep.subr.mxu0 0.0
    %781 = vmatpush1.msra.mxu0 0.0
    %782 = vmatprep.subr.mxu0 0.0
    %783 = vmatpush1.msra.mxu0 0.0
    %784 = vmatprep.mubr.f32.mxu0 0.0
    %785 = vmatmul.mubr.f32.gmra.mrb[0].mxu0 %v718
    %v786 = vpop.f32.mrb[0].mxu0
    %v787 = vadd.f32 0.0, %v786
    %v788 = vpop.f32.mrb[0].mxu0
    %789 = vdwg.mxu0
    %v790 = vadd.f32 %v717, %v787
    %v791 = vxor.u32 %v790, 2147483648
    %v792 = vmul.f32 %v791, 1.442695
    %v793 = vpow.pop %v792
    %v794 = vadd.f32 %v793, 1.0
    %v795 = vrcp.pop %v794
    %v796 = vmul.f32 1.0, %v795
    %v797 = vtanh.pop %v790
    %v798 = vmul.f32 %v796, %v703
    %800 = vrot.lane.b32.xlu0 %v797, 80
    %v801 = vpop.permute.xlu0 %800
    %v803 = vmul.f32 %v796, %v801
    %805 = vrot.lane.b32.xlu0 %v803, 16
    %v806 = vpop.permute.xlu0 %805
    %v808 = vadd.f32 %v798, %v806
    %v809 = vtanh.pop %v808
    %811 = vrot.lane.b32.xlu0 %v809, 16
    %v812 = vpop.permute.xlu0 %811
    %v814 = vmul.f32 %v796, %v812
    %816 = vrot.lane.b32.xlu0 %v814, 96
    %v817 = vpop.permute.xlu0 %816
    %s819 = scalar_lea.vmem [#allocation2], 40
    %820 = vst.msk [vmem:[%s819] sm:$0xff] %vm20, %v817
    %s821 = scalar_lea.vmem [#allocation3], 48
    %v822 = vld [vmem:[%s821] sm:$0xff]
    %v823 = vsel %vm20, %v817, 0
    %825 = vmatprep.subr.mxu0 0.0
    %826 = vmatpush1.msra.mxu0 %v35
    %827 = vmatprep.subr.mxu0 0.0
    %828 = vmatpush1.msra.mxu0 %v36
    %829 = vmatprep.subr.mxu0 0.0
    %830 = vmatpush1.msra.mxu0 0.0
    %831 = vmatprep.subr.mxu0 0.0
    %832 = vmatpush1.msra.mxu0 0.0
    %833 = vmatprep.subr.mxu0 0.0
    %834 = vmatpush1.msra.mxu0 0.0
    %835 = vmatprep.subr.mxu0 0.0
    %836 = vmatpush1.msra.mxu0 0.0
    %837 = vmatprep.subr.mxu0 0.0
    %838 = vmatpush1.msra.mxu0 0.0
    %839 = vmatprep.subr.mxu0 0.0
    %840 = vmatpush1.msra.mxu0 0.0
    %841 = vmatprep.subr.mxu0 0.0
    %842 = vmatpush1.msra.mxu0 0.0
    %843 = vmatprep.subr.mxu0 0.0
    %844 = vmatpush1.msra.mxu0 0.0
    %845 = vmatprep.subr.mxu0 0.0
    %846 = vmatpush1.msra.mxu0 0.0
    %847 = vmatprep.subr.mxu0 0.0
    %848 = vmatpush1.msra.mxu0 0.0
    %849 = vmatprep.subr.mxu0 0.0
    %850 = vmatpush1.msra.mxu0 0.0
    %851 = vmatprep.subr.mxu0 0.0
    %852 = vmatpush1.msra.mxu0 0.0
    %853 = vmatprep.subr.mxu0 0.0
    %854 = vmatpush1.msra.mxu0 0.0
    %855 = vmatprep.subr.mxu0 0.0
    %856 = vmatpush1.msra.mxu0 0.0
    %857 = vmatprep.subr.mxu0 0.0
    %858 = vmatpush1.msra.mxu0 0.0
    %859 = vmatprep.subr.mxu0 0.0
    %860 = vmatpush1.msra.mxu0 0.0
    %861 = vmatprep.subr.mxu0 0.0
    %862 = vmatpush1.msra.mxu0 0.0
    %863 = vmatprep.subr.mxu0 0.0
    %864 = vmatpush1.msra.mxu0 0.0
    %865 = vmatprep.subr.mxu0 0.0
    %866 = vmatpush1.msra.mxu0 0.0
    %867 = vmatprep.subr.mxu0 0.0
    %868 = vmatpush1.msra.mxu0 0.0
    %869 = vmatprep.subr.mxu0 0.0
    %870 = vmatpush1.msra.mxu0 0.0
    %871 = vmatprep.subr.mxu0 0.0
    %872 = vmatpush1.msra.mxu0 0.0
    %873 = vmatprep.subr.mxu0 0.0
    %874 = vmatpush1.msra.mxu0 0.0
    %875 = vmatprep.subr.mxu0 0.0
    %876 = vmatpush1.msra.mxu0 0.0
    %877 = vmatprep.subr.mxu0 0.0
    %878 = vmatpush1.msra.mxu0 0.0
    %879 = vmatprep.subr.mxu0 0.0
    %880 = vmatpush1.msra.mxu0 0.0
    %881 = vmatprep.subr.mxu0 0.0
    %882 = vmatpush1.msra.mxu0 0.0
    %883 = vmatprep.subr.mxu0 0.0
    %884 = vmatpush1.msra.mxu0 0.0
    %885 = vmatprep.subr.mxu0 0.0
    %886 = vmatpush1.msra.mxu0 0.0
    %887 = vmatprep.subr.mxu0 0.0
    %888 = vmatpush1.msra.mxu0 0.0
    %889 = vmatprep.mubr.f32.mxu0 0.0
    %890 = vmatmul.mubr.f32.gmra.mrb[0].mxu0 %v823
    %v891 = vpop.f32.mrb[0].mxu0
    %v892 = vadd.f32 0.0, %v891
    %v893 = vpop.f32.mrb[0].mxu0
    %894 = vdwg.mxu0
    %v895 = vadd.f32 %v822, %v892
    %v896 = vxor.u32 %v895, 2147483648
    %v897 = vmul.f32 %v896, 1.442695
    %v898 = vpow.pop %v897
    %v899 = vadd.f32 %v898, 1.0
    %v900 = vrcp.pop %v899
    %v901 = vmul.f32 1.0, %v900
    %v902 = vtanh.pop %v895
    %v903 = vmul.f32 %v901, %v808
    %905 = vrot.lane.b32.xlu0 %v902, 80
    %v906 = vpop.permute.xlu0 %905
    %v908 = vmul.f32 %v901, %v906
    %910 = vrot.lane.b32.xlu0 %v908, 16
    %v911 = vpop.permute.xlu0 %910
    %v913 = vadd.f32 %v903, %v911
    %v914 = vtanh.pop %v913
    %916 = vrot.lane.b32.xlu0 %v914, 16
    %v917 = vpop.permute.xlu0 %916
    %v919 = vmul.f32 %v901, %v917
    %921 = vrot.lane.b32.xlu0 %v919, 96
    %v922 = vpop.permute.xlu0 %921
    %s924 = scalar_lea.vmem [#allocation2], 48
    %925 = vst.msk [vmem:[%s924] sm:$0xff] %vm20, %v922
    %s926 = scalar_lea.vmem [#allocation3], 56
    %v927 = vld [vmem:[%s926] sm:$0xff]
    %v928 = vsel %vm20, %v922, 0
    %930 = vmatprep.subr.mxu0 0.0
    %931 = vmatpush1.msra.mxu0 %v35
    %932 = vmatprep.subr.mxu0 0.0
    %933 = vmatpush1.msra.mxu0 %v36
    %934 = vmatprep.subr.mxu0 0.0
    %935 = vmatpush1.msra.mxu0 0.0
    %936 = vmatprep.subr.mxu0 0.0
    %937 = vmatpush1.msra.mxu0 0.0
    %938 = vmatprep.subr.mxu0 0.0
    %939 = vmatpush1.msra.mxu0 0.0
    %940 = vmatprep.subr.mxu0 0.0
    %941 = vmatpush1.msra.mxu0 0.0
    %942 = vmatprep.subr.mxu0 0.0
    %943 = vmatpush1.msra.mxu0 0.0
    %944 = vmatprep.subr.mxu0 0.0
    %945 = vmatpush1.msra.mxu0 0.0
    %946 = vmatprep.subr.mxu0 0.0
    %947 = vmatpush1.msra.mxu0 0.0
    %948 = vmatprep.subr.mxu0 0.0
    %949 = vmatpush1.msra.mxu0 0.0
    %950 = vmatprep.subr.mxu0 0.0
    %951 = vmatpush1.msra.mxu0 0.0
    %952 = vmatprep.subr.mxu0 0.0
    %953 = vmatpush1.msra.mxu0 0.0
    %954 = vmatprep.subr.mxu0 0.0
    %955 = vmatpush1.msra.mxu0 0.0
    %956 = vmatprep.subr.mxu0 0.0
    %957 = vmatpush1.msra.mxu0 0.0
    %958 = vmatprep.subr.mxu0 0.0
    %959 = vmatpush1.msra.mxu0 0.0
    %960 = vmatprep.subr.mxu0 0.0
    %961 = vmatpush1.msra.mxu0 0.0
    %962 = vmatprep.subr.mxu0 0.0
    %963 = vmatpush1.msra.mxu0 0.0
    %964 = vmatprep.subr.mxu0 0.0
    %965 = vmatpush1.msra.mxu0 0.0
    %966 = vmatprep.subr.mxu0 0.0
    %967 = vmatpush1.msra.mxu0 0.0
    %968 = vmatprep.subr.mxu0 0.0
    %969 = vmatpush1.msra.mxu0 0.0
    %970 = vmatprep.subr.mxu0 0.0
    %971 = vmatpush1.msra.mxu0 0.0
    %972 = vmatprep.subr.mxu0 0.0
    %973 = vmatpush1.msra.mxu0 0.0
    %974 = vmatprep.subr.mxu0 0.0
    %975 = vmatpush1.msra.mxu0 0.0
    %976 = vmatprep.subr.mxu0 0.0
    %977 = vmatpush1.msra.mxu0 0.0
    %978 = vmatprep.subr.mxu0 0.0
    %979 = vmatpush1.msra.mxu0 0.0
    %980 = vmatprep.subr.mxu0 0.0
    %981 = vmatpush1.msra.mxu0 0.0
    %982 = vmatprep.subr.mxu0 0.0
    %983 = vmatpush1.msra.mxu0 0.0
    %984 = vmatprep.subr.mxu0 0.0
    %985 = vmatpush1.msra.mxu0 0.0
    %986 = vmatprep.subr.mxu0 0.0
    %987 = vmatpush1.msra.mxu0 0.0
    %988 = vmatprep.subr.mxu0 0.0
    %989 = vmatpush1.msra.mxu0 0.0
    %990 = vmatprep.subr.mxu0 0.0
    %991 = vmatpush1.msra.mxu0 0.0
    %992 = vmatprep.subr.mxu0 0.0
    %993 = vmatpush1.msra.mxu0 0.0
    %994 = vmatprep.mubr.f32.mxu0 0.0
    %995 = vmatmul.mubr.f32.gmra.mrb[0].mxu0 %v928
    %v996 = vpop.f32.mrb[0].mxu0
    %v997 = vadd.f32 0.0, %v996
    %v998 = vpop.f32.mrb[0].mxu0
    %999 = vdwg.mxu0
    %v1000 = vadd.f32 %v927, %v997
    %v1001 = vxor.u32 %v1000, 2147483648
    %v1002 = vmul.f32 %v1001, 1.442695
    %v1003 = vpow.pop %v1002
    %v1004 = vadd.f32 %v1003, 1.0
    %v1005 = vrcp.pop %v1004
    %v1006 = vmul.f32 1.0, %v1005
    %v1007 = vtanh.pop %v1000
    %v1008 = vmul.f32 %v1006, %v913
    %1010 = vrot.lane.b32.xlu0 %v1007, 80
    %v1011 = vpop.permute.xlu0 %1010
    %v1013 = vmul.f32 %v1006, %v1011
    %1015 = vrot.lane.b32.xlu0 %v1013, 16
    %v1016 = vpop.permute.xlu0 %1015
    %v1018 = vadd.f32 %v1008, %v1016
    %v1019 = vtanh.pop %v1018
    %1021 = vrot.lane.b32.xlu0 %v1019, 16
    %v1022 = vpop.permute.xlu0 %1021
    %v1024 = vmul.f32 %v1006, %v1022
    %1026 = vrot.lane.b32.xlu0 %v1024, 96
    %v1027 = vpop.permute.xlu0 %1026
    %s1029 = scalar_lea.vmem [#allocation2], 56
    %1030 = vst.msk [vmem:[%s1029] sm:$0xff] %vm20, %v1027
    %s1031 = scalar_lea.vmem %s0, 72
    %v1032 = vld [vmem:[%s1031] sm:$0xff]
    %s1033 = scalar_lea.vmem %s0, 88
    %v1034 = vld [vmem:[%s1033] sm:$0xff]
    %v1035 = vld [vmem:[%s1 + $0x28] sm:$0xff]
    %v1036 = vld [vmem:[%s1 + $0x30] sm:$0xff]
    %v1037 = vld [vmem:[%s1 + $0x38] sm:$0xff]
    %v1038 = vld [vmem:[%s1 + $0x40] sm:$0xff]
    %v1039 = vld [vmem:[%s1 + $0x48] sm:$0x1]
    %v1040 = vld [vmem:[#allocation2] sm:$0xff]
    %v1041 = vld [vmem:[#allocation2 + $0x8] sm:$0xff]
    %v1042 = vld [vmem:[#allocation2 + $0x10] sm:$0xff]
    %v1043 = vld [vmem:[#allocation2 + $0x18] sm:$0xff]
    %v1044 = vld [vmem:[#allocation2 + $0x20] sm:$0xff]
    %v1045 = vld [vmem:[#allocation2 + $0x28] sm:$0xff]
    %v1046 = vld [vmem:[#allocation2 + $0x30] sm:$0xff]
    %v1047 = vld [vmem:[#allocation2 + $0x38] sm:$0xff]
    %v1048 = vlaneseq
    %v1049 = vshrl.u32 %v1048, 7
    %v1050 = vsub.s32 0, %v1049
    %v1051 = vrot.slane %v1039, %v1050
    %v1053 = vsel %vm20, %v1040, 0
    %v1056 = vsel %vm20, %v1041, 0
    %v1059 = vsel %vm20, %v1042, 0
    %v1062 = vsel %vm20, %v1043, 0
    %v1065 = vsel %vm20, %v1044, 0
    %v1068 = vsel %vm20, %v1045, 0
    %v1071 = vsel %vm20, %v1046, 0
    %v1074 = vsel %vm20, %v1047, 0
    %1076 = vmatprep.subr.mxu0 0.0
    %1077 = vmatpush1.msra.mxu0 %v1035
    %1078 = vmatprep.subr.mxu0 0.0
    %1079 = vmatpush1.msra.mxu0 %v1036
    %1080 = vmatprep.subr.mxu0 0.0
    %1081 = vmatpush1.msra.mxu0 0.0
    %1082 = vmatprep.subr.mxu0 0.0
    %1083 = vmatpush1.msra.mxu0 0.0
    %1084 = vmatprep.subr.mxu0 0.0
    %1085 = vmatpush1.msra.mxu0 0.0
    %1086 = vmatprep.subr.mxu0 0.0
    %1087 = vmatpush1.msra.mxu0 0.0
    %1088 = vmatprep.subr.mxu0 0.0
    %1089 = vmatpush1.msra.mxu0 0.0
    %1090 = vmatprep.subr.mxu0 0.0
    %1091 = vmatpush1.msra.mxu0 0.0
    %1092 = vmatprep.subr.mxu0 0.0
    %1093 = vmatpush1.msra.mxu0 0.0
    %1094 = vmatprep.subr.mxu0 0.0
    %1095 = vmatpush1.msra.mxu0 0.0
    %1096 = vmatprep.subr.mxu0 0.0
    %1097 = vmatpush1.msra.mxu0 0.0
    %1098 = vmatprep.subr.mxu0 0.0
    %1099 = vmatpush1.msra.mxu0 0.0
    %1100 = vmatprep.subr.mxu0 0.0
    %1101 = vmatpush1.msra.mxu0 0.0
    %1102 = vmatprep.subr.mxu0 0.0
    %1103 = vmatpush1.msra.mxu0 0.0
    %1104 = vmatprep.subr.mxu0 0.0
    %1105 = vmatpush1.msra.mxu0 0.0
    %1106 = vmatprep.subr.mxu0 0.0
    %1107 = vmatpush1.msra.mxu0 0.0
    %1108 = vmatprep.subr.mxu0 0.0
    %1109 = vmatpush1.msra.mxu0 0.0
    %1110 = vmatprep.subr.mxu0 0.0
    %1111 = vmatpush1.msra.mxu0 0.0
    %1112 = vmatprep.subr.mxu0 0.0
    %1113 = vmatpush1.msra.mxu0 0.0
    %1114 = vmatprep.subr.mxu0 0.0
    %1115 = vmatpush1.msra.mxu0 0.0
    %1116 = vmatprep.subr.mxu0 0.0
    %1117 = vmatpush1.msra.mxu0 0.0
    %1118 = vmatprep.subr.mxu0 0.0
    %1119 = vmatpush1.msra.mxu0 0.0
    %1120 = vmatprep.subr.mxu0 0.0
    %1121 = vmatpush1.msra.mxu0 0.0
    %1122 = vmatprep.subr.mxu0 0.0
    %1123 = vmatpush1.msra.mxu0 0.0
    %1124 = vmatprep.subr.mxu0 0.0
    %1125 = vmatpush1.msra.mxu0 0.0
    %1126 = vmatprep.subr.mxu0 0.0
    %1127 = vmatpush1.msra.mxu0 0.0
    %1128 = vmatprep.subr.mxu0 0.0
    %1129 = vmatpush1.msra.mxu0 0.0
    %1130 = vmatprep.subr.mxu0 0.0
    %1131 = vmatpush1.msra.mxu0 0.0
    %1132 = vmatprep.subr.mxu0 0.0
    %1133 = vmatpush1.msra.mxu0 0.0
    %1134 = vmatprep.subr.mxu0 0.0
    %1135 = vmatpush1.msra.mxu0 0.0
    %1136 = vmatprep.subr.mxu0 0.0
    %1137 = vmatpush1.msra.mxu0 0.0
    %1138 = vmatprep.subr.mxu0 0.0
    %1139 = vmatpush1.msra.mxu0 0.0
    %1140 = vmatprep.mubr.f32.mxu0 0.0
    %1141 = vmatmul.mubr.f32.gmra.mrb[0].mxu0 %v1053
    %v1142 = vpop.f32.mrb[0].mxu0
    %v1143 = vadd.f32 %v1051, %v1142
    %v1144 = vpop.f32.mrb[0].mxu0
    %1145 = vmatprep.mubr.f32.mxu0 0.0
    %1146 = vmatmul.mubr.f32.gmra.mrb[0].mxu0 %v1056
    %v1147 = vpop.f32.mrb[0].mxu0
    %v1148 = vadd.f32 %v1051, %v1147
    %v1149 = vpop.f32.mrb[0].mxu0
    %1150 = vmatprep.mubr.f32.mxu0 0.0
    %1151 = vmatmul.mubr.f32.gmra.mrb[0].mxu0 %v1059
    %v1152 = vpop.f32.mrb[0].mxu0
    %v1153 = vadd.f32 %v1051, %v1152
    %v1154 = vpop.f32.mrb[0].mxu0
    %1155 = vmatprep.mubr.f32.mxu0 0.0
    %1156 = vmatmul.mubr.f32.gmra.mrb[0].mxu0 %v1062
    %v1157 = vpop.f32.mrb[0].mxu0
    %v1158 = vadd.f32 %v1051, %v1157
    %v1159 = vpop.f32.mrb[0].mxu0
    %1160 = vmatprep.mubr.f32.mxu0 0.0
    %1161 = vmatmul.mubr.f32.gmra.mrb[0].mxu0 %v1065
    %v1162 = vpop.f32.mrb[0].mxu0
    %v1163 = vadd.f32 %v1051, %v1162
    %v1164 = vpop.f32.mrb[0].mxu0
    %1165 = vmatprep.mubr.f32.mxu0 0.0
    %1166 = vmatmul.mubr.f32.gmra.mrb[0].mxu0 %v1068
    %v1167 = vpop.f32.mrb[0].mxu0
    %v1168 = vadd.f32 %v1051, %v1167
    %v1169 = vpop.f32.mrb[0].mxu0
    %1170 = vmatprep.mubr.f32.mxu0 0.0
    %1171 = vmatmul.mubr.f32.gmra.mrb[0].mxu0 %v1071
    %v1172 = vpop.f32.mrb[0].mxu0
    %v1173 = vadd.f32 %v1051, %v1172
    %v1174 = vpop.f32.mrb[0].mxu0
    %1175 = vmatprep.mubr.f32.mxu0 0.0
    %1176 = vmatmul.mubr.f32.gmra.mrb[0].mxu0 %v1074
    %v1177 = vpop.f32.mrb[0].mxu0
    %v1178 = vadd.f32 %v1051, %v1177
    %v1179 = vpop.f32.mrb[0].mxu0
    %1180 = vdwg.mxu0
    %1181 = vst.msk [vmem:[#allocation3] sm:$0xff] %vm179, %v1143
    %1182 = vst.msk [vmem:[#allocation3 + $0x8] sm:$0xff] %vm179, %v1148
    %1183 = vst.msk [vmem:[#allocation3 + $0x10] sm:$0xff] %vm179, %v1153
    %1184 = vst.msk [vmem:[#allocation3 + $0x18] sm:$0xff] %vm179, %v1158
    %1185 = vst.msk [vmem:[#allocation3 + $0x20] sm:$0xff] %vm179, %v1163
    %1186 = vst.msk [vmem:[#allocation3 + $0x28] sm:$0xff] %vm179, %v1168
    %1187 = vst.msk [vmem:[#allocation3 + $0x30] sm:$0xff] %vm179, %v1173
    %1188 = vst.msk [vmem:[#allocation3 + $0x38] sm:$0xff] %vm179, %v1178
    %v1189 = vld [vmem:[#allocation3] sm:$0xff]
    %v1191 = vsel %vm20, %v1032, 0
    %1193 = vmatprep.subr.mxu0 0.0
    %1194 = vmatpush1.msra.mxu0 %v1037
    %1195 = vmatprep.subr.mxu0 0.0
    %1196 = vmatpush1.msra.mxu0 %v1038
    %1197 = vmatprep.subr.mxu0 0.0
    %1198 = vmatpush1.msra.mxu0 0.0
    %1199 = vmatprep.subr.mxu0 0.0
    %1200 = vmatpush1.msra.mxu0 0.0
    %1201 = vmatprep.subr.mxu0 0.0
    %1202 = vmatpush1.msra.mxu0 0.0
    %1203 = vmatprep.subr.mxu0 0.0
    %1204 = vmatpush1.msra.mxu0 0.0
    %1205 = vmatprep.subr.mxu0 0.0
    %1206 = vmatpush1.msra.mxu0 0.0
    %1207 = vmatprep.subr.mxu0 0.0
    %1208 = vmatpush1.msra.mxu0 0.0
    %1209 = vmatprep.subr.mxu0 0.0
    %1210 = vmatpush1.msra.mxu0 0.0
    %1211 = vmatprep.subr.mxu0 0.0
    %1212 = vmatpush1.msra.mxu0 0.0
    %1213 = vmatprep.subr.mxu0 0.0
    %1214 = vmatpush1.msra.mxu0 0.0
    %1215 = vmatprep.subr.mxu0 0.0
    %1216 = vmatpush1.msra.mxu0 0.0
    %1217 = vmatprep.subr.mxu0 0.0
    %1218 = vmatpush1.msra.mxu0 0.0
    %1219 = vmatprep.subr.mxu0 0.0
    %1220 = vmatpush1.msra.mxu0 0.0
    %1221 = vmatprep.subr.mxu0 0.0
    %1222 = vmatpush1.msra.mxu0 0.0
    %1223 = vmatprep.subr.mxu0 0.0
    %1224 = vmatpush1.msra.mxu0 0.0
    %1225 = vmatprep.subr.mxu0 0.0
    %1226 = vmatpush1.msra.mxu0 0.0
    %1227 = vmatprep.subr.mxu0 0.0
    %1228 = vmatpush1.msra.mxu0 0.0
    %1229 = vmatprep.subr.mxu0 0.0
    %1230 = vmatpush1.msra.mxu0 0.0
    %1231 = vmatprep.subr.mxu0 0.0
    %1232 = vmatpush1.msra.mxu0 0.0
    %1233 = vmatprep.subr.mxu0 0.0
    %1234 = vmatpush1.msra.mxu0 0.0
    %1235 = vmatprep.subr.mxu0 0.0
    %1236 = vmatpush1.msra.mxu0 0.0
    %1237 = vmatprep.subr.mxu0 0.0
    %1238 = vmatpush1.msra.mxu0 0.0
    %1239 = vmatprep.subr.mxu0 0.0
    %1240 = vmatpush1.msra.mxu0 0.0
    %1241 = vmatprep.subr.mxu0 0.0
    %1242 = vmatpush1.msra.mxu0 0.0
    %1243 = vmatprep.subr.mxu0 0.0
    %1244 = vmatpush1.msra.mxu0 0.0
    %1245 = vmatprep.subr.mxu0 0.0
    %1246 = vmatpush1.msra.mxu0 0.0
    %1247 = vmatprep.subr.mxu0 0.0
    %1248 = vmatpush1.msra.mxu0 0.0
    %1249 = vmatprep.subr.mxu0 0.0
    %1250 = vmatpush1.msra.mxu0 0.0
    %1251 = vmatprep.subr.mxu0 0.0
    %1252 = vmatpush1.msra.mxu0 0.0
    %1253 = vmatprep.subr.mxu0 0.0
    %1254 = vmatpush1.msra.mxu0 0.0
    %1255 = vmatprep.subr.mxu0 0.0
    %1256 = vmatpush1.msra.mxu0 0.0
    %1257 = vmatprep.mubr.f32.mxu0 0.0
    %1258 = vmatmul.mubr.f32.gmra.mrb[0].mxu0 %v1191
    %v1259 = vpop.f32.mrb[0].mxu0
    %v1260 = vadd.f32 0.0, %v1259
    %v1261 = vpop.f32.mrb[0].mxu0
    %1262 = vdwg.mxu0
    %v1263 = vadd.f32 %v1189, %v1260
    %v1264 = vxor.u32 %v1263, 2147483648
    %v1265 = vmul.f32 %v1264, 1.442695
    %v1266 = vpow.pop %v1265
    %v1267 = vadd.f32 %v1266, 1.0
    %v1268 = vrcp.pop %v1267
    %v1269 = vmul.f32 1.0, %v1268
    %v1270 = vtanh.pop %v1263
    %1272 = vrot.lane.b32.xlu0 %v1034, 16
    %v1273 = vpop.permute.xlu0 %1272
    %v1275 = vmul.f32 %v1269, %v1273
    %1277 = vrot.lane.b32.xlu0 %v1270, 80
    %v1278 = vpop.permute.xlu0 %1277
    %v1280 = vmul.f32 %v1269, %v1278
    %1282 = vrot.lane.b32.xlu0 %v1280, 16
    %v1283 = vpop.permute.xlu0 %1282
    %v1285 = vadd.f32 %v1275, %v1283
    %v1286 = vtanh.pop %v1285
    %1288 = vrot.lane.b32.xlu0 %v1286, 16
    %v1289 = vpop.permute.xlu0 %1288
    %v1291 = vmul.f32 %v1269, %v1289
    %1293 = vrot.lane.b32.xlu0 %v1291, 96
    %v1294 = vpop.permute.xlu0 %1293
    %1296 = vst.msk [vmem:[#allocation2] sm:$0xff] %vm20, %v1294
    %v1297 = vld [vmem:[%s296] sm:$0xff]
    %v1298 = vsel %vm20, %v1294, 0
    %1300 = vmatprep.subr.mxu0 0.0
    %1301 = vmatpush1.msra.mxu0 %v1037
    %1302 = vmatprep.subr.mxu0 0.0
    %1303 = vmatpush1.msra.mxu0 %v1038
    %1304 = vmatprep.subr.mxu0 0.0
    %1305 = vmatpush1.msra.mxu0 0.0
    %1306 = vmatprep.subr.mxu0 0.0
    %1307 = vmatpush1.msra.mxu0 0.0
    %1308 = vmatprep.subr.mxu0 0.0
    %1309 = vmatpush1.msra.mxu0 0.0
    %1310 = vmatprep.subr.mxu0 0.0
    %1311 = vmatpush1.msra.mxu0 0.0
    %1312 = vmatprep.subr.mxu0 0.0
    %1313 = vmatpush1.msra.mxu0 0.0
    %1314 = vmatprep.subr.mxu0 0.0
    %1315 = vmatpush1.msra.mxu0 0.0
    %1316 = vmatprep.subr.mxu0 0.0
    %1317 = vmatpush1.msra.mxu0 0.0
    %1318 = vmatprep.subr.mxu0 0.0
    %1319 = vmatpush1.msra.mxu0 0.0
    %1320 = vmatprep.subr.mxu0 0.0
    %1321 = vmatpush1.msra.mxu0 0.0
    %1322 = vmatprep.subr.mxu0 0.0
    %1323 = vmatpush1.msra.mxu0 0.0
    %1324 = vmatprep.subr.mxu0 0.0
    %1325 = vmatpush1.msra.mxu0 0.0
    %1326 = vmatprep.subr.mxu0 0.0
    %1327 = vmatpush1.msra.mxu0 0.0
    %1328 = vmatprep.subr.mxu0 0.0
    %1329 = vmatpush1.msra.mxu0 0.0
    %1330 = vmatprep.subr.mxu0 0.0
    %1331 = vmatpush1.msra.mxu0 0.0
    %1332 = vmatprep.subr.mxu0 0.0
    %1333 = vmatpush1.msra.mxu0 0.0
    %1334 = vmatprep.subr.mxu0 0.0
    %1335 = vmatpush1.msra.mxu0 0.0
    %1336 = vmatprep.subr.mxu0 0.0
    %1337 = vmatpush1.msra.mxu0 0.0
    %1338 = vmatprep.subr.mxu0 0.0
    %1339 = vmatpush1.msra.mxu0 0.0
    %1340 = vmatprep.subr.mxu0 0.0
    %1341 = vmatpush1.msra.mxu0 0.0
    %1342 = vmatprep.subr.mxu0 0.0
    %1343 = vmatpush1.msra.mxu0 0.0
    %1344 = vmatprep.subr.mxu0 0.0
    %1345 = vmatpush1.msra.mxu0 0.0
    %1346 = vmatprep.subr.mxu0 0.0
    %1347 = vmatpush1.msra.mxu0 0.0
    %1348 = vmatprep.subr.mxu0 0.0
    %1349 = vmatpush1.msra.mxu0 0.0
    %1350 = vmatprep.subr.mxu0 0.0
    %1351 = vmatpush1.msra.mxu0 0.0
    %1352 = vmatprep.subr.mxu0 0.0
    %1353 = vmatpush1.msra.mxu0 0.0
    %1354 = vmatprep.subr.mxu0 0.0
    %1355 = vmatpush1.msra.mxu0 0.0
    %1356 = vmatprep.subr.mxu0 0.0
    %1357 = vmatpush1.msra.mxu0 0.0
    %1358 = vmatprep.subr.mxu0 0.0
    %1359 = vmatpush1.msra.mxu0 0.0
    %1360 = vmatprep.subr.mxu0 0.0
    %1361 = vmatpush1.msra.mxu0 0.0
    %1362 = vmatprep.subr.mxu0 0.0
    %1363 = vmatpush1.msra.mxu0 0.0
    %1364 = vmatprep.mubr.f32.mxu0 0.0
    %1365 = vmatmul.mubr.f32.gmra.mrb[0].mxu0 %v1298
    %v1366 = vpop.f32.mrb[0].mxu0
    %v1367 = vadd.f32 0.0, %v1366
    %v1368 = vpop.f32.mrb[0].mxu0
    %1369 = vdwg.mxu0
    %v1370 = vadd.f32 %v1297, %v1367
    %v1371 = vxor.u32 %v1370, 2147483648
    %v1372 = vmul.f32 %v1371, 1.442695
    %v1373 = vpow.pop %v1372
    %v1374 = vadd.f32 %v1373, 1.0
    %v1375 = vrcp.pop %v1374
    %v1376 = vmul.f32 1.0, %v1375
    %v1377 = vtanh.pop %v1370
    %v1378 = vmul.f32 %v1376, %v1285
    %1380 = vrot.lane.b32.xlu0 %v1377, 80
    %v1381 = vpop.permute.xlu0 %1380
    %v1383 = vmul.f32 %v1376, %v1381
    %1385 = vrot.lane.b32.xlu0 %v1383, 16
    %v1386 = vpop.permute.xlu0 %1385
    %v1388 = vadd.f32 %v1378, %v1386
    %v1389 = vtanh.pop %v1388
    %1391 = vrot.lane.b32.xlu0 %v1389, 16
    %v1392 = vpop.permute.xlu0 %1391
    %v1394 = vmul.f32 %v1376, %v1392
    %1396 = vrot.lane.b32.xlu0 %v1394, 96
    %v1397 = vpop.permute.xlu0 %1396
    %1399 = vst.msk [vmem:[%s399] sm:$0xff] %vm20, %v1397
    %v1400 = vld [vmem:[%s401] sm:$0xff]
    %v1401 = vsel %vm20, %v1397, 0
    %1403 = vmatprep.subr.mxu0 0.0
    %1404 = vmatpush1.msra.mxu0 %v1037
    %1405 = vmatprep.subr.mxu0 0.0
    %1406 = vmatpush1.msra.mxu0 %v1038
    %1407 = vmatprep.subr.mxu0 0.0
    %1408 = vmatpush1.msra.mxu0 0.0
    %1409 = vmatprep.subr.mxu0 0.0
    %1410 = vmatpush1.msra.mxu0 0.0
    %1411 = vmatprep.subr.mxu0 0.0
    %1412 = vmatpush1.msra.mxu0 0.0
    %1413 = vmatprep.subr.mxu0 0.0
    %1414 = vmatpush1.msra.mxu0 0.0
    %1415 = vmatprep.subr.mxu0 0.0
    %1416 = vmatpush1.msra.mxu0 0.0
    %1417 = vmatprep.subr.mxu0 0.0
    %1418 = vmatpush1.msra.mxu0 0.0
    %1419 = vmatprep.subr.mxu0 0.0
    %1420 = vmatpush1.msra.mxu0 0.0
    %1421 = vmatprep.subr.mxu0 0.0
    %1422 = vmatpush1.msra.mxu0 0.0
    %1423 = vmatprep.subr.mxu0 0.0
    %1424 = vmatpush1.msra.mxu0 0.0
    %1425 = vmatprep.subr.mxu0 0.0
    %1426 = vmatpush1.msra.mxu0 0.0
    %1427 = vmatprep.subr.mxu0 0.0
    %1428 = vmatpush1.msra.mxu0 0.0
    %1429 = vmatprep.subr.mxu0 0.0
    %1430 = vmatpush1.msra.mxu0 0.0
    %1431 = vmatprep.subr.mxu0 0.0
    %1432 = vmatpush1.msra.mxu0 0.0
    %1433 = vmatprep.subr.mxu0 0.0
    %1434 = vmatpush1.msra.mxu0 0.0
    %1435 = vmatprep.subr.mxu0 0.0
    %1436 = vmatpush1.msra.mxu0 0.0
    %1437 = vmatprep.subr.mxu0 0.0
    %1438 = vmatpush1.msra.mxu0 0.0
    %1439 = vmatprep.subr.mxu0 0.0
    %1440 = vmatpush1.msra.mxu0 0.0
    %1441 = vmatprep.subr.mxu0 0.0
    %1442 = vmatpush1.msra.mxu0 0.0
    %1443 = vmatprep.subr.mxu0 0.0
    %1444 = vmatpush1.msra.mxu0 0.0
    %1445 = vmatprep.subr.mxu0 0.0
    %1446 = vmatpush1.msra.mxu0 0.0
    %1447 = vmatprep.subr.mxu0 0.0
    %1448 = vmatpush1.msra.mxu0 0.0
    %1449 = vmatprep.subr.mxu0 0.0
    %1450 = vmatpush1.msra.mxu0 0.0
    %1451 = vmatprep.subr.mxu0 0.0
    %1452 = vmatpush1.msra.mxu0 0.0
    %1453 = vmatprep.subr.mxu0 0.0
    %1454 = vmatpush1.msra.mxu0 0.0
    %1455 = vmatprep.subr.mxu0 0.0
    %1456 = vmatpush1.msra.mxu0 0.0
    %1457 = vmatprep.subr.mxu0 0.0
    %1458 = vmatpush1.msra.mxu0 0.0
    %1459 = vmatprep.subr.mxu0 0.0
    %1460 = vmatpush1.msra.mxu0 0.0
    %1461 = vmatprep.subr.mxu0 0.0
    %1462 = vmatpush1.msra.mxu0 0.0
    %1463 = vmatprep.subr.mxu0 0.0
    %1464 = vmatpush1.msra.mxu0 0.0
    %1465 = vmatprep.subr.mxu0 0.0
    %1466 = vmatpush1.msra.mxu0 0.0
    %1467 = vmatprep.mubr.f32.mxu0 0.0
    %1468 = vmatmul.mubr.f32.gmra.mrb[0].mxu0 %v1401
    %v1469 = vpop.f32.mrb[0].mxu0
    %v1470 = vadd.f32 0.0, %v1469
    %v1471 = vpop.f32.mrb[0].mxu0
    %1472 = vdwg.mxu0
    %v1473 = vadd.f32 %v1400, %v1470
    %v1474 = vxor.u32 %v1473, 2147483648
    %v1475 = vmul.f32 %v1474, 1.442695
    %v1476 = vpow.pop %v1475
    %v1477 = vadd.f32 %v1476, 1.0
    %v1478 = vrcp.pop %v1477
    %v1479 = vmul.f32 1.0, %v1478
    %v1480 = vtanh.pop %v1473
    %v1481 = vmul.f32 %v1479, %v1388
    %1483 = vrot.lane.b32.xlu0 %v1480, 80
    %v1484 = vpop.permute.xlu0 %1483
    %v1486 = vmul.f32 %v1479, %v1484
    %1488 = vrot.lane.b32.xlu0 %v1486, 16
    %v1489 = vpop.permute.xlu0 %1488
    %v1491 = vadd.f32 %v1481, %v1489
    %v1492 = vtanh.pop %v1491
    %1494 = vrot.lane.b32.xlu0 %v1492, 16
    %v1495 = vpop.permute.xlu0 %1494
    %v1497 = vmul.f32 %v1479, %v1495
    %1499 = vrot.lane.b32.xlu0 %v1497, 96
    %v1500 = vpop.permute.xlu0 %1499
    %1502 = vst.msk [vmem:[%s504] sm:$0xff] %vm20, %v1500
    %v1503 = vld [vmem:[%s506] sm:$0xff]
    %v1504 = vsel %vm20, %v1500, 0
    %1506 = vmatprep.subr.mxu0 0.0
    %1507 = vmatpush1.msra.mxu0 %v1037
    %1508 = vmatprep.subr.mxu0 0.0
    %1509 = vmatpush1.msra.mxu0 %v1038
    %1510 = vmatprep.subr.mxu0 0.0
    %1511 = vmatpush1.msra.mxu0 0.0
    %1512 = vmatprep.subr.mxu0 0.0
    %1513 = vmatpush1.msra.mxu0 0.0
    %1514 = vmatprep.subr.mxu0 0.0
    %1515 = vmatpush1.msra.mxu0 0.0
    %1516 = vmatprep.subr.mxu0 0.0
    %1517 = vmatpush1.msra.mxu0 0.0
    %1518 = vmatprep.subr.mxu0 0.0
    %1519 = vmatpush1.msra.mxu0 0.0
    %1520 = vmatprep.subr.mxu0 0.0
    %1521 = vmatpush1.msra.mxu0 0.0
    %1522 = vmatprep.subr.mxu0 0.0
    %1523 = vmatpush1.msra.mxu0 0.0
    %1524 = vmatprep.subr.mxu0 0.0
    %1525 = vmatpush1.msra.mxu0 0.0
    %1526 = vmatprep.subr.mxu0 0.0
    %1527 = vmatpush1.msra.mxu0 0.0
    %1528 = vmatprep.subr.mxu0 0.0
    %1529 = vmatpush1.msra.mxu0 0.0
    %1530 = vmatprep.subr.mxu0 0.0
    %1531 = vmatpush1.msra.mxu0 0.0
    %1532 = vmatprep.subr.mxu0 0.0
    %1533 = vmatpush1.msra.mxu0 0.0
    %1534 = vmatprep.subr.mxu0 0.0
    %1535 = vmatpush1.msra.mxu0 0.0
    %1536 = vmatprep.subr.mxu0 0.0
    %1537 = vmatpush1.msra.mxu0 0.0
    %1538 = vmatprep.subr.mxu0 0.0
    %1539 = vmatpush1.msra.mxu0 0.0
    %1540 = vmatprep.subr.mxu0 0.0
    %1541 = vmatpush1.msra.mxu0 0.0
    %1542 = vmatprep.subr.mxu0 0.0
    %1543 = vmatpush1.msra.mxu0 0.0
    %1544 = vmatprep.subr.mxu0 0.0
    %1545 = vmatpush1.msra.mxu0 0.0
    %1546 = vmatprep.subr.mxu0 0.0
    %1547 = vmatpush1.msra.mxu0 0.0
    %1548 = vmatprep.subr.mxu0 0.0
    %1549 = vmatpush1.msra.mxu0 0.0
    %1550 = vmatprep.subr.mxu0 0.0
    %1551 = vmatpush1.msra.mxu0 0.0
    %1552 = vmatprep.subr.mxu0 0.0
    %1553 = vmatpush1.msra.mxu0 0.0
    %1554 = vmatprep.subr.mxu0 0.0
    %1555 = vmatpush1.msra.mxu0 0.0
    %1556 = vmatprep.subr.mxu0 0.0
    %1557 = vmatpush1.msra.mxu0 0.0
    %1558 = vmatprep.subr.mxu0 0.0
    %1559 = vmatpush1.msra.mxu0 0.0
    %1560 = vmatprep.subr.mxu0 0.0
    %1561 = vmatpush1.msra.mxu0 0.0
    %1562 = vmatprep.subr.mxu0 0.0
    %1563 = vmatpush1.msra.mxu0 0.0
    %1564 = vmatprep.subr.mxu0 0.0
    %1565 = vmatpush1.msra.mxu0 0.0
    %1566 = vmatprep.subr.mxu0 0.0
    %1567 = vmatpush1.msra.mxu0 0.0
    %1568 = vmatprep.subr.mxu0 0.0
    %1569 = vmatpush1.msra.mxu0 0.0
    %1570 = vmatprep.mubr.f32.mxu0 0.0
    %1571 = vmatmul.mubr.f32.gmra.mrb[0].mxu0 %v1504
    %v1572 = vpop.f32.mrb[0].mxu0
    %v1573 = vadd.f32 0.0, %v1572
    %v1574 = vpop.f32.mrb[0].mxu0
    %1575 = vdwg.mxu0
    %v1576 = vadd.f32 %v1503, %v1573
    %v1577 = vxor.u32 %v1576, 2147483648
    %v1578 = vmul.f32 %v1577, 1.442695
    %v1579 = vpow.pop %v1578
    %v1580 = vadd.f32 %v1579, 1.0
    %v1581 = vrcp.pop %v1580
    %v1582 = vmul.f32 1.0, %v1581
    %v1583 = vtanh.pop %v1576
    %v1584 = vmul.f32 %v1582, %v1491
    %1586 = vrot.lane.b32.xlu0 %v1583, 80
    %v1587 = vpop.permute.xlu0 %1586
    %v1589 = vmul.f32 %v1582, %v1587
    %1591 = vrot.lane.b32.xlu0 %v1589, 16
    %v1592 = vpop.permute.xlu0 %1591
    %v1594 = vadd.f32 %v1584, %v1592
    %v1595 = vtanh.pop %v1594
    %1597 = vrot.lane.b32.xlu0 %v1595, 16
    %v1598 = vpop.permute.xlu0 %1597
    %v1600 = vmul.f32 %v1582, %v1598
    %1602 = vrot.lane.b32.xlu0 %v1600, 96
    %v1603 = vpop.permute.xlu0 %1602
    %1605 = vst.msk [vmem:[%s609] sm:$0xff] %vm20, %v1603
    %v1606 = vld [vmem:[%s611] sm:$0xff]
    %v1607 = vsel %vm20, %v1603, 0
    %1609 = vmatprep.subr.mxu0 0.0
    %1610 = vmatpush1.msra.mxu0 %v1037
    %1611 = vmatprep.subr.mxu0 0.0
    %1612 = vmatpush1.msra.mxu0 %v1038
    %1613 = vmatprep.subr.mxu0 0.0
    %1614 = vmatpush1.msra.mxu0 0.0
    %1615 = vmatprep.subr.mxu0 0.0
    %1616 = vmatpush1.msra.mxu0 0.0
    %1617 = vmatprep.subr.mxu0 0.0
    %1618 = vmatpush1.msra.mxu0 0.0
    %1619 = vmatprep.subr.mxu0 0.0
    %1620 = vmatpush1.msra.mxu0 0.0
    %1621 = vmatprep.subr.mxu0 0.0
    %1622 = vmatpush1.msra.mxu0 0.0
    %1623 = vmatprep.subr.mxu0 0.0
    %1624 = vmatpush1.msra.mxu0 0.0
    %1625 = vmatprep.subr.mxu0 0.0
    %1626 = vmatpush1.msra.mxu0 0.0
    %1627 = vmatprep.subr.mxu0 0.0
    %1628 = vmatpush1.msra.mxu0 0.0
    %1629 = vmatprep.subr.mxu0 0.0
    %1630 = vmatpush1.msra.mxu0 0.0
    %1631 = vmatprep.subr.mxu0 0.0
    %1632 = vmatpush1.msra.mxu0 0.0
    %1633 = vmatprep.subr.mxu0 0.0
    %1634 = vmatpush1.msra.mxu0 0.0
    %1635 = vmatprep.subr.mxu0 0.0
    %1636 = vmatpush1.msra.mxu0 0.0
    %1637 = vmatprep.subr.mxu0 0.0
    %1638 = vmatpush1.msra.mxu0 0.0
    %1639 = vmatprep.subr.mxu0 0.0
    %1640 = vmatpush1.msra.mxu0 0.0
    %1641 = vmatprep.subr.mxu0 0.0
    %1642 = vmatpush1.msra.mxu0 0.0
    %1643 = vmatprep.subr.mxu0 0.0
    %1644 = vmatpush1.msra.mxu0 0.0
    %1645 = vmatprep.subr.mxu0 0.0
    %1646 = vmatpush1.msra.mxu0 0.0
    %1647 = vmatprep.subr.mxu0 0.0
    %1648 = vmatpush1.msra.mxu0 0.0
    %1649 = vmatprep.subr.mxu0 0.0
    %1650 = vmatpush1.msra.mxu0 0.0
    %1651 = vmatprep.subr.mxu0 0.0
    %1652 = vmatpush1.msra.mxu0 0.0
    %1653 = vmatprep.subr.mxu0 0.0
    %1654 = vmatpush1.msra.mxu0 0.0
    %1655 = vmatprep.subr.mxu0 0.0
    %1656 = vmatpush1.msra.mxu0 0.0
    %1657 = vmatprep.subr.mxu0 0.0
    %1658 = vmatpush1.msra.mxu0 0.0
    %1659 = vmatprep.subr.mxu0 0.0
    %1660 = vmatpush1.msra.mxu0 0.0
    %1661 = vmatprep.subr.mxu0 0.0
    %1662 = vmatpush1.msra.mxu0 0.0
    %1663 = vmatprep.subr.mxu0 0.0
    %1664 = vmatpush1.msra.mxu0 0.0
    %1665 = vmatprep.subr.mxu0 0.0
    %1666 = vmatpush1.msra.mxu0 0.0
    %1667 = vmatprep.subr.mxu0 0.0
    %1668 = vmatpush1.msra.mxu0 0.0
    %1669 = vmatprep.subr.mxu0 0.0
    %1670 = vmatpush1.msra.mxu0 0.0
    %1671 = vmatprep.subr.mxu0 0.0
    %1672 = vmatpush1.msra.mxu0 0.0
    %1673 = vmatprep.mubr.f32.mxu0 0.0
    %1674 = vmatmul.mubr.f32.gmra.mrb[0].mxu0 %v1607
    %v1675 = vpop.f32.mrb[0].mxu0
    %v1676 = vadd.f32 0.0, %v1675
    %v1677 = vpop.f32.mrb[0].mxu0
    %1678 = vdwg.mxu0
    %v1679 = vadd.f32 %v1606, %v1676
    %v1680 = vxor.u32 %v1679, 2147483648
    %v1681 = vmul.f32 %v1680, 1.442695
    %v1682 = vpow.pop %v1681
    %v1683 = vadd.f32 %v1682, 1.0
    %v1684 = vrcp.pop %v1683
    %v1685 = vmul.f32 1.0, %v1684
    %v1686 = vtanh.pop %v1679
    %v1687 = vmul.f32 %v1685, %v1594
    %1689 = vrot.lane.b32.xlu0 %v1686, 80
    %v1690 = vpop.permute.xlu0 %1689
    %v1692 = vmul.f32 %v1685, %v1690
    %1694 = vrot.lane.b32.xlu0 %v1692, 16
    %v1695 = vpop.permute.xlu0 %1694
    %v1697 = vadd.f32 %v1687, %v1695
    %v1698 = vtanh.pop %v1697
    %1700 = vrot.lane.b32.xlu0 %v1698, 16
    %v1701 = vpop.permute.xlu0 %1700
    %v1703 = vmul.f32 %v1685, %v1701
    %1705 = vrot.lane.b32.xlu0 %v1703, 96
    %v1706 = vpop.permute.xlu0 %1705
    %1708 = vst.msk [vmem:[%s714] sm:$0xff] %vm20, %v1706
    %v1709 = vld [vmem:[%s716] sm:$0xff]
    %v1710 = vsel %vm20, %v1706, 0
    %1712 = vmatprep.subr.mxu0 0.0
    %1713 = vmatpush1.msra.mxu0 %v1037
    %1714 = vmatprep.subr.mxu0 0.0
    %1715 = vmatpush1.msra.mxu0 %v1038
    %1716 = vmatprep.subr.mxu0 0.0
    %1717 = vmatpush1.msra.mxu0 0.0
    %1718 = vmatprep.subr.mxu0 0.0
    %1719 = vmatpush1.msra.mxu0 0.0
    %1720 = vmatprep.subr.mxu0 0.0
    %1721 = vmatpush1.msra.mxu0 0.0
    %1722 = vmatprep.subr.mxu0 0.0
    %1723 = vmatpush1.msra.mxu0 0.0
    %1724 = vmatprep.subr.mxu0 0.0
    %1725 = vmatpush1.msra.mxu0 0.0
    %1726 = vmatprep.subr.mxu0 0.0
    %1727 = vmatpush1.msra.mxu0 0.0
    %1728 = vmatprep.subr.mxu0 0.0
    %1729 = vmatpush1.msra.mxu0 0.0
    %1730 = vmatprep.subr.mxu0 0.0
    %1731 = vmatpush1.msra.mxu0 0.0
    %1732 = vmatprep.subr.mxu0 0.0
    %1733 = vmatpush1.msra.mxu0 0.0
    %1734 = vmatprep.subr.mxu0 0.0
    %1735 = vmatpush1.msra.mxu0 0.0
    %1736 = vmatprep.subr.mxu0 0.0
    %1737 = vmatpush1.msra.mxu0 0.0
    %1738 = vmatprep.subr.mxu0 0.0
    %1739 = vmatpush1.msra.mxu0 0.0
    %1740 = vmatprep.subr.mxu0 0.0
    %1741 = vmatpush1.msra.mxu0 0.0
    %1742 = vmatprep.subr.mxu0 0.0
    %1743 = vmatpush1.msra.mxu0 0.0
    %1744 = vmatprep.subr.mxu0 0.0
    %1745 = vmatpush1.msra.mxu0 0.0
    %1746 = vmatprep.subr.mxu0 0.0
    %1747 = vmatpush1.msra.mxu0 0.0
    %1748 = vmatprep.subr.mxu0 0.0
    %1749 = vmatpush1.msra.mxu0 0.0
    %1750 = vmatprep.subr.mxu0 0.0
    %1751 = vmatpush1.msra.mxu0 0.0
    %1752 = vmatprep.subr.mxu0 0.0
    %1753 = vmatpush1.msra.mxu0 0.0
    %1754 = vmatprep.subr.mxu0 0.0
    %1755 = vmatpush1.msra.mxu0 0.0
    %1756 = vmatprep.subr.mxu0 0.0
    %1757 = vmatpush1.msra.mxu0 0.0
    %1758 = vmatprep.subr.mxu0 0.0
    %1759 = vmatpush1.msra.mxu0 0.0
    %1760 = vmatprep.subr.mxu0 0.0
    %1761 = vmatpush1.msra.mxu0 0.0
    %1762 = vmatprep.subr.mxu0 0.0
    %1763 = vmatpush1.msra.mxu0 0.0
    %1764 = vmatprep.subr.mxu0 0.0
    %1765 = vmatpush1.msra.mxu0 0.0
    %1766 = vmatprep.subr.mxu0 0.0
    %1767 = vmatpush1.msra.mxu0 0.0
    %1768 = vmatprep.subr.mxu0 0.0
    %1769 = vmatpush1.msra.mxu0 0.0
    %1770 = vmatprep.subr.mxu0 0.0
    %1771 = vmatpush1.msra.mxu0 0.0
    %1772 = vmatprep.subr.mxu0 0.0
    %1773 = vmatpush1.msra.mxu0 0.0
    %1774 = vmatprep.subr.mxu0 0.0
    %1775 = vmatpush1.msra.mxu0 0.0
    %1776 = vmatprep.mubr.f32.mxu0 0.0
    %1777 = vmatmul.mubr.f32.gmra.mrb[0].mxu0 %v1710
    %v1778 = vpop.f32.mrb[0].mxu0
    %v1779 = vadd.f32 0.0, %v1778
    %v1780 = vpop.f32.mrb[0].mxu0
    %1781 = vdwg.mxu0
    %v1782 = vadd.f32 %v1709, %v1779
    %v1783 = vxor.u32 %v1782, 2147483648
    %v1784 = vmul.f32 %v1783, 1.442695
    %v1785 = vpow.pop %v1784
    %v1786 = vadd.f32 %v1785, 1.0
    %v1787 = vrcp.pop %v1786
    %v1788 = vmul.f32 1.0, %v1787
    %v1789 = vtanh.pop %v1782
    %v1790 = vmul.f32 %v1788, %v1697
    %1792 = vrot.lane.b32.xlu0 %v1789, 80
    %v1793 = vpop.permute.xlu0 %1792
    %v1795 = vmul.f32 %v1788, %v1793
    %1797 = vrot.lane.b32.xlu0 %v1795, 16
    %v1798 = vpop.permute.xlu0 %1797
    %v1800 = vadd.f32 %v1790, %v1798
    %v1801 = vtanh.pop %v1800
    %1803 = vrot.lane.b32.xlu0 %v1801, 16
    %v1804 = vpop.permute.xlu0 %1803
    %v1806 = vmul.f32 %v1788, %v1804
    %1808 = vrot.lane.b32.xlu0 %v1806, 96
    %v1809 = vpop.permute.xlu0 %1808
    %1811 = vst.msk [vmem:[%s819] sm:$0xff] %vm20, %v1809
    %v1812 = vld [vmem:[%s821] sm:$0xff]
    %v1813 = vsel %vm20, %v1809, 0
    %1815 = vmatprep.subr.mxu0 0.0
    %1816 = vmatpush1.msra.mxu0 %v1037
    %1817 = vmatprep.subr.mxu0 0.0
    %1818 = vmatpush1.msra.mxu0 %v1038
    %1819 = vmatprep.subr.mxu0 0.0
    %1820 = vmatpush1.msra.mxu0 0.0
    %1821 = vmatprep.subr.mxu0 0.0
    %1822 = vmatpush1.msra.mxu0 0.0
    %1823 = vmatprep.subr.mxu0 0.0
    %1824 = vmatpush1.msra.mxu0 0.0
    %1825 = vmatprep.subr.mxu0 0.0
    %1826 = vmatpush1.msra.mxu0 0.0
    %1827 = vmatprep.subr.mxu0 0.0
    %1828 = vmatpush1.msra.mxu0 0.0
    %1829 = vmatprep.subr.mxu0 0.0
    %1830 = vmatpush1.msra.mxu0 0.0
    %1831 = vmatprep.subr.mxu0 0.0
    %1832 = vmatpush1.msra.mxu0 0.0
    %1833 = vmatprep.subr.mxu0 0.0
    %1834 = vmatpush1.msra.mxu0 0.0
    %1835 = vmatprep.subr.mxu0 0.0
    %1836 = vmatpush1.msra.mxu0 0.0
    %1837 = vmatprep.subr.mxu0 0.0
    %1838 = vmatpush1.msra.mxu0 0.0
    %1839 = vmatprep.subr.mxu0 0.0
    %1840 = vmatpush1.msra.mxu0 0.0
    %1841 = vmatprep.subr.mxu0 0.0
    %1842 = vmatpush1.msra.mxu0 0.0
    %1843 = vmatprep.subr.mxu0 0.0
    %1844 = vmatpush1.msra.mxu0 0.0
    %1845 = vmatprep.subr.mxu0 0.0
    %1846 = vmatpush1.msra.mxu0 0.0
    %1847 = vmatprep.subr.mxu0 0.0
    %1848 = vmatpush1.msra.mxu0 0.0
    %1849 = vmatprep.subr.mxu0 0.0
    %1850 = vmatpush1.msra.mxu0 0.0
    %1851 = vmatprep.subr.mxu0 0.0
    %1852 = vmatpush1.msra.mxu0 0.0
    %1853 = vmatprep.subr.mxu0 0.0
    %1854 = vmatpush1.msra.mxu0 0.0
    %1855 = vmatprep.subr.mxu0 0.0
    %1856 = vmatpush1.msra.mxu0 0.0
    %1857 = vmatprep.subr.mxu0 0.0
    %1858 = vmatpush1.msra.mxu0 0.0
    %1859 = vmatprep.subr.mxu0 0.0
    %1860 = vmatpush1.msra.mxu0 0.0
    %1861 = vmatprep.subr.mxu0 0.0
    %1862 = vmatpush1.msra.mxu0 0.0
    %1863 = vmatprep.subr.mxu0 0.0
    %1864 = vmatpush1.msra.mxu0 0.0
    %1865 = vmatprep.subr.mxu0 0.0
    %1866 = vmatpush1.msra.mxu0 0.0
    %1867 = vmatprep.subr.mxu0 0.0
    %1868 = vmatpush1.msra.mxu0 0.0
    %1869 = vmatprep.subr.mxu0 0.0
    %1870 = vmatpush1.msra.mxu0 0.0
    %1871 = vmatprep.subr.mxu0 0.0
    %1872 = vmatpush1.msra.mxu0 0.0
    %1873 = vmatprep.subr.mxu0 0.0
    %1874 = vmatpush1.msra.mxu0 0.0
    %1875 = vmatprep.subr.mxu0 0.0
    %1876 = vmatpush1.msra.mxu0 0.0
    %1877 = vmatprep.subr.mxu0 0.0
    %1878 = vmatpush1.msra.mxu0 0.0
    %1879 = vmatprep.mubr.f32.mxu0 0.0
    %1880 = vmatmul.mubr.f32.gmra.mrb[0].mxu0 %v1813
    %v1881 = vpop.f32.mrb[0].mxu0
    %v1882 = vadd.f32 0.0, %v1881
    %v1883 = vpop.f32.mrb[0].mxu0
    %1884 = vdwg.mxu0
    %v1885 = vadd.f32 %v1812, %v1882
    %v1886 = vxor.u32 %v1885, 2147483648
    %v1887 = vmul.f32 %v1886, 1.442695
    %v1888 = vpow.pop %v1887
    %v1889 = vadd.f32 %v1888, 1.0
    %v1890 = vrcp.pop %v1889
    %v1891 = vmul.f32 1.0, %v1890
    %v1892 = vtanh.pop %v1885
    %v1893 = vmul.f32 %v1891, %v1800
    %1895 = vrot.lane.b32.xlu0 %v1892, 80
    %v1896 = vpop.permute.xlu0 %1895
    %v1898 = vmul.f32 %v1891, %v1896
    %1900 = vrot.lane.b32.xlu0 %v1898, 16
    %v1901 = vpop.permute.xlu0 %1900
    %v1903 = vadd.f32 %v1893, %v1901
    %v1904 = vtanh.pop %v1903
    %1906 = vrot.lane.b32.xlu0 %v1904, 16
    %v1907 = vpop.permute.xlu0 %1906
    %v1909 = vmul.f32 %v1891, %v1907
    %1911 = vrot.lane.b32.xlu0 %v1909, 96
    %v1912 = vpop.permute.xlu0 %1911
    %1914 = vst.msk [vmem:[%s924] sm:$0xff] %vm20, %v1912
    %v1915 = vld [vmem:[%s926] sm:$0xff]
    %v1916 = vsel %vm20, %v1912, 0
    %1918 = vmatprep.subr.mxu0 0.0
    %1919 = vmatpush1.msra.mxu0 %v1037
    %1920 = vmatprep.subr.mxu0 0.0
    %1921 = vmatpush1.msra.mxu0 %v1038
    %1922 = vmatprep.subr.mxu0 0.0
    %1923 = vmatpush1.msra.mxu0 0.0
    %1924 = vmatprep.subr.mxu0 0.0
    %1925 = vmatpush1.msra.mxu0 0.0
    %1926 = vmatprep.subr.mxu0 0.0
    %1927 = vmatpush1.msra.mxu0 0.0
    %1928 = vmatprep.subr.mxu0 0.0
    %1929 = vmatpush1.msra.mxu0 0.0
    %1930 = vmatprep.subr.mxu0 0.0
    %1931 = vmatpush1.msra.mxu0 0.0
    %1932 = vmatprep.subr.mxu0 0.0
    %1933 = vmatpush1.msra.mxu0 0.0
    %1934 = vmatprep.subr.mxu0 0.0
    %1935 = vmatpush1.msra.mxu0 0.0
    %1936 = vmatprep.subr.mxu0 0.0
    %1937 = vmatpush1.msra.mxu0 0.0
    %1938 = vmatprep.subr.mxu0 0.0
    %1939 = vmatpush1.msra.mxu0 0.0
    %1940 = vmatprep.subr.mxu0 0.0
    %1941 = vmatpush1.msra.mxu0 0.0
    %1942 = vmatprep.subr.mxu0 0.0
    %1943 = vmatpush1.msra.mxu0 0.0
    %1944 = vmatprep.subr.mxu0 0.0
    %1945 = vmatpush1.msra.mxu0 0.0
    %1946 = vmatprep.subr.mxu0 0.0
    %1947 = vmatpush1.msra.mxu0 0.0
    %1948 = vmatprep.subr.mxu0 0.0
    %1949 = vmatpush1.msra.mxu0 0.0
    %1950 = vmatprep.subr.mxu0 0.0
    %1951 = vmatpush1.msra.mxu0 0.0
    %1952 = vmatprep.subr.mxu0 0.0
    %1953 = vmatpush1.msra.mxu0 0.0
    %1954 = vmatprep.subr.mxu0 0.0
    %1955 = vmatpush1.msra.mxu0 0.0
    %1956 = vmatprep.subr.mxu0 0.0
    %1957 = vmatpush1.msra.mxu0 0.0
    %1958 = vmatprep.subr.mxu0 0.0
    %1959 = vmatpush1.msra.mxu0 0.0
    %1960 = vmatprep.subr.mxu0 0.0
    %1961 = vmatpush1.msra.mxu0 0.0
    %1962 = vmatprep.subr.mxu0 0.0
    %1963 = vmatpush1.msra.mxu0 0.0
    %1964 = vmatprep.subr.mxu0 0.0
    %1965 = vmatpush1.msra.mxu0 0.0
    %1966 = vmatprep.subr.mxu0 0.0
    %1967 = vmatpush1.msra.mxu0 0.0
    %1968 = vmatprep.subr.mxu0 0.0
    %1969 = vmatpush1.msra.mxu0 0.0
    %1970 = vmatprep.subr.mxu0 0.0
    %1971 = vmatpush1.msra.mxu0 0.0
    %1972 = vmatprep.subr.mxu0 0.0
    %1973 = vmatpush1.msra.mxu0 0.0
    %1974 = vmatprep.subr.mxu0 0.0
    %1975 = vmatpush1.msra.mxu0 0.0
    %1976 = vmatprep.subr.mxu0 0.0
    %1977 = vmatpush1.msra.mxu0 0.0
    %1978 = vmatprep.subr.mxu0 0.0
    %1979 = vmatpush1.msra.mxu0 0.0
    %1980 = vmatprep.subr.mxu0 0.0
    %1981 = vmatpush1.msra.mxu0 0.0
    %1982 = vmatprep.mubr.f32.mxu0 0.0
    %1983 = vmatmul.mubr.f32.gmra.mrb[0].mxu0 %v1916
    %v1984 = vpop.f32.mrb[0].mxu0
    %v1985 = vadd.f32 0.0, %v1984
    %v1986 = vpop.f32.mrb[0].mxu0
    %1987 = vdwg.mxu0
    %v1988 = vadd.f32 %v1915, %v1985
    %v1989 = vxor.u32 %v1988, 2147483648
    %v1990 = vmul.f32 %v1989, 1.442695
    %v1991 = vpow.pop %v1990
    %v1992 = vadd.f32 %v1991, 1.0
    %v1993 = vrcp.pop %v1992
    %v1994 = vmul.f32 1.0, %v1993
    %v1995 = vtanh.pop %v1988
    %v1996 = vmul.f32 %v1994, %v1903
    %1998 = vrot.lane.b32.xlu0 %v1995, 80
    %v1999 = vpop.permute.xlu0 %1998
    %v2001 = vmul.f32 %v1994, %v1999
    %2003 = vrot.lane.b32.xlu0 %v2001, 16
    %v2004 = vpop.permute.xlu0 %2003
    %v2006 = vadd.f32 %v1996, %v2004
    %v2007 = vtanh.pop %v2006
    %2009 = vrot.lane.b32.xlu0 %v2007, 16
    %v2010 = vpop.permute.xlu0 %2009
    %v2012 = vmul.f32 %v1994, %v2010
    %2014 = vrot.lane.b32.xlu0 %v2012, 96
    %v2015 = vpop.permute.xlu0 %2014
    %2017 = vst.msk [vmem:[%s1029] sm:$0xff] %vm20, %v2015
    %v2018 = vld [vmem:[%s29] sm:$0xff]
    %2019 = vst.msk [vmem:[#allocation2] sm:$0xff] %vm20, %v2018
    %2020 = vst.msk [vmem:[%s504] sm:$0xff] %vm20, %v1027
    %v2021 = vld [vmem:[%s1031] sm:$0xff]
    %2022 = vst.msk [vmem:[%s399] sm:$0xff] %vm20, %v2021
    %2023 = vst.msk [vmem:[%s609] sm:$0xff] %vm20, %v2015
    %s2024 = scalar_lea.vmem %s0, 96
    %v2025 = vld [vmem:[%s2024] sm:$0xff]
    %s2026 = scalar_lea.vmem %s0, 112
    %v2027 = vld [vmem:[%s2026] sm:$0xff]
    %v2028 = vld [vmem:[%s1 + $0x50] sm:$0xff]
    %v2029 = vld [vmem:[%s1 + $0x58] sm:$0xff]
    %v2030 = vld [vmem:[%s1 + $0x60] sm:$0xff]
    %v2031 = vld [vmem:[%s1 + $0x68] sm:$0xff]
    %v2032 = vld [vmem:[%s1 + $0x70] sm:$0x1]
    %v2033 = vld [vmem:[#allocation2] sm:$0xff]
    %v2034 = vld [vmem:[#allocation2 + $0x8] sm:$0xff]
    %v2035 = vld [vmem:[#allocation2 + $0x10] sm:$0xff]
    %v2036 = vld [vmem:[#allocation2 + $0x18] sm:$0xff]
    %v2037 = vlaneseq
    %v2038 = vshrl.u32 %v2037, 7
    %v2039 = vsub.s32 0, %v2038
    %v2040 = vrot.slane %v2032, %v2039
    %v2042 = vsel %vm20, %v2033, 0
    %v2045 = vsel %vm20, %v2034, 0
    %v2048 = vsel %vm20, %v2035, 0
    %v2051 = vsel %vm20, %v2036, 0
    %2053 = vmatprep.subr.mxu0 0.0
    %2054 = vmatpush1.msra.mxu0 %v2028
    %2055 = vmatprep.subr.mxu0 0.0
    %2056 = vmatpush1.msra.mxu0 %v2029
    %2057 = vmatprep.subr.mxu0 0.0
    %2058 = vmatpush1.msra.mxu0 0.0
    %2059 = vmatprep.subr.mxu0 0.0
    %2060 = vmatpush1.msra.mxu0 0.0
    %2061 = vmatprep.subr.mxu0 0.0
    %2062 = vmatpush1.msra.mxu0 0.0
    %2063 = vmatprep.subr.mxu0 0.0
    %2064 = vmatpush1.msra.mxu0 0.0
    %2065 = vmatprep.subr.mxu0 0.0
    %2066 = vmatpush1.msra.mxu0 0.0
    %2067 = vmatprep.subr.mxu0 0.0
    %2068 = vmatpush1.msra.mxu0 0.0
    %2069 = vmatprep.subr.mxu0 0.0
    %2070 = vmatpush1.msra.mxu0 0.0
    %2071 = vmatprep.subr.mxu0 0.0
    %2072 = vmatpush1.msra.mxu0 0.0
    %2073 = vmatprep.subr.mxu0 0.0
    %2074 = vmatpush1.msra.mxu0 0.0
    %2075 = vmatprep.subr.mxu0 0.0
    %2076 = vmatpush1.msra.mxu0 0.0
    %2077 = vmatprep.subr.mxu0 0.0
    %2078 = vmatpush1.msra.mxu0 0.0
    %2079 = vmatprep.subr.mxu0 0.0
    %2080 = vmatpush1.msra.mxu0 0.0
    %2081 = vmatprep.subr.mxu0 0.0
    %2082 = vmatpush1.msra.mxu0 0.0
    %2083 = vmatprep.subr.mxu0 0.0
    %2084 = vmatpush1.msra.mxu0 0.0
    %2085 = vmatprep.subr.mxu0 0.0
    %2086 = vmatpush1.msra.mxu0 0.0
    %2087 = vmatprep.subr.mxu0 0.0
    %2088 = vmatpush1.msra.mxu0 0.0
    %2089 = vmatprep.subr.mxu0 0.0
    %2090 = vmatpush1.msra.mxu0 0.0
    %2091 = vmatprep.subr.mxu0 0.0
    %2092 = vmatpush1.msra.mxu0 0.0
    %2093 = vmatprep.subr.mxu0 0.0
    %2094 = vmatpush1.msra.mxu0 0.0
    %2095 = vmatprep.subr.mxu0 0.0
    %2096 = vmatpush1.msra.mxu0 0.0
    %2097 = vmatprep.subr.mxu0 0.0
    %2098 = vmatpush1.msra.mxu0 0.0
    %2099 = vmatprep.subr.mxu0 0.0
    %2100 = vmatpush1.msra.mxu0 0.0
    %2101 = vmatprep.subr.mxu0 0.0
    %2102 = vmatpush1.msra.mxu0 0.0
    %2103 = vmatprep.subr.mxu0 0.0
    %2104 = vmatpush1.msra.mxu0 0.0
    %2105 = vmatprep.subr.mxu0 0.0
    %2106 = vmatpush1.msra.mxu0 0.0
    %2107 = vmatprep.subr.mxu0 0.0
    %2108 = vmatpush1.msra.mxu0 0.0
    %2109 = vmatprep.subr.mxu0 0.0
    %2110 = vmatpush1.msra.mxu0 0.0
    %2111 = vmatprep.subr.mxu0 0.0
    %2112 = vmatpush1.msra.mxu0 0.0
    %2113 = vmatprep.subr.mxu0 0.0
    %2114 = vmatpush1.msra.mxu0 0.0
    %2115 = vmatprep.subr.mxu0 0.0
    %2116 = vmatpush1.msra.mxu0 0.0
    %2117 = vmatprep.mubr.f32.mxu0 0.0
    %2118 = vmatmul.mubr.f32.gmra.mrb[0].mxu0 %v2042
    %v2119 = vpop.f32.mrb[0].mxu0
    %v2120 = vadd.f32 %v2040, %v2119
    %v2121 = vpop.f32.mrb[0].mxu0
    %2122 = vmatprep.mubr.f32.mxu0 0.0
    %2123 = vmatmul.mubr.f32.gmra.mrb[0].mxu0 %v2045
    %v2124 = vpop.f32.mrb[0].mxu0
    %v2125 = vadd.f32 %v2040, %v2124
    %v2126 = vpop.f32.mrb[0].mxu0
    %2127 = vmatprep.mubr.f32.mxu0 0.0
    %2128 = vmatmul.mubr.f32.gmra.mrb[0].mxu0 %v2048
    %v2129 = vpop.f32.mrb[0].mxu0
    %v2130 = vadd.f32 %v2040, %v2129
    %v2131 = vpop.f32.mrb[0].mxu0
    %2132 = vmatprep.mubr.f32.mxu0 0.0
    %2133 = vmatmul.mubr.f32.gmra.mrb[0].mxu0 %v2051
    %v2134 = vpop.f32.mrb[0].mxu0
    %v2135 = vadd.f32 %v2040, %v2134
    %v2136 = vpop.f32.mrb[0].mxu0
    %2137 = vdwg.mxu0
    %2138 = vst.msk [vmem:[#allocation3] sm:$0xff] %vm179, %v2120
    %2139 = vst.msk [vmem:[#allocation3 + $0x8] sm:$0xff] %vm179, %v2125
    %2140 = vst.msk [vmem:[#allocation3 + $0x10] sm:$0xff] %vm179, %v2130
    %2141 = vst.msk [vmem:[#allocation3 + $0x18] sm:$0xff] %vm179, %v2135
    %v2142 = vld [vmem:[#allocation3] sm:$0xff]
    %v2144 = vsel %vm20, %v2025, 0
    %2146 = vmatprep.subr.mxu0 0.0
    %2147 = vmatpush1.msra.mxu0 %v2030
    %2148 = vmatprep.subr.mxu0 0.0
    %2149 = vmatpush1.msra.mxu0 %v2031
    %2150 = vmatprep.subr.mxu0 0.0
    %2151 = vmatpush1.msra.mxu0 0.0
    %2152 = vmatprep.subr.mxu0 0.0
    %2153 = vmatpush1.msra.mxu0 0.0
    %2154 = vmatprep.subr.mxu0 0.0
    %2155 = vmatpush1.msra.mxu0 0.0
    %2156 = vmatprep.subr.mxu0 0.0
    %2157 = vmatpush1.msra.mxu0 0.0
    %2158 = vmatprep.subr.mxu0 0.0
    %2159 = vmatpush1.msra.mxu0 0.0
    %2160 = vmatprep.subr.mxu0 0.0
    %2161 = vmatpush1.msra.mxu0 0.0
    %2162 = vmatprep.subr.mxu0 0.0
    %2163 = vmatpush1.msra.mxu0 0.0
    %2164 = vmatprep.subr.mxu0 0.0
    %2165 = vmatpush1.msra.mxu0 0.0
    %2166 = vmatprep.subr.mxu0 0.0
    %2167 = vmatpush1.msra.mxu0 0.0
    %2168 = vmatprep.subr.mxu0 0.0
    %2169 = vmatpush1.msra.mxu0 0.0
    %2170 = vmatprep.subr.mxu0 0.0
    %2171 = vmatpush1.msra.mxu0 0.0
    %2172 = vmatprep.subr.mxu0 0.0
    %2173 = vmatpush1.msra.mxu0 0.0
    %2174 = vmatprep.subr.mxu0 0.0
    %2175 = vmatpush1.msra.mxu0 0.0
    %2176 = vmatprep.subr.mxu0 0.0
    %2177 = vmatpush1.msra.mxu0 0.0
    %2178 = vmatprep.subr.mxu0 0.0
    %2179 = vmatpush1.msra.mxu0 0.0
    %2180 = vmatprep.subr.mxu0 0.0
    %2181 = vmatpush1.msra.mxu0 0.0
    %2182 = vmatprep.subr.mxu0 0.0
    %2183 = vmatpush1.msra.mxu0 0.0
    %2184 = vmatprep.subr.mxu0 0.0
    %2185 = vmatpush1.msra.mxu0 0.0
    %2186 = vmatprep.subr.mxu0 0.0
    %2187 = vmatpush1.msra.mxu0 0.0
    %2188 = vmatprep.subr.mxu0 0.0
    %2189 = vmatpush1.msra.mxu0 0.0
    %2190 = vmatprep.subr.mxu0 0.0
    %2191 = vmatpush1.msra.mxu0 0.0
    %2192 = vmatprep.subr.mxu0 0.0
    %2193 = vmatpush1.msra.mxu0 0.0
    %2194 = vmatprep.subr.mxu0 0.0
    %2195 = vmatpush1.msra.mxu0 0.0
    %2196 = vmatprep.subr.mxu0 0.0
    %2197 = vmatpush1.msra.mxu0 0.0
    %2198 = vmatprep.subr.mxu0 0.0
    %2199 = vmatpush1.msra.mxu0 0.0
    %2200 = vmatprep.subr.mxu0 0.0
    %2201 = vmatpush1.msra.mxu0 0.0
    %2202 = vmatprep.subr.mxu0 0.0
    %2203 = vmatpush1.msra.mxu0 0.0
    %2204 = vmatprep.subr.mxu0 0.0
    %2205 = vmatpush1.msra.mxu0 0.0
    %2206 = vmatprep.subr.mxu0 0.0
    %2207 = vmatpush1.msra.mxu0 0.0
    %2208 = vmatprep.subr.mxu0 0.0
    %2209 = vmatpush1.msra.mxu0 0.0
    %2210 = vmatprep.mubr.f32.mxu0 0.0
    %2211 = vmatmul.mubr.f32.gmra.mrb[0].mxu0 %v2144
    %v2212 = vpop.f32.mrb[0].mxu0
    %v2213 = vadd.f32 0.0, %v2212
    %v2214 = vpop.f32.mrb[0].mxu0
    %2215 = vdwg.mxu0
    %v2216 = vadd.f32 %v2142, %v2213
    %v2217 = vxor.u32 %v2216, 2147483648
    %v2218 = vmul.f32 %v2217, 1.442695
    %v2219 = vpow.pop %v2218
    %v2220 = vadd.f32 %v2219, 1.0
    %v2221 = vrcp.pop %v2220
    %v2222 = vmul.f32 1.0, %v2221
    %v2223 = vtanh.pop %v2216
    %2225 = vrot.lane.b32.xlu0 %v2027, 16
    %v2226 = vpop.permute.xlu0 %2225
    %v2228 = vmul.f32 %v2222, %v2226
    %2230 = vrot.lane.b32.xlu0 %v2223, 80
    %v2231 = vpop.permute.xlu0 %2230
    %v2233 = vmul.f32 %v2222, %v2231
    %2235 = vrot.lane.b32.xlu0 %v2233, 16
    %v2236 = vpop.permute.xlu0 %2235
    %v2238 = vadd.f32 %v2228, %v2236
    %v2239 = vtanh.pop %v2238
    %2241 = vrot.lane.b32.xlu0 %v2239, 16
    %v2242 = vpop.permute.xlu0 %2241
    %v2244 = vmul.f32 %v2222, %v2242
    %2246 = vrot.lane.b32.xlu0 %v2244, 96
    %v2247 = vpop.permute.xlu0 %2246
    %2249 = vst.msk [vmem:[#allocation2] sm:$0xff] %vm20, %v2247
    %v2250 = vld [vmem:[%s296] sm:$0xff]
    %v2251 = vsel %vm20, %v2247, 0
    %2253 = vmatprep.subr.mxu0 0.0
    %2254 = vmatpush1.msra.mxu0 %v2030
    %2255 = vmatprep.subr.mxu0 0.0
    %2256 = vmatpush1.msra.mxu0 %v2031
    %2257 = vmatprep.subr.mxu0 0.0
    %2258 = vmatpush1.msra.mxu0 0.0
    %2259 = vmatprep.subr.mxu0 0.0
    %2260 = vmatpush1.msra.mxu0 0.0
    %2261 = vmatprep.subr.mxu0 0.0
    %2262 = vmatpush1.msra.mxu0 0.0
    %2263 = vmatprep.subr.mxu0 0.0
    %2264 = vmatpush1.msra.mxu0 0.0
    %2265 = vmatprep.subr.mxu0 0.0
    %2266 = vmatpush1.msra.mxu0 0.0
    %2267 = vmatprep.subr.mxu0 0.0
    %2268 = vmatpush1.msra.mxu0 0.0
    %2269 = vmatprep.subr.mxu0 0.0
    %2270 = vmatpush1.msra.mxu0 0.0
    %2271 = vmatprep.subr.mxu0 0.0
    %2272 = vmatpush1.msra.mxu0 0.0
    %2273 = vmatprep.subr.mxu0 0.0
    %2274 = vmatpush1.msra.mxu0 0.0
    %2275 = vmatprep.subr.mxu0 0.0
    %2276 = vmatpush1.msra.mxu0 0.0
    %2277 = vmatprep.subr.mxu0 0.0
    %2278 = vmatpush1.msra.mxu0 0.0
    %2279 = vmatprep.subr.mxu0 0.0
    %2280 = vmatpush1.msra.mxu0 0.0
    %2281 = vmatprep.subr.mxu0 0.0
    %2282 = vmatpush1.msra.mxu0 0.0
    %2283 = vmatprep.subr.mxu0 0.0
    %2284 = vmatpush1.msra.mxu0 0.0
    %2285 = vmatprep.subr.mxu0 0.0
    %2286 = vmatpush1.msra.mxu0 0.0
    %2287 = vmatprep.subr.mxu0 0.0
    %2288 = vmatpush1.msra.mxu0 0.0
    %2289 = vmatprep.subr.mxu0 0.0
    %2290 = vmatpush1.msra.mxu0 0.0
    %2291 = vmatprep.subr.mxu0 0.0
    %2292 = vmatpush1.msra.mxu0 0.0
    %2293 = vmatprep.subr.mxu0 0.0
    %2294 = vmatpush1.msra.mxu0 0.0
    %2295 = vmatprep.subr.mxu0 0.0
    %2296 = vmatpush1.msra.mxu0 0.0
    %2297 = vmatprep.subr.mxu0 0.0
    %2298 = vmatpush1.msra.mxu0 0.0
    %2299 = vmatprep.subr.mxu0 0.0
    %2300 = vmatpush1.msra.mxu0 0.0
    %2301 = vmatprep.subr.mxu0 0.0
    %2302 = vmatpush1.msra.mxu0 0.0
    %2303 = vmatprep.subr.mxu0 0.0
    %2304 = vmatpush1.msra.mxu0 0.0
    %2305 = vmatprep.subr.mxu0 0.0
    %2306 = vmatpush1.msra.mxu0 0.0
    %2307 = vmatprep.subr.mxu0 0.0
    %2308 = vmatpush1.msra.mxu0 0.0
    %2309 = vmatprep.subr.mxu0 0.0
    %2310 = vmatpush1.msra.mxu0 0.0
    %2311 = vmatprep.subr.mxu0 0.0
    %2312 = vmatpush1.msra.mxu0 0.0
    %2313 = vmatprep.subr.mxu0 0.0
    %2314 = vmatpush1.msra.mxu0 0.0
    %2315 = vmatprep.subr.mxu0 0.0
    %2316 = vmatpush1.msra.mxu0 0.0
    %2317 = vmatprep.mubr.f32.mxu0 0.0
    %2318 = vmatmul.mubr.f32.gmra.mrb[0].mxu0 %v2251
    %v2319 = vpop.f32.mrb[0].mxu0
    %v2320 = vadd.f32 0.0, %v2319
    %v2321 = vpop.f32.mrb[0].mxu0
    %2322 = vdwg.mxu0
    %v2323 = vadd.f32 %v2250, %v2320
    %v2324 = vxor.u32 %v2323, 2147483648
    %v2325 = vmul.f32 %v2324, 1.442695
    %v2326 = vpow.pop %v2325
    %v2327 = vadd.f32 %v2326, 1.0
    %v2328 = vrcp.pop %v2327
    %v2329 = vmul.f32 1.0, %v2328
    %v2330 = vtanh.pop %v2323
    %v2331 = vmul.f32 %v2329, %v2238
    %2333 = vrot.lane.b32.xlu0 %v2330, 80
    %v2334 = vpop.permute.xlu0 %2333
    %v2336 = vmul.f32 %v2329, %v2334
    %2338 = vrot.lane.b32.xlu0 %v2336, 16
    %v2339 = vpop.permute.xlu0 %2338
    %v2341 = vadd.f32 %v2331, %v2339
    %v2342 = vtanh.pop %v2341
    %2344 = vrot.lane.b32.xlu0 %v2342, 16
    %v2345 = vpop.permute.xlu0 %2344
    %v2347 = vmul.f32 %v2329, %v2345
    %2349 = vrot.lane.b32.xlu0 %v2347, 96
    %v2350 = vpop.permute.xlu0 %2349
    %2352 = vst.msk [vmem:[%s399] sm:$0xff] %vm20, %v2350
    %v2353 = vld [vmem:[%s401] sm:$0xff]
    %v2354 = vsel %vm20, %v2350, 0
    %2356 = vmatprep.subr.mxu0 0.0
    %2357 = vmatpush1.msra.mxu0 %v2030
    %2358 = vmatprep.subr.mxu0 0.0
    %2359 = vmatpush1.msra.mxu0 %v2031
    %2360 = vmatprep.subr.mxu0 0.0
    %2361 = vmatpush1.msra.mxu0 0.0
    %2362 = vmatprep.subr.mxu0 0.0
    %2363 = vmatpush1.msra.mxu0 0.0
    %2364 = vmatprep.subr.mxu0 0.0
    %2365 = vmatpush1.msra.mxu0 0.0
    %2366 = vmatprep.subr.mxu0 0.0
    %2367 = vmatpush1.msra.mxu0 0.0
    %2368 = vmatprep.subr.mxu0 0.0
    %2369 = vmatpush1.msra.mxu0 0.0
    %2370 = vmatprep.subr.mxu0 0.0
    %2371 = vmatpush1.msra.mxu0 0.0
    %2372 = vmatprep.subr.mxu0 0.0
    %2373 = vmatpush1.msra.mxu0 0.0
    %2374 = vmatprep.subr.mxu0 0.0
    %2375 = vmatpush1.msra.mxu0 0.0
    %2376 = vmatprep.subr.mxu0 0.0
    %2377 = vmatpush1.msra.mxu0 0.0
    %2378 = vmatprep.subr.mxu0 0.0
    %2379 = vmatpush1.msra.mxu0 0.0
    %2380 = vmatprep.subr.mxu0 0.0
    %2381 = vmatpush1.msra.mxu0 0.0
    %2382 = vmatprep.subr.mxu0 0.0
    %2383 = vmatpush1.msra.mxu0 0.0
    %2384 = vmatprep.subr.mxu0 0.0
    %2385 = vmatpush1.msra.mxu0 0.0
    %2386 = vmatprep.subr.mxu0 0.0
    %2387 = vmatpush1.msra.mxu0 0.0
    %2388 = vmatprep.subr.mxu0 0.0
    %2389 = vmatpush1.msra.mxu0 0.0
    %2390 = vmatprep.subr.mxu0 0.0
    %2391 = vmatpush1.msra.mxu0 0.0
    %2392 = vmatprep.subr.mxu0 0.0
    %2393 = vmatpush1.msra.mxu0 0.0
    %2394 = vmatprep.subr.mxu0 0.0
    %2395 = vmatpush1.msra.mxu0 0.0
    %2396 = vmatprep.subr.mxu0 0.0
    %2397 = vmatpush1.msra.mxu0 0.0
    %2398 = vmatprep.subr.mxu0 0.0
    %2399 = vmatpush1.msra.mxu0 0.0
    %2400 = vmatprep.subr.mxu0 0.0
    %2401 = vmatpush1.msra.mxu0 0.0
    %2402 = vmatprep.subr.mxu0 0.0
    %2403 = vmatpush1.msra.mxu0 0.0
    %2404 = vmatprep.subr.mxu0 0.0
    %2405 = vmatpush1.msra.mxu0 0.0
    %2406 = vmatprep.subr.mxu0 0.0
    %2407 = vmatpush1.msra.mxu0 0.0
    %2408 = vmatprep.subr.mxu0 0.0
    %2409 = vmatpush1.msra.mxu0 0.0
    %2410 = vmatprep.subr.mxu0 0.0
    %2411 = vmatpush1.msra.mxu0 0.0
    %2412 = vmatprep.subr.mxu0 0.0
    %2413 = vmatpush1.msra.mxu0 0.0
    %2414 = vmatprep.subr.mxu0 0.0
    %2415 = vmatpush1.msra.mxu0 0.0
    %2416 = vmatprep.subr.mxu0 0.0
    %2417 = vmatpush1.msra.mxu0 0.0
    %2418 = vmatprep.subr.mxu0 0.0
    %2419 = vmatpush1.msra.mxu0 0.0
    %2420 = vmatprep.mubr.f32.mxu0 0.0
    %2421 = vmatmul.mubr.f32.gmra.mrb[0].mxu0 %v2354
    %v2422 = vpop.f32.mrb[0].mxu0
    %v2423 = vadd.f32 0.0, %v2422
    %v2424 = vpop.f32.mrb[0].mxu0
    %2425 = vdwg.mxu0
    %v2426 = vadd.f32 %v2353, %v2423
    %v2427 = vxor.u32 %v2426, 2147483648
    %v2428 = vmul.f32 %v2427, 1.442695
    %v2429 = vpow.pop %v2428
    %v2430 = vadd.f32 %v2429, 1.0
    %v2431 = vrcp.pop %v2430
    %v2432 = vmul.f32 1.0, %v2431
    %v2433 = vtanh.pop %v2426
    %v2434 = vmul.f32 %v2432, %v2341
    %2436 = vrot.lane.b32.xlu0 %v2433, 80
    %v2437 = vpop.permute.xlu0 %2436
    %v2439 = vmul.f32 %v2432, %v2437
    %2441 = vrot.lane.b32.xlu0 %v2439, 16
    %v2442 = vpop.permute.xlu0 %2441
    %v2444 = vadd.f32 %v2434, %v2442
    %v2445 = vtanh.pop %v2444
    %2447 = vrot.lane.b32.xlu0 %v2445, 16
    %v2448 = vpop.permute.xlu0 %2447
    %v2450 = vmul.f32 %v2432, %v2448
    %2452 = vrot.lane.b32.xlu0 %v2450, 96
    %v2453 = vpop.permute.xlu0 %2452
    %2455 = vst.msk [vmem:[%s504] sm:$0xff] %vm20, %v2453
    %v2456 = vld [vmem:[%s506] sm:$0xff]
    %v2457 = vsel %vm20, %v2453, 0
    %2459 = vmatprep.subr.mxu0 0.0
    %2460 = vmatpush1.msra.mxu0 %v2030
    %2461 = vmatprep.subr.mxu0 0.0
    %2462 = vmatpush1.msra.mxu0 %v2031
    %2463 = vmatprep.subr.mxu0 0.0
    %2464 = vmatpush1.msra.mxu0 0.0
    %2465 = vmatprep.subr.mxu0 0.0
    %2466 = vmatpush1.msra.mxu0 0.0
    %2467 = vmatprep.subr.mxu0 0.0
    %2468 = vmatpush1.msra.mxu0 0.0
    %2469 = vmatprep.subr.mxu0 0.0
    %2470 = vmatpush1.msra.mxu0 0.0
    %2471 = vmatprep.subr.mxu0 0.0
    %2472 = vmatpush1.msra.mxu0 0.0
    %2473 = vmatprep.subr.mxu0 0.0
    %2474 = vmatpush1.msra.mxu0 0.0
    %2475 = vmatprep.subr.mxu0 0.0
    %2476 = vmatpush1.msra.mxu0 0.0
    %2477 = vmatprep.subr.mxu0 0.0
    %2478 = vmatpush1.msra.mxu0 0.0
    %2479 = vmatprep.subr.mxu0 0.0
    %2480 = vmatpush1.msra.mxu0 0.0
    %2481 = vmatprep.subr.mxu0 0.0
    %2482 = vmatpush1.msra.mxu0 0.0
    %2483 = vmatprep.subr.mxu0 0.0
    %2484 = vmatpush1.msra.mxu0 0.0
    %2485 = vmatprep.subr.mxu0 0.0
    %2486 = vmatpush1.msra.mxu0 0.0
    %2487 = vmatprep.subr.mxu0 0.0
    %2488 = vmatpush1.msra.mxu0 0.0
    %2489 = vmatprep.subr.mxu0 0.0
    %2490 = vmatpush1.msra.mxu0 0.0
    %2491 = vmatprep.subr.mxu0 0.0
    %2492 = vmatpush1.msra.mxu0 0.0
    %2493 = vmatprep.subr.mxu0 0.0
    %2494 = vmatpush1.msra.mxu0 0.0
    %2495 = vmatprep.subr.mxu0 0.0
    %2496 = vmatpush1.msra.mxu0 0.0
    %2497 = vmatprep.subr.mxu0 0.0
    %2498 = vmatpush1.msra.mxu0 0.0
    %2499 = vmatprep.subr.mxu0 0.0
    %2500 = vmatpush1.msra.mxu0 0.0
    %2501 = vmatprep.subr.mxu0 0.0
    %2502 = vmatpush1.msra.mxu0 0.0
    %2503 = vmatprep.subr.mxu0 0.0
    %2504 = vmatpush1.msra.mxu0 0.0
    %2505 = vmatprep.subr.mxu0 0.0
    %2506 = vmatpush1.msra.mxu0 0.0
    %2507 = vmatprep.subr.mxu0 0.0
    %2508 = vmatpush1.msra.mxu0 0.0
    %2509 = vmatprep.subr.mxu0 0.0
    %2510 = vmatpush1.msra.mxu0 0.0
    %2511 = vmatprep.subr.mxu0 0.0
    %2512 = vmatpush1.msra.mxu0 0.0
    %2513 = vmatprep.subr.mxu0 0.0
    %2514 = vmatpush1.msra.mxu0 0.0
    %2515 = vmatprep.subr.mxu0 0.0
    %2516 = vmatpush1.msra.mxu0 0.0
    %2517 = vmatprep.subr.mxu0 0.0
    %2518 = vmatpush1.msra.mxu0 0.0
    %2519 = vmatprep.subr.mxu0 0.0
    %2520 = vmatpush1.msra.mxu0 0.0
    %2521 = vmatprep.subr.mxu0 0.0
    %2522 = vmatpush1.msra.mxu0 0.0
    %2523 = vmatprep.mubr.f32.mxu0 0.0
    %2524 = vmatmul.mubr.f32.gmra.mrb[0].mxu0 %v2457
    %v2525 = vpop.f32.mrb[0].mxu0
    %v2526 = vadd.f32 0.0, %v2525
    %v2527 = vpop.f32.mrb[0].mxu0
    %2528 = vdwg.mxu0
    %v2529 = vadd.f32 %v2456, %v2526
    %v2530 = vxor.u32 %v2529, 2147483648
    %v2531 = vmul.f32 %v2530, 1.442695
    %v2532 = vpow.pop %v2531
    %v2533 = vadd.f32 %v2532, 1.0
    %v2534 = vrcp.pop %v2533
    %v2535 = vmul.f32 1.0, %v2534
    %v2536 = vtanh.pop %v2529
    %v2537 = vmul.f32 %v2535, %v2444
    %2539 = vrot.lane.b32.xlu0 %v2536, 80
    %v2540 = vpop.permute.xlu0 %2539
    %v2542 = vmul.f32 %v2535, %v2540
    %2544 = vrot.lane.b32.xlu0 %v2542, 16
    %v2545 = vpop.permute.xlu0 %2544
    %v2547 = vadd.f32 %v2537, %v2545
    %v2548 = vtanh.pop %v2547
    %2550 = vrot.lane.b32.xlu0 %v2548, 16
    %v2551 = vpop.permute.xlu0 %2550
    %v2553 = vmul.f32 %v2535, %v2551
    %2555 = vrot.lane.b32.xlu0 %v2553, 96
    %v2556 = vpop.permute.xlu0 %2555
    %2558 = vst.msk [vmem:[%s609] sm:$0xff] %vm20, %v2556
    %s2559 = scalar_lea.vmem %s0, 104
    %v2560 = vld [vmem:[%s2559] sm:$0xff]
    %s2561 = scalar_lea.vmem %s0, 120
    %v2562 = vld [vmem:[%s2561] sm:$0xff]
    %v2563 = vld [vmem:[%s1 + $0x78] sm:$0xff]
    %v2564 = vld [vmem:[%s1 + $0x80] sm:$0xff]
    %v2565 = vld [vmem:[%s1 + $0x88] sm:$0xff]
    %v2566 = vld [vmem:[%s1 + $0x90] sm:$0xff]
    %v2567 = vld [vmem:[%s1 + $0x98] sm:$0x1]
    %v2568 = vld [vmem:[#allocation2] sm:$0xff]
    %v2569 = vld [vmem:[#allocation2 + $0x8] sm:$0xff]
    %v2570 = vld [vmem:[#allocation2 + $0x10] sm:$0xff]
    %v2571 = vld [vmem:[#allocation2 + $0x18] sm:$0xff]
    %v2572 = vlaneseq
    %v2573 = vshrl.u32 %v2572, 7
    %v2574 = vsub.s32 0, %v2573
    %v2575 = vrot.slane %v2567, %v2574
    %v2577 = vsel %vm20, %v2568, 0
    %v2580 = vsel %vm20, %v2569, 0
    %v2583 = vsel %vm20, %v2570, 0
    %v2586 = vsel %vm20, %v2571, 0
    %2588 = vmatprep.subr.mxu0 0.0
    %2589 = vmatpush1.msra.mxu0 %v2563
    %2590 = vmatprep.subr.mxu0 0.0
    %2591 = vmatpush1.msra.mxu0 %v2564
    %2592 = vmatprep.subr.mxu0 0.0
    %2593 = vmatpush1.msra.mxu0 0.0
    %2594 = vmatprep.subr.mxu0 0.0
    %2595 = vmatpush1.msra.mxu0 0.0
    %2596 = vmatprep.subr.mxu0 0.0
    %2597 = vmatpush1.msra.mxu0 0.0
    %2598 = vmatprep.subr.mxu0 0.0
    %2599 = vmatpush1.msra.mxu0 0.0
    %2600 = vmatprep.subr.mxu0 0.0
    %2601 = vmatpush1.msra.mxu0 0.0
    %2602 = vmatprep.subr.mxu0 0.0
    %2603 = vmatpush1.msra.mxu0 0.0
    %2604 = vmatprep.subr.mxu0 0.0
    %2605 = vmatpush1.msra.mxu0 0.0
    %2606 = vmatprep.subr.mxu0 0.0
    %2607 = vmatpush1.msra.mxu0 0.0
    %2608 = vmatprep.subr.mxu0 0.0
    %2609 = vmatpush1.msra.mxu0 0.0
    %2610 = vmatprep.subr.mxu0 0.0
    %2611 = vmatpush1.msra.mxu0 0.0
    %2612 = vmatprep.subr.mxu0 0.0
    %2613 = vmatpush1.msra.mxu0 0.0
    %2614 = vmatprep.subr.mxu0 0.0
    %2615 = vmatpush1.msra.mxu0 0.0
    %2616 = vmatprep.subr.mxu0 0.0
    %2617 = vmatpush1.msra.mxu0 0.0
    %2618 = vmatprep.subr.mxu0 0.0
    %2619 = vmatpush1.msra.mxu0 0.0
    %2620 = vmatprep.subr.mxu0 0.0
    %2621 = vmatpush1.msra.mxu0 0.0
    %2622 = vmatprep.subr.mxu0 0.0
    %2623 = vmatpush1.msra.mxu0 0.0
    %2624 = vmatprep.subr.mxu0 0.0
    %2625 = vmatpush1.msra.mxu0 0.0
    %2626 = vmatprep.subr.mxu0 0.0
    %2627 = vmatpush1.msra.mxu0 0.0
    %2628 = vmatprep.subr.mxu0 0.0
    %2629 = vmatpush1.msra.mxu0 0.0
    %2630 = vmatprep.subr.mxu0 0.0
    %2631 = vmatpush1.msra.mxu0 0.0
    %2632 = vmatprep.subr.mxu0 0.0
    %2633 = vmatpush1.msra.mxu0 0.0
    %2634 = vmatprep.subr.mxu0 0.0
    %2635 = vmatpush1.msra.mxu0 0.0
    %2636 = vmatprep.subr.mxu0 0.0
    %2637 = vmatpush1.msra.mxu0 0.0
    %2638 = vmatprep.subr.mxu0 0.0
    %2639 = vmatpush1.msra.mxu0 0.0
    %2640 = vmatprep.subr.mxu0 0.0
    %2641 = vmatpush1.msra.mxu0 0.0
    %2642 = vmatprep.subr.mxu0 0.0
    %2643 = vmatpush1.msra.mxu0 0.0
    %2644 = vmatprep.subr.mxu0 0.0
    %2645 = vmatpush1.msra.mxu0 0.0
    %2646 = vmatprep.subr.mxu0 0.0
    %2647 = vmatpush1.msra.mxu0 0.0
    %2648 = vmatprep.subr.mxu0 0.0
    %2649 = vmatpush1.msra.mxu0 0.0
    %2650 = vmatprep.subr.mxu0 0.0
    %2651 = vmatpush1.msra.mxu0 0.0
    %2652 = vmatprep.mubr.f32.mxu0 0.0
    %2653 = vmatmul.mubr.f32.gmra.mrb[0].mxu0 %v2577
    %v2654 = vpop.f32.mrb[0].mxu0
    %v2655 = vadd.f32 %v2575, %v2654
    %v2656 = vpop.f32.mrb[0].mxu0
    %2657 = vmatprep.mubr.f32.mxu0 0.0
    %2658 = vmatmul.mubr.f32.gmra.mrb[0].mxu0 %v2580
    %v2659 = vpop.f32.mrb[0].mxu0
    %v2660 = vadd.f32 %v2575, %v2659
    %v2661 = vpop.f32.mrb[0].mxu0
    %2662 = vmatprep.mubr.f32.mxu0 0.0
    %2663 = vmatmul.mubr.f32.gmra.mrb[0].mxu0 %v2583
    %v2664 = vpop.f32.mrb[0].mxu0
    %v2665 = vadd.f32 %v2575, %v2664
    %v2666 = vpop.f32.mrb[0].mxu0
    %2667 = vmatprep.mubr.f32.mxu0 0.0
    %2668 = vmatmul.mubr.f32.gmra.mrb[0].mxu0 %v2586
    %v2669 = vpop.f32.mrb[0].mxu0
    %v2670 = vadd.f32 %v2575, %v2669
    %v2671 = vpop.f32.mrb[0].mxu0
    %2672 = vdwg.mxu0
    %2673 = vst.msk [vmem:[#allocation3] sm:$0xff] %vm179, %v2655
    %2674 = vst.msk [vmem:[#allocation3 + $0x8] sm:$0xff] %vm179, %v2660
    %2675 = vst.msk [vmem:[#allocation3 + $0x10] sm:$0xff] %vm179, %v2665
    %2676 = vst.msk [vmem:[#allocation3 + $0x18] sm:$0xff] %vm179, %v2670
    %v2677 = vld [vmem:[#allocation3] sm:$0xff]
    %v2679 = vsel %vm20, %v2560, 0
    %2681 = vmatprep.subr.mxu0 0.0
    %2682 = vmatpush1.msra.mxu0 %v2565
    %2683 = vmatprep.subr.mxu0 0.0
    %2684 = vmatpush1.msra.mxu0 %v2566
    %2685 = vmatprep.subr.mxu0 0.0
    %2686 = vmatpush1.msra.mxu0 0.0
    %2687 = vmatprep.subr.mxu0 0.0
    %2688 = vmatpush1.msra.mxu0 0.0
    %2689 = vmatprep.subr.mxu0 0.0
    %2690 = vmatpush1.msra.mxu0 0.0
    %2691 = vmatprep.subr.mxu0 0.0
    %2692 = vmatpush1.msra.mxu0 0.0
    %2693 = vmatprep.subr.mxu0 0.0
    %2694 = vmatpush1.msra.mxu0 0.0
    %2695 = vmatprep.subr.mxu0 0.0
    %2696 = vmatpush1.msra.mxu0 0.0
    %2697 = vmatprep.subr.mxu0 0.0
    %2698 = vmatpush1.msra.mxu0 0.0
    %2699 = vmatprep.subr.mxu0 0.0
    %2700 = vmatpush1.msra.mxu0 0.0
    %2701 = vmatprep.subr.mxu0 0.0
    %2702 = vmatpush1.msra.mxu0 0.0
    %2703 = vmatprep.subr.mxu0 0.0
    %2704 = vmatpush1.msra.mxu0 0.0
    %2705 = vmatprep.subr.mxu0 0.0
    %2706 = vmatpush1.msra.mxu0 0.0
    %2707 = vmatprep.subr.mxu0 0.0
    %2708 = vmatpush1.msra.mxu0 0.0
    %2709 = vmatprep.subr.mxu0 0.0
    %2710 = vmatpush1.msra.mxu0 0.0
    %2711 = vmatprep.subr.mxu0 0.0
    %2712 = vmatpush1.msra.mxu0 0.0
    %2713 = vmatprep.subr.mxu0 0.0
    %2714 = vmatpush1.msra.mxu0 0.0
    %2715 = vmatprep.subr.mxu0 0.0
    %2716 = vmatpush1.msra.mxu0 0.0
    %2717 = vmatprep.subr.mxu0 0.0
    %2718 = vmatpush1.msra.mxu0 0.0
    %2719 = vmatprep.subr.mxu0 0.0
    %2720 = vmatpush1.msra.mxu0 0.0
    %2721 = vmatprep.subr.mxu0 0.0
    %2722 = vmatpush1.msra.mxu0 0.0
    %2723 = vmatprep.subr.mxu0 0.0
    %2724 = vmatpush1.msra.mxu0 0.0
    %2725 = vmatprep.subr.mxu0 0.0
    %2726 = vmatpush1.msra.mxu0 0.0
    %2727 = vmatprep.subr.mxu0 0.0
    %2728 = vmatpush1.msra.mxu0 0.0
    %2729 = vmatprep.subr.mxu0 0.0
    %2730 = vmatpush1.msra.mxu0 0.0
    %2731 = vmatprep.subr.mxu0 0.0
    %2732 = vmatpush1.msra.mxu0 0.0
    %2733 = vmatprep.subr.mxu0 0.0
    %2734 = vmatpush1.msra.mxu0 0.0
    %2735 = vmatprep.subr.mxu0 0.0
    %2736 = vmatpush1.msra.mxu0 0.0
    %2737 = vmatprep.subr.mxu0 0.0
    %2738 = vmatpush1.msra.mxu0 0.0
    %2739 = vmatprep.subr.mxu0 0.0
    %2740 = vmatpush1.msra.mxu0 0.0
    %2741 = vmatprep.subr.mxu0 0.0
    %2742 = vmatpush1.msra.mxu0 0.0
    %2743 = vmatprep.subr.mxu0 0.0
    %2744 = vmatpush1.msra.mxu0 0.0
    %2745 = vmatprep.mubr.f32.mxu0 0.0
    %2746 = vmatmul.mubr.f32.gmra.mrb[0].mxu0 %v2679
    %v2747 = vpop.f32.mrb[0].mxu0
    %v2748 = vadd.f32 0.0, %v2747
    %v2749 = vpop.f32.mrb[0].mxu0
    %2750 = vdwg.mxu0
    %v2751 = vadd.f32 %v2677, %v2748
    %v2752 = vxor.u32 %v2751, 2147483648
    %v2753 = vmul.f32 %v2752, 1.442695
    %v2754 = vpow.pop %v2753
    %v2755 = vadd.f32 %v2754, 1.0
    %v2756 = vrcp.pop %v2755
    %v2757 = vmul.f32 1.0, %v2756
    %v2758 = vtanh.pop %v2751
    %2760 = vrot.lane.b32.xlu0 %v2562, 16
    %v2761 = vpop.permute.xlu0 %2760
    %v2763 = vmul.f32 %v2757, %v2761
    %2765 = vrot.lane.b32.xlu0 %v2758, 80
    %v2766 = vpop.permute.xlu0 %2765
    %v2768 = vmul.f32 %v2757, %v2766
    %2770 = vrot.lane.b32.xlu0 %v2768, 16
    %v2771 = vpop.permute.xlu0 %2770
    %v2773 = vadd.f32 %v2763, %v2771
    %v2774 = vtanh.pop %v2773
    %2776 = vrot.lane.b32.xlu0 %v2774, 16
    %v2777 = vpop.permute.xlu0 %2776
    %v2779 = vmul.f32 %v2757, %v2777
    %2781 = vrot.lane.b32.xlu0 %v2779, 96
    %v2782 = vpop.permute.xlu0 %2781
    %2784 = vst.msk [vmem:[#allocation2] sm:$0xff] %vm20, %v2782
    %v2785 = vld [vmem:[%s296] sm:$0xff]
    %v2786 = vsel %vm20, %v2782, 0
    %2788 = vmatprep.subr.mxu0 0.0
    %2789 = vmatpush1.msra.mxu0 %v2565
    %2790 = vmatprep.subr.mxu0 0.0
    %2791 = vmatpush1.msra.mxu0 %v2566
    %2792 = vmatprep.subr.mxu0 0.0
    %2793 = vmatpush1.msra.mxu0 0.0
    %2794 = vmatprep.subr.mxu0 0.0
    %2795 = vmatpush1.msra.mxu0 0.0
    %2796 = vmatprep.subr.mxu0 0.0
    %2797 = vmatpush1.msra.mxu0 0.0
    %2798 = vmatprep.subr.mxu0 0.0
    %2799 = vmatpush1.msra.mxu0 0.0
    %2800 = vmatprep.subr.mxu0 0.0
    %2801 = vmatpush1.msra.mxu0 0.0
    %2802 = vmatprep.subr.mxu0 0.0
    %2803 = vmatpush1.msra.mxu0 0.0
    %2804 = vmatprep.subr.mxu0 0.0
    %2805 = vmatpush1.msra.mxu0 0.0
    %2806 = vmatprep.subr.mxu0 0.0
    %2807 = vmatpush1.msra.mxu0 0.0
    %2808 = vmatprep.subr.mxu0 0.0
    %2809 = vmatpush1.msra.mxu0 0.0
    %2810 = vmatprep.subr.mxu0 0.0
    %2811 = vmatpush1.msra.mxu0 0.0
    %2812 = vmatprep.subr.mxu0 0.0
    %2813 = vmatpush1.msra.mxu0 0.0
    %2814 = vmatprep.subr.mxu0 0.0
    %2815 = vmatpush1.msra.mxu0 0.0
    %2816 = vmatprep.subr.mxu0 0.0
    %2817 = vmatpush1.msra.mxu0 0.0
    %2818 = vmatprep.subr.mxu0 0.0
    %2819 = vmatpush1.msra.mxu0 0.0
    %2820 = vmatprep.subr.mxu0 0.0
    %2821 = vmatpush1.msra.mxu0 0.0
    %2822 = vmatprep.subr.mxu0 0.0
    %2823 = vmatpush1.msra.mxu0 0.0
    %2824 = vmatprep.subr.mxu0 0.0
    %2825 = vmatpush1.msra.mxu0 0.0
    %2826 = vmatprep.subr.mxu0 0.0
    %2827 = vmatpush1.msra.mxu0 0.0
    %2828 = vmatprep.subr.mxu0 0.0
    %2829 = vmatpush1.msra.mxu0 0.0
    %2830 = vmatprep.subr.mxu0 0.0
    %2831 = vmatpush1.msra.mxu0 0.0
    %2832 = vmatprep.subr.mxu0 0.0
    %2833 = vmatpush1.msra.mxu0 0.0
    %2834 = vmatprep.subr.mxu0 0.0
    %2835 = vmatpush1.msra.mxu0 0.0
    %2836 = vmatprep.subr.mxu0 0.0
    %2837 = vmatpush1.msra.mxu0 0.0
    %2838 = vmatprep.subr.mxu0 0.0
    %2839 = vmatpush1.msra.mxu0 0.0
    %2840 = vmatprep.subr.mxu0 0.0
    %2841 = vmatpush1.msra.mxu0 0.0
    %2842 = vmatprep.subr.mxu0 0.0
    %2843 = vmatpush1.msra.mxu0 0.0
    %2844 = vmatprep.subr.mxu0 0.0
    %2845 = vmatpush1.msra.mxu0 0.0
    %2846 = vmatprep.subr.mxu0 0.0
    %2847 = vmatpush1.msra.mxu0 0.0
    %2848 = vmatprep.subr.mxu0 0.0
    %2849 = vmatpush1.msra.mxu0 0.0
    %2850 = vmatprep.subr.mxu0 0.0
    %2851 = vmatpush1.msra.mxu0 0.0
    %2852 = vmatprep.mubr.f32.mxu0 0.0
    %2853 = vmatmul.mubr.f32.gmra.mrb[0].mxu0 %v2786
    %v2854 = vpop.f32.mrb[0].mxu0
    %v2855 = vadd.f32 0.0, %v2854
    %v2856 = vpop.f32.mrb[0].mxu0
    %2857 = vdwg.mxu0
    %v2858 = vadd.f32 %v2785, %v2855
    %v2859 = vxor.u32 %v2858, 2147483648
    %v2860 = vmul.f32 %v2859, 1.442695
    %v2861 = vpow.pop %v2860
    %v2862 = vadd.f32 %v2861, 1.0
    %v2863 = vrcp.pop %v2862
    %v2864 = vmul.f32 1.0, %v2863
    %v2865 = vtanh.pop %v2858
    %v2866 = vmul.f32 %v2864, %v2773
    %2868 = vrot.lane.b32.xlu0 %v2865, 80
    %v2869 = vpop.permute.xlu0 %2868
    %v2871 = vmul.f32 %v2864, %v2869
    %2873 = vrot.lane.b32.xlu0 %v2871, 16
    %v2874 = vpop.permute.xlu0 %2873
    %v2876 = vadd.f32 %v2866, %v2874
    %v2877 = vtanh.pop %v2876
    %2879 = vrot.lane.b32.xlu0 %v2877, 16
    %v2880 = vpop.permute.xlu0 %2879
    %v2882 = vmul.f32 %v2864, %v2880
    %2884 = vrot.lane.b32.xlu0 %v2882, 96
    %v2885 = vpop.permute.xlu0 %2884
    %2887 = vst.msk [vmem:[%s399] sm:$0xff] %vm20, %v2885
    %v2888 = vld [vmem:[%s401] sm:$0xff]
    %v2889 = vsel %vm20, %v2885, 0
    %2891 = vmatprep.subr.mxu0 0.0
    %2892 = vmatpush1.msra.mxu0 %v2565
    %2893 = vmatprep.subr.mxu0 0.0
    %2894 = vmatpush1.msra.mxu0 %v2566
    %2895 = vmatprep.subr.mxu0 0.0
    %2896 = vmatpush1.msra.mxu0 0.0
    %2897 = vmatprep.subr.mxu0 0.0
    %2898 = vmatpush1.msra.mxu0 0.0
    %2899 = vmatprep.subr.mxu0 0.0
    %2900 = vmatpush1.msra.mxu0 0.0
    %2901 = vmatprep.subr.mxu0 0.0
    %2902 = vmatpush1.msra.mxu0 0.0
    %2903 = vmatprep.subr.mxu0 0.0
    %2904 = vmatpush1.msra.mxu0 0.0
    %2905 = vmatprep.subr.mxu0 0.0
    %2906 = vmatpush1.msra.mxu0 0.0
    %2907 = vmatprep.subr.mxu0 0.0
    %2908 = vmatpush1.msra.mxu0 0.0
    %2909 = vmatprep.subr.mxu0 0.0
    %2910 = vmatpush1.msra.mxu0 0.0
    %2911 = vmatprep.subr.mxu0 0.0
    %2912 = vmatpush1.msra.mxu0 0.0
    %2913 = vmatprep.subr.mxu0 0.0
    %2914 = vmatpush1.msra.mxu0 0.0
    %2915 = vmatprep.subr.mxu0 0.0
    %2916 = vmatpush1.msra.mxu0 0.0
    %2917 = vmatprep.subr.mxu0 0.0
    %2918 = vmatpush1.msra.mxu0 0.0
    %2919 = vmatprep.subr.mxu0 0.0
    %2920 = vmatpush1.msra.mxu0 0.0
    %2921 = vmatprep.subr.mxu0 0.0
    %2922 = vmatpush1.msra.mxu0 0.0
    %2923 = vmatprep.subr.mxu0 0.0
    %2924 = vmatpush1.msra.mxu0 0.0
    %2925 = vmatprep.subr.mxu0 0.0
    %2926 = vmatpush1.msra.mxu0 0.0
    %2927 = vmatprep.subr.mxu0 0.0
    %2928 = vmatpush1.msra.mxu0 0.0
    %2929 = vmatprep.subr.mxu0 0.0
    %2930 = vmatpush1.msra.mxu0 0.0
    %2931 = vmatprep.subr.mxu0 0.0
    %2932 = vmatpush1.msra.mxu0 0.0
    %2933 = vmatprep.subr.mxu0 0.0
    %2934 = vmatpush1.msra.mxu0 0.0
    %2935 = vmatprep.subr.mxu0 0.0
    %2936 = vmatpush1.msra.mxu0 0.0
    %2937 = vmatprep.subr.mxu0 0.0
    %2938 = vmatpush1.msra.mxu0 0.0
    %2939 = vmatprep.subr.mxu0 0.0
    %2940 = vmatpush1.msra.mxu0 0.0
    %2941 = vmatprep.subr.mxu0 0.0
    %2942 = vmatpush1.msra.mxu0 0.0
    %2943 = vmatprep.subr.mxu0 0.0
    %2944 = vmatpush1.msra.mxu0 0.0
    %2945 = vmatprep.subr.mxu0 0.0
    %2946 = vmatpush1.msra.mxu0 0.0
    %2947 = vmatprep.subr.mxu0 0.0
    %2948 = vmatpush1.msra.mxu0 0.0
    %2949 = vmatprep.subr.mxu0 0.0
    %2950 = vmatpush1.msra.mxu0 0.0
    %2951 = vmatprep.subr.mxu0 0.0
    %2952 = vmatpush1.msra.mxu0 0.0
    %2953 = vmatprep.subr.mxu0 0.0
    %2954 = vmatpush1.msra.mxu0 0.0
    %2955 = vmatprep.mubr.f32.mxu0 0.0
    %2956 = vmatmul.mubr.f32.gmra.mrb[0].mxu0 %v2889
    %v2957 = vpop.f32.mrb[0].mxu0
    %v2958 = vadd.f32 0.0, %v2957
    %v2959 = vpop.f32.mrb[0].mxu0
    %2960 = vdwg.mxu0
    %v2961 = vadd.f32 %v2888, %v2958
    %v2962 = vxor.u32 %v2961, 2147483648
    %v2963 = vmul.f32 %v2962, 1.442695
    %v2964 = vpow.pop %v2963
    %v2965 = vadd.f32 %v2964, 1.0
    %v2966 = vrcp.pop %v2965
    %v2967 = vmul.f32 1.0, %v2966
    %v2968 = vtanh.pop %v2961
    %v2969 = vmul.f32 %v2967, %v2876
    %2971 = vrot.lane.b32.xlu0 %v2968, 80
    %v2972 = vpop.permute.xlu0 %2971
    %v2974 = vmul.f32 %v2967, %v2972
    %2976 = vrot.lane.b32.xlu0 %v2974, 16
    %v2977 = vpop.permute.xlu0 %2976
    %v2979 = vadd.f32 %v2969, %v2977
    %v2980 = vtanh.pop %v2979
    %2982 = vrot.lane.b32.xlu0 %v2980, 16
    %v2983 = vpop.permute.xlu0 %2982
    %v2985 = vmul.f32 %v2967, %v2983
    %2987 = vrot.lane.b32.xlu0 %v2985, 96
    %v2988 = vpop.permute.xlu0 %2987
    %2990 = vst.msk [vmem:[%s504] sm:$0xff] %vm20, %v2988
    %v2991 = vld [vmem:[%s506] sm:$0xff]
    %v2992 = vsel %vm20, %v2988, 0
    %2994 = vmatprep.subr.mxu0 0.0
    %2995 = vmatpush1.msra.mxu0 %v2565
    %2996 = vmatprep.subr.mxu0 0.0
    %2997 = vmatpush1.msra.mxu0 %v2566
    %2998 = vmatprep.subr.mxu0 0.0
    %2999 = vmatpush1.msra.mxu0 0.0
    %3000 = vmatprep.subr.mxu0 0.0
    %3001 = vmatpush1.msra.mxu0 0.0
    %3002 = vmatprep.subr.mxu0 0.0
    %3003 = vmatpush1.msra.mxu0 0.0
    %3004 = vmatprep.subr.mxu0 0.0
    %3005 = vmatpush1.msra.mxu0 0.0
    %3006 = vmatprep.subr.mxu0 0.0
    %3007 = vmatpush1.msra.mxu0 0.0
    %3008 = vmatprep.subr.mxu0 0.0
    %3009 = vmatpush1.msra.mxu0 0.0
    %3010 = vmatprep.subr.mxu0 0.0
    %3011 = vmatpush1.msra.mxu0 0.0
    %3012 = vmatprep.subr.mxu0 0.0
    %3013 = vmatpush1.msra.mxu0 0.0
    %3014 = vmatprep.subr.mxu0 0.0
    %3015 = vmatpush1.msra.mxu0 0.0
    %3016 = vmatprep.subr.mxu0 0.0
    %3017 = vmatpush1.msra.mxu0 0.0
    %3018 = vmatprep.subr.mxu0 0.0
    %3019 = vmatpush1.msra.mxu0 0.0
    %3020 = vmatprep.subr.mxu0 0.0
    %3021 = vmatpush1.msra.mxu0 0.0
    %3022 = vmatprep.subr.mxu0 0.0
    %3023 = vmatpush1.msra.mxu0 0.0
    %3024 = vmatprep.subr.mxu0 0.0
    %3025 = vmatpush1.msra.mxu0 0.0
    %3026 = vmatprep.subr.mxu0 0.0
    %3027 = vmatpush1.msra.mxu0 0.0
    %3028 = vmatprep.subr.mxu0 0.0
    %3029 = vmatpush1.msra.mxu0 0.0
    %3030 = vmatprep.subr.mxu0 0.0
    %3031 = vmatpush1.msra.mxu0 0.0
    %3032 = vmatprep.subr.mxu0 0.0
    %3033 = vmatpush1.msra.mxu0 0.0
    %3034 = vmatprep.subr.mxu0 0.0
    %3035 = vmatpush1.msra.mxu0 0.0
    %3036 = vmatprep.subr.mxu0 0.0
    %3037 = vmatpush1.msra.mxu0 0.0
    %3038 = vmatprep.subr.mxu0 0.0
    %3039 = vmatpush1.msra.mxu0 0.0
    %3040 = vmatprep.subr.mxu0 0.0
    %3041 = vmatpush1.msra.mxu0 0.0
    %3042 = vmatprep.subr.mxu0 0.0
    %3043 = vmatpush1.msra.mxu0 0.0
    %3044 = vmatprep.subr.mxu0 0.0
    %3045 = vmatpush1.msra.mxu0 0.0
    %3046 = vmatprep.subr.mxu0 0.0
    %3047 = vmatpush1.msra.mxu0 0.0
    %3048 = vmatprep.subr.mxu0 0.0
    %3049 = vmatpush1.msra.mxu0 0.0
    %3050 = vmatprep.subr.mxu0 0.0
    %3051 = vmatpush1.msra.mxu0 0.0
    %3052 = vmatprep.subr.mxu0 0.0
    %3053 = vmatpush1.msra.mxu0 0.0
    %3054 = vmatprep.subr.mxu0 0.0
    %3055 = vmatpush1.msra.mxu0 0.0
    %3056 = vmatprep.subr.mxu0 0.0
    %3057 = vmatpush1.msra.mxu0 0.0
    %3058 = vmatprep.mubr.f32.mxu0 0.0
    %3059 = vmatmul.mubr.f32.gmra.mrb[0].mxu0 %v2992
    %v3060 = vpop.f32.mrb[0].mxu0
    %v3061 = vadd.f32 0.0, %v3060
    %v3062 = vpop.f32.mrb[0].mxu0
    %3063 = vdwg.mxu0
    %v3064 = vadd.f32 %v2991, %v3061
    %v3065 = vxor.u32 %v3064, 2147483648
    %v3066 = vmul.f32 %v3065, 1.442695
    %v3067 = vpow.pop %v3066
    %v3068 = vadd.f32 %v3067, 1.0
    %v3069 = vrcp.pop %v3068
    %v3070 = vmul.f32 1.0, %v3069
    %v3071 = vtanh.pop %v3064
    %v3072 = vmul.f32 %v3070, %v2979
    %3074 = vrot.lane.b32.xlu0 %v3071, 80
    %v3075 = vpop.permute.xlu0 %3074
    %v3077 = vmul.f32 %v3070, %v3075
    %3079 = vrot.lane.b32.xlu0 %v3077, 16
    %v3080 = vpop.permute.xlu0 %3079
    %v3082 = vadd.f32 %v3072, %v3080
    %v3083 = vtanh.pop %v3082
    %3085 = vrot.lane.b32.xlu0 %v3083, 16
    %v3086 = vpop.permute.xlu0 %3085
    %v3088 = vmul.f32 %v3070, %v3086
    %3090 = vrot.lane.b32.xlu0 %v3088, 96
    %v3091 = vpop.permute.xlu0 %3090
    %3093 = vst.msk [vmem:[%s609] sm:$0xff] %vm20, %v3091
    %v3094 = vld [vmem:[%s2024] sm:$0xff]
    %3095 = vst.msk [vmem:[#allocation2] sm:$0xff] %vm20, %v3094
    %3096 = vst.msk [vmem:[%s504] sm:$0xff] %vm20, %v2556
    %v3097 = vld [vmem:[%s2559] sm:$0xff]
    %3098 = vst.msk [vmem:[%s399] sm:$0xff] %vm20, %v3097
    %3099 = vst.msk [vmem:[%s609] sm:$0xff] %vm20, %v3091
    %s3100 = scalar_lea.vmem %s0, 128
    %v3101 = vld [vmem:[%s3100] sm:$0xff]
    %s3102 = scalar_lea.vmem %s0, 136
    %v3103 = vld [vmem:[%s3102] sm:$0xff]
    %v3104 = vld [vmem:[%s1 + $0xa0] sm:$0xff]
    %v3105 = vld [vmem:[%s1 + $0xa8] sm:$0xff]
    %v3106 = vld [vmem:[%s1 + $0xb0] sm:$0xff]
    %v3107 = vld [vmem:[%s1 + $0xb8] sm:$0xff]
    %v3108 = vld [vmem:[%s1 + $0xc0] sm:$0x1]
    %v3109 = vld [vmem:[#allocation2] sm:$0xff]
    %v3110 = vld [vmem:[#allocation2 + $0x8] sm:$0xff]
    %v3111 = vld [vmem:[#allocation2 + $0x10] sm:$0xff]
    %v3112 = vld [vmem:[#allocation2 + $0x18] sm:$0xff]
    %v3113 = vlaneseq
    %v3114 = vshrl.u32 %v3113, 7
    %v3115 = vsub.s32 0, %v3114
    %v3116 = vrot.slane %v3108, %v3115
    %v3118 = vsel %vm20, %v3109, 0
    %v3121 = vsel %vm20, %v3110, 0
    %v3124 = vsel %vm20, %v3111, 0
    %v3127 = vsel %vm20, %v3112, 0
    %3129 = vmatprep.subr.mxu0 0.0
    %3130 = vmatpush1.msra.mxu0 %v3104
    %3131 = vmatprep.subr.mxu0 0.0
    %3132 = vmatpush1.msra.mxu0 %v3105
    %3133 = vmatprep.subr.mxu0 0.0
    %3134 = vmatpush1.msra.mxu0 0.0
    %3135 = vmatprep.subr.mxu0 0.0
    %3136 = vmatpush1.msra.mxu0 0.0
    %3137 = vmatprep.subr.mxu0 0.0
    %3138 = vmatpush1.msra.mxu0 0.0
    %3139 = vmatprep.subr.mxu0 0.0
    %3140 = vmatpush1.msra.mxu0 0.0
    %3141 = vmatprep.subr.mxu0 0.0
    %3142 = vmatpush1.msra.mxu0 0.0
    %3143 = vmatprep.subr.mxu0 0.0
    %3144 = vmatpush1.msra.mxu0 0.0
    %3145 = vmatprep.subr.mxu0 0.0
    %3146 = vmatpush1.msra.mxu0 0.0
    %3147 = vmatprep.subr.mxu0 0.0
    %3148 = vmatpush1.msra.mxu0 0.0
    %3149 = vmatprep.subr.mxu0 0.0
    %3150 = vmatpush1.msra.mxu0 0.0
    %3151 = vmatprep.subr.mxu0 0.0
    %3152 = vmatpush1.msra.mxu0 0.0
    %3153 = vmatprep.subr.mxu0 0.0
    %3154 = vmatpush1.msra.mxu0 0.0
    %3155 = vmatprep.subr.mxu0 0.0
    %3156 = vmatpush1.msra.mxu0 0.0
    %3157 = vmatprep.subr.mxu0 0.0
    %3158 = vmatpush1.msra.mxu0 0.0
    %3159 = vmatprep.subr.mxu0 0.0
    %3160 = vmatpush1.msra.mxu0 0.0
    %3161 = vmatprep.subr.mxu0 0.0
    %3162 = vmatpush1.msra.mxu0 0.0
    %3163 = vmatprep.subr.mxu0 0.0
    %3164 = vmatpush1.msra.mxu0 0.0
    %3165 = vmatprep.subr.mxu0 0.0
    %3166 = vmatpush1.msra.mxu0 0.0
    %3167 = vmatprep.subr.mxu0 0.0
    %3168 = vmatpush1.msra.mxu0 0.0
    %3169 = vmatprep.subr.mxu0 0.0
    %3170 = vmatpush1.msra.mxu0 0.0
    %3171 = vmatprep.subr.mxu0 0.0
    %3172 = vmatpush1.msra.mxu0 0.0
    %3173 = vmatprep.subr.mxu0 0.0
    %3174 = vmatpush1.msra.mxu0 0.0
    %3175 = vmatprep.subr.mxu0 0.0
    %3176 = vmatpush1.msra.mxu0 0.0
    %3177 = vmatprep.subr.mxu0 0.0
    %3178 = vmatpush1.msra.mxu0 0.0
    %3179 = vmatprep.subr.mxu0 0.0
    %3180 = vmatpush1.msra.mxu0 0.0
    %3181 = vmatprep.subr.mxu0 0.0
    %3182 = vmatpush1.msra.mxu0 0.0
    %3183 = vmatprep.subr.mxu0 0.0
    %3184 = vmatpush1.msra.mxu0 0.0
    %3185 = vmatprep.subr.mxu0 0.0
    %3186 = vmatpush1.msra.mxu0 0.0
    %3187 = vmatprep.subr.mxu0 0.0
    %3188 = vmatpush1.msra.mxu0 0.0
    %3189 = vmatprep.subr.mxu0 0.0
    %3190 = vmatpush1.msra.mxu0 0.0
    %3191 = vmatprep.subr.mxu0 0.0
    %3192 = vmatpush1.msra.mxu0 0.0
    %3193 = vmatprep.mubr.f32.mxu0 0.0
    %3194 = vmatmul.mubr.f32.gmra.mrb[0].mxu0 %v3118
    %v3195 = vpop.f32.mrb[0].mxu0
    %v3196 = vadd.f32 %v3116, %v3195
    %v3197 = vpop.f32.mrb[0].mxu0
    %3198 = vmatprep.mubr.f32.mxu0 0.0
    %3199 = vmatmul.mubr.f32.gmra.mrb[0].mxu0 %v3121
    %v3200 = vpop.f32.mrb[0].mxu0
    %v3201 = vadd.f32 %v3116, %v3200
    %v3202 = vpop.f32.mrb[0].mxu0
    %3203 = vmatprep.mubr.f32.mxu0 0.0
    %3204 = vmatmul.mubr.f32.gmra.mrb[0].mxu0 %v3124
    %v3205 = vpop.f32.mrb[0].mxu0
    %v3206 = vadd.f32 %v3116, %v3205
    %v3207 = vpop.f32.mrb[0].mxu0
    %3208 = vmatprep.mubr.f32.mxu0 0.0
    %3209 = vmatmul.mubr.f32.gmra.mrb[0].mxu0 %v3127
    %v3210 = vpop.f32.mrb[0].mxu0
    %v3211 = vadd.f32 %v3116, %v3210
    %v3212 = vpop.f32.mrb[0].mxu0
    %3213 = vdwg.mxu0
    %3214 = vst.msk [vmem:[#allocation3] sm:$0xff] %vm179, %v3196
    %3215 = vst.msk [vmem:[#allocation3 + $0x8] sm:$0xff] %vm179, %v3201
    %3216 = vst.msk [vmem:[#allocation3 + $0x10] sm:$0xff] %vm179, %v3206
    %3217 = vst.msk [vmem:[#allocation3 + $0x18] sm:$0xff] %vm179, %v3211
    %v3218 = vld [vmem:[#allocation3] sm:$0xff]
    %v3220 = vsel %vm20, %v3101, 0
    %3222 = vmatprep.subr.mxu0 0.0
    %3223 = vmatpush1.msra.mxu0 %v3106
    %3224 = vmatprep.subr.mxu0 0.0
    %3225 = vmatpush1.msra.mxu0 %v3107
    %3226 = vmatprep.subr.mxu0 0.0
    %3227 = vmatpush1.msra.mxu0 0.0
    %3228 = vmatprep.subr.mxu0 0.0
    %3229 = vmatpush1.msra.mxu0 0.0
    %3230 = vmatprep.subr.mxu0 0.0
    %3231 = vmatpush1.msra.mxu0 0.0
    %3232 = vmatprep.subr.mxu0 0.0
    %3233 = vmatpush1.msra.mxu0 0.0
    %3234 = vmatprep.subr.mxu0 0.0
    %3235 = vmatpush1.msra.mxu0 0.0
    %3236 = vmatprep.subr.mxu0 0.0
    %3237 = vmatpush1.msra.mxu0 0.0
    %3238 = vmatprep.subr.mxu0 0.0
    %3239 = vmatpush1.msra.mxu0 0.0
    %3240 = vmatprep.subr.mxu0 0.0
    %3241 = vmatpush1.msra.mxu0 0.0
    %3242 = vmatprep.subr.mxu0 0.0
    %3243 = vmatpush1.msra.mxu0 0.0
    %3244 = vmatprep.subr.mxu0 0.0
    %3245 = vmatpush1.msra.mxu0 0.0
    %3246 = vmatprep.subr.mxu0 0.0
    %3247 = vmatpush1.msra.mxu0 0.0
    %3248 = vmatprep.subr.mxu0 0.0
    %3249 = vmatpush1.msra.mxu0 0.0
    %3250 = vmatprep.subr.mxu0 0.0
    %3251 = vmatpush1.msra.mxu0 0.0
    %3252 = vmatprep.subr.mxu0 0.0
    %3253 = vmatpush1.msra.mxu0 0.0
    %3254 = vmatprep.subr.mxu0 0.0
    %3255 = vmatpush1.msra.mxu0 0.0
    %3256 = vmatprep.subr.mxu0 0.0
    %3257 = vmatpush1.msra.mxu0 0.0
    %3258 = vmatprep.subr.mxu0 0.0
    %3259 = vmatpush1.msra.mxu0 0.0
    %3260 = vmatprep.subr.mxu0 0.0
    %3261 = vmatpush1.msra.mxu0 0.0
    %3262 = vmatprep.subr.mxu0 0.0
    %3263 = vmatpush1.msra.mxu0 0.0
    %3264 = vmatprep.subr.mxu0 0.0
    %3265 = vmatpush1.msra.mxu0 0.0
    %3266 = vmatprep.subr.mxu0 0.0
    %3267 = vmatpush1.msra.mxu0 0.0
    %3268 = vmatprep.subr.mxu0 0.0
    %3269 = vmatpush1.msra.mxu0 0.0
    %3270 = vmatprep.subr.mxu0 0.0
    %3271 = vmatpush1.msra.mxu0 0.0
    %3272 = vmatprep.subr.mxu0 0.0
    %3273 = vmatpush1.msra.mxu0 0.0
    %3274 = vmatprep.subr.mxu0 0.0
    %3275 = vmatpush1.msra.mxu0 0.0
    %3276 = vmatprep.subr.mxu0 0.0
    %3277 = vmatpush1.msra.mxu0 0.0
    %3278 = vmatprep.subr.mxu0 0.0
    %3279 = vmatpush1.msra.mxu0 0.0
    %3280 = vmatprep.subr.mxu0 0.0
    %3281 = vmatpush1.msra.mxu0 0.0
    %3282 = vmatprep.subr.mxu0 0.0
    %3283 = vmatpush1.msra.mxu0 0.0
    %3284 = vmatprep.subr.mxu0 0.0
    %3285 = vmatpush1.msra.mxu0 0.0
    %3286 = vmatprep.mubr.f32.mxu0 0.0
    %3287 = vmatmul.mubr.f32.gmra.mrb[0].mxu0 %v3220
    %v3288 = vpop.f32.mrb[0].mxu0
    %v3289 = vadd.f32 0.0, %v3288
    %v3290 = vpop.f32.mrb[0].mxu0
    %3291 = vdwg.mxu0
    %v3292 = vadd.f32 %v3218, %v3289
    %v3293 = vxor.u32 %v3292, 2147483648
    %v3294 = vmul.f32 %v3293, 1.442695
    %v3295 = vpow.pop %v3294
    %v3296 = vadd.f32 %v3295, 1.0
    %v3297 = vrcp.pop %v3296
    %v3298 = vmul.f32 1.0, %v3297
    %v3299 = vtanh.pop %v3292
    %3301 = vrot.lane.b32.xlu0 %v3103, 16
    %v3302 = vpop.permute.xlu0 %3301
    %v3304 = vmul.f32 %v3298, %v3302
    %3306 = vrot.lane.b32.xlu0 %v3299, 80
    %v3307 = vpop.permute.xlu0 %3306
    %v3309 = vmul.f32 %v3298, %v3307
    %3311 = vrot.lane.b32.xlu0 %v3309, 16
    %v3312 = vpop.permute.xlu0 %3311
    %v3314 = vadd.f32 %v3304, %v3312
    %v3315 = vtanh.pop %v3314
    %3317 = vrot.lane.b32.xlu0 %v3315, 16
    %v3318 = vpop.permute.xlu0 %3317
    %v3320 = vmul.f32 %v3298, %v3318
    %3322 = vrot.lane.b32.xlu0 %v3320, 96
    %v3323 = vpop.permute.xlu0 %3322
    %3325 = vst.msk [vmem:[#allocation2] sm:$0xff] %vm20, %v3323
    %v3326 = vld [vmem:[%s296] sm:$0xff]
    %v3327 = vsel %vm20, %v3323, 0
    %3329 = vmatprep.subr.mxu0 0.0
    %3330 = vmatpush1.msra.mxu0 %v3106
    %3331 = vmatprep.subr.mxu0 0.0
    %3332 = vmatpush1.msra.mxu0 %v3107
    %3333 = vmatprep.subr.mxu0 0.0
    %3334 = vmatpush1.msra.mxu0 0.0
    %3335 = vmatprep.subr.mxu0 0.0
    %3336 = vmatpush1.msra.mxu0 0.0
    %3337 = vmatprep.subr.mxu0 0.0
    %3338 = vmatpush1.msra.mxu0 0.0
    %3339 = vmatprep.subr.mxu0 0.0
    %3340 = vmatpush1.msra.mxu0 0.0
    %3341 = vmatprep.subr.mxu0 0.0
    %3342 = vmatpush1.msra.mxu0 0.0
    %3343 = vmatprep.subr.mxu0 0.0
    %3344 = vmatpush1.msra.mxu0 0.0
    %3345 = vmatprep.subr.mxu0 0.0
    %3346 = vmatpush1.msra.mxu0 0.0
    %3347 = vmatprep.subr.mxu0 0.0
    %3348 = vmatpush1.msra.mxu0 0.0
    %3349 = vmatprep.subr.mxu0 0.0
    %3350 = vmatpush1.msra.mxu0 0.0
    %3351 = vmatprep.subr.mxu0 0.0
    %3352 = vmatpush1.msra.mxu0 0.0
    %3353 = vmatprep.subr.mxu0 0.0
    %3354 = vmatpush1.msra.mxu0 0.0
    %3355 = vmatprep.subr.mxu0 0.0
    %3356 = vmatpush1.msra.mxu0 0.0
    %3357 = vmatprep.subr.mxu0 0.0
    %3358 = vmatpush1.msra.mxu0 0.0
    %3359 = vmatprep.subr.mxu0 0.0
    %3360 = vmatpush1.msra.mxu0 0.0
    %3361 = vmatprep.subr.mxu0 0.0
    %3362 = vmatpush1.msra.mxu0 0.0
    %3363 = vmatprep.subr.mxu0 0.0
    %3364 = vmatpush1.msra.mxu0 0.0
    %3365 = vmatprep.subr.mxu0 0.0
    %3366 = vmatpush1.msra.mxu0 0.0
    %3367 = vmatprep.subr.mxu0 0.0
    %3368 = vmatpush1.msra.mxu0 0.0
    %3369 = vmatprep.subr.mxu0 0.0
    %3370 = vmatpush1.msra.mxu0 0.0
    %3371 = vmatprep.subr.mxu0 0.0
    %3372 = vmatpush1.msra.mxu0 0.0
    %3373 = vmatprep.subr.mxu0 0.0
    %3374 = vmatpush1.msra.mxu0 0.0
    %3375 = vmatprep.subr.mxu0 0.0
    %3376 = vmatpush1.msra.mxu0 0.0
    %3377 = vmatprep.subr.mxu0 0.0
    %3378 = vmatpush1.msra.mxu0 0.0
    %3379 = vmatprep.subr.mxu0 0.0
    %3380 = vmatpush1.msra.mxu0 0.0
    %3381 = vmatprep.subr.mxu0 0.0
    %3382 = vmatpush1.msra.mxu0 0.0
    %3383 = vmatprep.subr.mxu0 0.0
    %3384 = vmatpush1.msra.mxu0 0.0
    %3385 = vmatprep.subr.mxu0 0.0
    %3386 = vmatpush1.msra.mxu0 0.0
    %3387 = vmatprep.subr.mxu0 0.0
    %3388 = vmatpush1.msra.mxu0 0.0
    %3389 = vmatprep.subr.mxu0 0.0
    %3390 = vmatpush1.msra.mxu0 0.0
    %3391 = vmatprep.subr.mxu0 0.0
    %3392 = vmatpush1.msra.mxu0 0.0
    %3393 = vmatprep.mubr.f32.mxu0 0.0
    %3394 = vmatmul.mubr.f32.gmra.mrb[0].mxu0 %v3327
    %v3395 = vpop.f32.mrb[0].mxu0
    %v3396 = vadd.f32 0.0, %v3395
    %v3397 = vpop.f32.mrb[0].mxu0
    %3398 = vdwg.mxu0
    %v3399 = vadd.f32 %v3326, %v3396
    %v3400 = vxor.u32 %v3399, 2147483648
    %v3401 = vmul.f32 %v3400, 1.442695
    %v3402 = vpow.pop %v3401
    %v3403 = vadd.f32 %v3402, 1.0
    %v3404 = vrcp.pop %v3403
    %v3405 = vmul.f32 1.0, %v3404
    %v3406 = vtanh.pop %v3399
    %v3407 = vmul.f32 %v3405, %v3314
    %3409 = vrot.lane.b32.xlu0 %v3406, 80
    %v3410 = vpop.permute.xlu0 %3409
    %v3412 = vmul.f32 %v3405, %v3410
    %3414 = vrot.lane.b32.xlu0 %v3412, 16
    %v3415 = vpop.permute.xlu0 %3414
    %v3417 = vadd.f32 %v3407, %v3415
    %v3418 = vtanh.pop %v3417
    %3420 = vrot.lane.b32.xlu0 %v3418, 16
    %v3421 = vpop.permute.xlu0 %3420
    %v3423 = vmul.f32 %v3405, %v3421
    %3425 = vrot.lane.b32.xlu0 %v3423, 96
    %v3426 = vpop.permute.xlu0 %3425
    %3428 = vst.msk [vmem:[%s399] sm:$0xff] %vm20, %v3426
    %v3429 = vld [vmem:[%s401] sm:$0xff]
    %v3430 = vsel %vm20, %v3426, 0
    %3432 = vmatprep.subr.mxu0 0.0
    %3433 = vmatpush1.msra.mxu0 %v3106
    %3434 = vmatprep.subr.mxu0 0.0
    %3435 = vmatpush1.msra.mxu0 %v3107
    %3436 = vmatprep.subr.mxu0 0.0
    %3437 = vmatpush1.msra.mxu0 0.0
    %3438 = vmatprep.subr.mxu0 0.0
    %3439 = vmatpush1.msra.mxu0 0.0
    %3440 = vmatprep.subr.mxu0 0.0
    %3441 = vmatpush1.msra.mxu0 0.0
    %3442 = vmatprep.subr.mxu0 0.0
    %3443 = vmatpush1.msra.mxu0 0.0
    %3444 = vmatprep.subr.mxu0 0.0
    %3445 = vmatpush1.msra.mxu0 0.0
    %3446 = vmatprep.subr.mxu0 0.0
    %3447 = vmatpush1.msra.mxu0 0.0
    %3448 = vmatprep.subr.mxu0 0.0
    %3449 = vmatpush1.msra.mxu0 0.0
    %3450 = vmatprep.subr.mxu0 0.0
    %3451 = vmatpush1.msra.mxu0 0.0
    %3452 = vmatprep.subr.mxu0 0.0
    %3453 = vmatpush1.msra.mxu0 0.0
    %3454 = vmatprep.subr.mxu0 0.0
    %3455 = vmatpush1.msra.mxu0 0.0
    %3456 = vmatprep.subr.mxu0 0.0
    %3457 = vmatpush1.msra.mxu0 0.0
    %3458 = vmatprep.subr.mxu0 0.0
    %3459 = vmatpush1.msra.mxu0 0.0
    %3460 = vmatprep.subr.mxu0 0.0
    %3461 = vmatpush1.msra.mxu0 0.0
    %3462 = vmatprep.subr.mxu0 0.0
    %3463 = vmatpush1.msra.mxu0 0.0
    %3464 = vmatprep.subr.mxu0 0.0
    %3465 = vmatpush1.msra.mxu0 0.0
    %3466 = vmatprep.subr.mxu0 0.0
    %3467 = vmatpush1.msra.mxu0 0.0
    %3468 = vmatprep.subr.mxu0 0.0
    %3469 = vmatpush1.msra.mxu0 0.0
    %3470 = vmatprep.subr.mxu0 0.0
    %3471 = vmatpush1.msra.mxu0 0.0
    %3472 = vmatprep.subr.mxu0 0.0
    %3473 = vmatpush1.msra.mxu0 0.0
    %3474 = vmatprep.subr.mxu0 0.0
    %3475 = vmatpush1.msra.mxu0 0.0
    %3476 = vmatprep.subr.mxu0 0.0
    %3477 = vmatpush1.msra.mxu0 0.0
    %3478 = vmatprep.subr.mxu0 0.0
    %3479 = vmatpush1.msra.mxu0 0.0
    %3480 = vmatprep.subr.mxu0 0.0
    %3481 = vmatpush1.msra.mxu0 0.0
    %3482 = vmatprep.subr.mxu0 0.0
    %3483 = vmatpush1.msra.mxu0 0.0
    %3484 = vmatprep.subr.mxu0 0.0
    %3485 = vmatpush1.msra.mxu0 0.0
    %3486 = vmatprep.subr.mxu0 0.0
    %3487 = vmatpush1.msra.mxu0 0.0
    %3488 = vmatprep.subr.mxu0 0.0
    %3489 = vmatpush1.msra.mxu0 0.0
    %3490 = vmatprep.subr.mxu0 0.0
    %3491 = vmatpush1.msra.mxu0 0.0
    %3492 = vmatprep.subr.mxu0 0.0
    %3493 = vmatpush1.msra.mxu0 0.0
    %3494 = vmatprep.subr.mxu0 0.0
    %3495 = vmatpush1.msra.mxu0 0.0
    %3496 = vmatprep.mubr.f32.mxu0 0.0
    %3497 = vmatmul.mubr.f32.gmra.mrb[0].mxu0 %v3430
    %v3498 = vpop.f32.mrb[0].mxu0
    %v3499 = vadd.f32 0.0, %v3498
    %v3500 = vpop.f32.mrb[0].mxu0
    %3501 = vdwg.mxu0
    %v3502 = vadd.f32 %v3429, %v3499
    %v3503 = vxor.u32 %v3502, 2147483648
    %v3504 = vmul.f32 %v3503, 1.442695
    %v3505 = vpow.pop %v3504
    %v3506 = vadd.f32 %v3505, 1.0
    %v3507 = vrcp.pop %v3506
    %v3508 = vmul.f32 1.0, %v3507
    %v3509 = vtanh.pop %v3502
    %v3510 = vmul.f32 %v3508, %v3417
    %3512 = vrot.lane.b32.xlu0 %v3509, 80
    %v3513 = vpop.permute.xlu0 %3512
    %v3515 = vmul.f32 %v3508, %v3513
    %3517 = vrot.lane.b32.xlu0 %v3515, 16
    %v3518 = vpop.permute.xlu0 %3517
    %v3520 = vadd.f32 %v3510, %v3518
    %v3521 = vtanh.pop %v3520
    %3523 = vrot.lane.b32.xlu0 %v3521, 16
    %v3524 = vpop.permute.xlu0 %3523
    %v3526 = vmul.f32 %v3508, %v3524
    %3528 = vrot.lane.b32.xlu0 %v3526, 96
    %v3529 = vpop.permute.xlu0 %3528
    %3531 = vst.msk [vmem:[%s504] sm:$0xff] %vm20, %v3529
    %v3532 = vld [vmem:[%s506] sm:$0xff]
    %v3533 = vsel %vm20, %v3529, 0
    %3535 = vmatprep.subr.mxu0 0.0
    %3536 = vmatpush1.msra.mxu0 %v3106
    %3537 = vmatprep.subr.mxu0 0.0
    %3538 = vmatpush1.msra.mxu0 %v3107
    %3539 = vmatprep.subr.mxu0 0.0
    %3540 = vmatpush1.msra.mxu0 0.0
    %3541 = vmatprep.subr.mxu0 0.0
    %3542 = vmatpush1.msra.mxu0 0.0
    %3543 = vmatprep.subr.mxu0 0.0
    %3544 = vmatpush1.msra.mxu0 0.0
    %3545 = vmatprep.subr.mxu0 0.0
    %3546 = vmatpush1.msra.mxu0 0.0
    %3547 = vmatprep.subr.mxu0 0.0
    %3548 = vmatpush1.msra.mxu0 0.0
    %3549 = vmatprep.subr.mxu0 0.0
    %3550 = vmatpush1.msra.mxu0 0.0
    %3551 = vmatprep.subr.mxu0 0.0
    %3552 = vmatpush1.msra.mxu0 0.0
    %3553 = vmatprep.subr.mxu0 0.0
    %3554 = vmatpush1.msra.mxu0 0.0
    %3555 = vmatprep.subr.mxu0 0.0
    %3556 = vmatpush1.msra.mxu0 0.0
    %3557 = vmatprep.subr.mxu0 0.0
    %3558 = vmatpush1.msra.mxu0 0.0
    %3559 = vmatprep.subr.mxu0 0.0
    %3560 = vmatpush1.msra.mxu0 0.0
    %3561 = vmatprep.subr.mxu0 0.0
    %3562 = vmatpush1.msra.mxu0 0.0
    %3563 = vmatprep.subr.mxu0 0.0
    %3564 = vmatpush1.msra.mxu0 0.0
    %3565 = vmatprep.subr.mxu0 0.0
    %3566 = vmatpush1.msra.mxu0 0.0
    %3567 = vmatprep.subr.mxu0 0.0
    %3568 = vmatpush1.msra.mxu0 0.0
    %3569 = vmatprep.subr.mxu0 0.0
    %3570 = vmatpush1.msra.mxu0 0.0
    %3571 = vmatprep.subr.mxu0 0.0
    %3572 = vmatpush1.msra.mxu0 0.0
    %3573 = vmatprep.subr.mxu0 0.0
    %3574 = vmatpush1.msra.mxu0 0.0
    %3575 = vmatprep.subr.mxu0 0.0
    %3576 = vmatpush1.msra.mxu0 0.0
    %3577 = vmatprep.subr.mxu0 0.0
    %3578 = vmatpush1.msra.mxu0 0.0
    %3579 = vmatprep.subr.mxu0 0.0
    %3580 = vmatpush1.msra.mxu0 0.0
    %3581 = vmatprep.subr.mxu0 0.0
    %3582 = vmatpush1.msra.mxu0 0.0
    %3583 = vmatprep.subr.mxu0 0.0
    %3584 = vmatpush1.msra.mxu0 0.0
    %3585 = vmatprep.subr.mxu0 0.0
    %3586 = vmatpush1.msra.mxu0 0.0
    %3587 = vmatprep.subr.mxu0 0.0
    %3588 = vmatpush1.msra.mxu0 0.0
    %3589 = vmatprep.subr.mxu0 0.0
    %3590 = vmatpush1.msra.mxu0 0.0
    %3591 = vmatprep.subr.mxu0 0.0
    %3592 = vmatpush1.msra.mxu0 0.0
    %3593 = vmatprep.subr.mxu0 0.0
    %3594 = vmatpush1.msra.mxu0 0.0
    %3595 = vmatprep.subr.mxu0 0.0
    %3596 = vmatpush1.msra.mxu0 0.0
    %3597 = vmatprep.subr.mxu0 0.0
    %3598 = vmatpush1.msra.mxu0 0.0
    %3599 = vmatprep.mubr.f32.mxu0 0.0
    %3600 = vmatmul.mubr.f32.gmra.mrb[0].mxu0 %v3533
    %v3601 = vpop.f32.mrb[0].mxu0
    %v3602 = vadd.f32 0.0, %v3601
    %v3603 = vpop.f32.mrb[0].mxu0
    %3604 = vdwg.mxu0
    %v3605 = vadd.f32 %v3532, %v3602
    %v3606 = vxor.u32 %v3605, 2147483648
    %v3607 = vmul.f32 %v3606, 1.442695
    %v3608 = vpow.pop %v3607
    %v3609 = vadd.f32 %v3608, 1.0
    %v3610 = vrcp.pop %v3609
    %v3611 = vmul.f32 1.0, %v3610
    %v3612 = vtanh.pop %v3605
    %v3613 = vmul.f32 %v3611, %v3520
    %3615 = vrot.lane.b32.xlu0 %v3612, 80
    %v3616 = vpop.permute.xlu0 %3615
    %v3618 = vmul.f32 %v3611, %v3616
    %3620 = vrot.lane.b32.xlu0 %v3618, 16
    %v3621 = vpop.permute.xlu0 %3620
    %v3623 = vadd.f32 %v3613, %v3621
    %v3624 = vtanh.pop %v3623
    %3626 = vrot.lane.b32.xlu0 %v3624, 16
    %v3627 = vpop.permute.xlu0 %3626
    %v3629 = vmul.f32 %v3611, %v3627
    %3631 = vrot.lane.b32.xlu0 %v3629, 96
    %v3632 = vpop.permute.xlu0 %3631
    %3634 = vst.msk [vmem:[%s609] sm:$0xff] %vm20, %v3632
    %v3635 = vld [vmem:[#allocation2] sm:$0xff]
    %v3636 = vld [vmem:[#allocation2 + $0x8] sm:$0xff]
    %v3637 = vld [vmem:[#allocation2 + $0x10] sm:$0xff]
    %v3638 = vld [vmem:[#allocation2 + $0x18] sm:$0xff]
    %3640 = vrot.lane.b32.xlu0 %v3623, 112
    %v3641 = vpop.permute.xlu0 %3640
    %3644 = vrot.lane.b32.xlu0 %v2547, 112
    %v3645 = vpop.permute.xlu0 %3644
    %3648 = vrot.lane.b32.xlu0 %v3082, 112
    %v3649 = vpop.permute.xlu0 %3648
    %3651 = vst.msk [vmem:[#allocation4] sm:$0xff] %vm20, %v3635
    %3652 = vst.msk [vmem:[#allocation4 + $0x8] sm:$0xff] %vm20, %v3636
    %3653 = vst.msk [vmem:[#allocation4 + $0x10] sm:$0xff] %vm20, %v3637
    %3654 = vst.msk [vmem:[#allocation4 + $0x18] sm:$0xff] %vm20, %v3638
    %3655 = vst.msk [vmem:[#allocation4 + $0x20] sm:$0xff] %vm20, %v3632
    %3656 = vst.msk [vmem:[#allocation4 + $0x28] sm:$0xff] %vm20, %v3641
    %3657 = vst.msk [vmem:[#allocation4 + $0x30] sm:$0xff] %vm20, %v2556
    %3658 = vst.msk [vmem:[#allocation4 + $0x38] sm:$0xff] %vm20, %v3091
    %3659 = vst.msk [vmem:[#allocation4 + $0x40] sm:$0xff] %vm20, %v3645
    %3660 = vst.msk [vmem:[#allocation4 + $0x48] sm:$0xff] %vm20, %v3649
    // Predicated region
    $region10: #{tpu_custom_call.1} parent=1 // pred_check
      _
    $region11: #{tpu_custom_call.1} parent=1 // pred_check_branch
      %3662 = sbr.rel (0) target = $region13
    $region12: #{tpu_custom_call.1} parent=1 // pred_region
      %s3664 = ssub.s32 1280, 1280
      %3665 = vsyncadd [#allocation5], %s3664
      %s3666 = sshll.u32 [#allocation4], 4
      %s3667 = int_to_ptr.vmem [resolvable:$true] %s3666
      %3672 = dma.vmem_to_hbm [thread:$0]  %s3667, 1280, %s2, [#allocation5], 128, 128, 8
    $region13: #{tpu_custom_call.1} parent=1 // pred_fallthru
      _
    // Predicated region
    $region14: #{tpu_custom_call.1} parent=1 // pred_check
      _
    $region15: #{tpu_custom_call.1} parent=1 // pred_check_branch
      %3674 = sbr.rel (0) target = $region17
    $region16: #{tpu_custom_call.1} parent=1 // pred_region
      %3675 = dma.done [#allocation5], 1280
    $region17: #{tpu_custom_call.1} parent=1 // pred_fallthru
      _
    %3676 = vsyncpa [#allocation5], 1

</llo_original>
